<compile_context>
chip_gen: v5e
topology: v5e:2x2
jax: 0.10.0
libtpu: 0.0.40
codegen_flags: <defaults>
</compile_context>

<pallas_src>
import jax
import jax.numpy as jnp
from jax.experimental import pallas as pl
from jax.experimental.pallas import tpu as pltpu

SLOPE = 0.2
IN_FEATURES = 18512
H1, H2, H3, OUT = 256, 128, 64, 1

# First-layer tiling: K padded to N_HALF * N_INNER * K_TILE.
N_HALF = 2                          # leading ("parallel") axis -> 2 TCs on v7x
N_INNER = 2                         # K tiles per half ("arbitrary" reduction)
K_TILE = 4736                       # 37 * 128
K_PAD = N_HALF * N_INNER * K_TILE   # 18944

BATCH_ALIGN = 16                    # bf16-friendly sublane multiple


def _leaky_relu(x, slope=SLOPE):
    return jnp.where(x >= 0, x, slope * x)


def _w1_partial_kernel(x_ref, w1_ref, o_ref):
    """Partial first-layer matmul.

    Grid = (N_HALF, N_INNER).  For each half c, accumulate
    o[c] = sum_k x[:, tile(c,k)] @ W1[tile(c,k), :] directly into the resident
    f32 output block (constant output index across the inner "arbitrary" axis).
    """
    @pl.when(pl.program_id(1) == 0)
    def _():
        o_ref[...] = jnp.zeros_like(o_ref)

    o_ref[...] += jnp.dot(x_ref[...], w1_ref[...],
                          preferred_element_type=jnp.float32)[None]


def _tail_kernel(p_ref, b1_ref, w2_ref, b2_ref, w3_ref, b3_ref,
                 w4_ref, b4_ref, o_ref):
    """Combine the two partial sums and run the tiny tail of the MLP in VMEM."""
    h = _leaky_relu(p_ref[0] + p_ref[1] + b1_ref[...])
    h = _leaky_relu(
        jnp.dot(h, w2_ref[...], preferred_element_type=jnp.float32) + b2_ref[...])
    h = _leaky_relu(
        jnp.dot(h, w3_ref[...], preferred_element_type=jnp.float32) + b3_ref[...])
    out = jnp.dot(h, w4_ref[...], preferred_element_type=jnp.float32) + b4_ref[...]
    o_ref[...] = out.astype(o_ref.dtype)


def prepare_params(params):
    """One-time packing (run eagerly, outside jit): pad W1 rows to K_PAD, cast
    W1 to bf16, reshape biases to (1, N).  Keeps the ~19 MB weight from being
    re-padded / re-copied in HBM on every forward call."""
    (w1, b1), (w2, b2), (w3, b3), (w4, b4) = params
    w1_p = jnp.zeros((K_PAD, H1), jnp.bfloat16)
    w1_p = w1_p.at[:IN_FEATURES, :].set(w1.astype(jnp.bfloat16))
    return (
        w1_p,
        b1.reshape(1, H1).astype(jnp.float32),
        w2.astype(jnp.float32), b2.reshape(1, H2).astype(jnp.float32),
        w3.astype(jnp.float32), b3.reshape(1, H3).astype(jnp.float32),
        w4.astype(jnp.float32), b4.reshape(1, OUT).astype(jnp.float32),
    )


@jax.jit
def discriminator_forward(x, prepared):
    """x: (B, 18512) f32 -> (B, 1) f32."""
    w1_p, b1, w2, b2, w3, b3, w4, b4 = prepared
    B, K = x.shape
    assert K == IN_FEATURES
    B_pad = ((B + BATCH_ALIGN - 1) // BATCH_ALIGN) * BATCH_ALIGN

    # Only x needs per-call padding (B_pad x 18944 bf16 -> tiny); cast to bf16
    # so the MXU runs a native bf16 matmul with f32 accumulation.
    x_p = jnp.zeros((B_pad, K_PAD), jnp.bfloat16)
    x_p = x_p.at[:B, :K].set(x.astype(jnp.bfloat16))

    w1_bytes = K_PAD * H1 * 2
    x_bytes = B_pad * K_PAD * 2
    p_bytes = N_HALF * B_pad * H1 * 4

    partial = pl.pallas_call(
        _w1_partial_kernel,
        out_shape=jax.ShapeDtypeStruct((N_HALF, B_pad, H1), jnp.float32),
        grid_spec=pltpu.PrefetchScalarGridSpec(
            num_scalar_prefetch=0,
            grid=(N_HALF, N_INNER),
            in_specs=[
                pl.BlockSpec((B_pad, K_TILE),
                             lambda c, k: (0, c * N_INNER + k)),      # x tile
                pl.BlockSpec((K_TILE, H1),
                             lambda c, k: (c * N_INNER + k, 0)),      # W1 tile
            ],
            out_specs=pl.BlockSpec((1, B_pad, H1), lambda c, k: (c, 0, 0)),
        ),
        compiler_params=pltpu.CompilerParams(
            dimension_semantics=("parallel", "arbitrary")),
        cost_estimate=pl.CostEstimate(
            flops=2 * B_pad * K_PAD * H1,
            transcendentals=0,
            bytes_accessed=w1_bytes + x_bytes + p_bytes),
    )(x_p, w1_p)

    tail_bytes = (p_bytes + (H1 * H2 + H2 * H3 + H3 * OUT) * 4
                  + (H1 + H2 + H3 + OUT) * 4 + B_pad * OUT * 4)
    out = pl.pallas_call(
        _tail_kernel,
        out_shape=jax.ShapeDtypeStruct((B_pad, OUT), jnp.float32),
        cost_estimate=pl.CostEstimate(
            flops=2 * B_pad * (H1 * H2 + H2 * H3 + H3 * OUT),
            transcendentals=0,
            bytes_accessed=tail_bytes),
    )(partial, b1, w2, b2, w3, b3, w4, b4)

    return out[:B, :]


def init_params(key):
    """Kaiming-normal (fan_in, leaky_relu a=0.2) weights, zero biases.

    Weights are stored as (in_features, out_features) — the transpose of
    PyTorch's nn.Linear layout — so every layer computes y = x @ W + b.
    """
    gain = (2.0 / (1.0 + SLOPE ** 2)) ** 0.5
    dims = [(IN_FEATURES, H1), (H1, H2), (H2, H3), (H3, OUT)]
    params = []
    keys = jax.random.split(key, len(dims))
    for k, (fin, fout) in zip(keys, dims):
        std = gain / (fin ** 0.5)
        w = std * jax.random.normal(k, (fin, fout), jnp.float32)
        b = jnp.zeros((fout,), jnp.float32)
        params.append((w, b))
    return params


def _reference_forward_f32(x, params):
    h = x
    for i, (w, b) in enumerate(params):
        h = h @ w + b
        if i < len(params) - 1:
            h = _leaky_relu(h)
    return h


def _reference_forward_bf16_w1(x, params):
    """Mirrors the kernel: x / W1 quantized to bf16, f32 accumulation, f32 tail."""
    (w1, b1) = params[0]
    h = (x.astype(jnp.bfloat16).astype(jnp.float32)
         @ w1.astype(jnp.bfloat16).astype(jnp.float32)) + b1
    h = _leaky_relu(h)
    for i, (w, b) in enumerate(params[1:]):
        h = h @ w + b
        if i < 2:
            h = _leaky_relu(h)
    return h


if __name__ == "__main__":
    key = jax.random.PRNGKey(0)
    pkey, xkey = jax.random.split(key)

    params = init_params(pkey)
    prepared = prepare_params(params)           # one-time pad / bf16 / reshape

    batch = 2
    x = jax.random.normal(xkey, (batch, IN_FEATURES), jnp.float32)

    y = discriminator_forward(x, prepared)
    y = jax.block_until_ready(y)

    y_ref = _reference_forward_bf16_w1(x, params)
    y_ref_f32 = _reference_forward_f32(x, params)

    assert y.shape == (batch, 1), y.shape
    assert jnp.allclose(y, y_ref, atol=3e-3, rtol=3e-3), (y, y_ref)
    assert jnp.allclose(y, y_ref_f32, atol=5e-2, rtol=5e-2), (y, y_ref_f32)

    print("KERNEL_OK")
</pallas_src>

<mosaic_0001>
module attributes {stable_mosaic.version = 11 : i64} {
  func.func @_w1_partial_kernel(%arg0: i32, %arg1: i32, %arg2: memref<16x4736xbf16, #tpu.memory_space<vmem>>, %arg3: memref<4736x256xbf16, #tpu.memory_space<vmem>>, %arg4: memref<1x16x256xf32, #tpu.memory_space<vmem>>) attributes {dimension_semantics = [#tpu.dimension_semantics<parallel>, #tpu.dimension_semantics<arbitrary>], iteration_bounds = array<i64: 2, 2>, scalar_prefetch = 0 : i64, scratch_operands = 0 : i64, tpu.core_type = #tpu.core_type<tc>, window_params = [{transform_indices = @transform_0, window_bounds = array<i64: 16, 4736>}, {transform_indices = @transform_1, window_bounds = array<i64: 4736, 256>}, {transform_indices = @transform_2, window_bounds = array<i64: 1, 16, 256>}]} {
    %c0_i32 = arith.constant 0 : i32
    %0 = arith.cmpi eq, %arg1, %c0_i32 : i32
    %1 = arith.extui %0 : i1 to i32
    %c0_i32_0 = arith.constant 0 : i32
    %2 = arith.cmpi ne, %1, %c0_i32_0 : i32
    scf.if %2 {
      %cst_10 = arith.constant 0.000000e+00 : f32
      %10 = vector.broadcast %cst_10 : f32 to vector<1x16x256xf32>
      %c0_11 = arith.constant 0 : index
      %c0_12 = arith.constant 0 : index
      %c0_13 = arith.constant 0 : index
      %11 = vector.load %arg4[%c0_11, %c0_12, %c0_13] : memref<1x16x256xf32, #tpu.memory_space<vmem>>, vector<1x16x256xf32>
      tpu.vector_store %arg4[%c0_11, %c0_12, %c0_13], %10 {strides = array<i32>} : memref<1x16x256xf32, #tpu.memory_space<vmem>>, vector<1x16x256xf32>,
    } else {
    }
    %c0 = arith.constant 0 : index
    %c0_1 = arith.constant 0 : index
    %c0_2 = arith.constant 0 : index
    %3 = vector.load %arg4[%c0, %c0_1, %c0_2] : memref<1x16x256xf32, #tpu.memory_space<vmem>>, vector<1x16x256xf32>
    %c0_3 = arith.constant 0 : index
    %c0_4 = arith.constant 0 : index
    %4 = vector.load %arg2[%c0_3, %c0_4] : memref<16x4736xbf16, #tpu.memory_space<vmem>>, vector<16x4736xbf16>
    %c0_5 = arith.constant 0 : index
    %c0_6 = arith.constant 0 : index
    %5 = vector.load %arg3[%c0_5, %c0_6] : memref<4736x256xbf16, #tpu.memory_space<vmem>>, vector<4736x256xbf16>
    %cst = arith.constant dense<0.000000e+00> : vector<16x256xf32>
    %6 = tpu.matmul %4, %5, %cst {dimension_numbers = #tpu.dot_dimension_numbers<[1], [0], [0], [1], [0, 0, 1, 1], [], []>} : vector<16x4736xbf16>, vector<4736x256xbf16>, vector<16x256xf32> -> vector<16x256xf32>
    %7 = vector.shape_cast %6 : vector<16x256xf32> to vector<1x16x256xf32>
    %8 = arith.addf %3, %7 : vector<1x16x256xf32>
    %c0_7 = arith.constant 0 : index
    %c0_8 = arith.constant 0 : index
    %c0_9 = arith.constant 0 : index
    %9 = vector.load %arg4[%c0_7, %c0_8, %c0_9] : memref<1x16x256xf32, #tpu.memory_space<vmem>>, vector<1x16x256xf32>
    tpu.vector_store %arg4[%c0_7, %c0_8, %c0_9], %8 {strides = array<i32>} : memref<1x16x256xf32, #tpu.memory_space<vmem>>, vector<1x16x256xf32>,
    return
  }
  func.func @transform_0(%arg0: i32, %arg1: i32) -> (i32, i32) {
    %c2_i32 = arith.constant 2 : i32
    %0 = arith.muli %arg0, %c2_i32 : i32
    %1 = arith.addi %0, %arg1 : i32
    %c0_i32 = arith.constant 0 : i32
    %c0_i32_0 = arith.constant 0 : i32
    return %c0_i32, %1 : i32, i32
  }
  func.func @transform_1(%arg0: i32, %arg1: i32) -> (i32, i32) {
    %c2_i32 = arith.constant 2 : i32
    %0 = arith.muli %arg0, %c2_i32 : i32
    %1 = arith.addi %0, %arg1 : i32
    %c0_i32 = arith.constant 0 : i32
    %c0_i32_0 = arith.constant 0 : i32
    return %1, %c0_i32 : i32, i32
  }
  func.func @transform_2(%arg0: i32, %arg1: i32) -> (i32, i32, i32) {
    %c0_i32 = arith.constant 0 : i32
    %c0_i32_0 = arith.constant 0 : i32
    %c0_i32_1 = arith.constant 0 : i32
    return %arg0, %c0_i32, %c0_i32_0 : i32, i32, i32
  }
}

module attributes {stable_mosaic.version = 11 : i64} {
  func.func @_tail_kernel(%arg0: memref<2x16x256xf32, #tpu.memory_space<vmem>>, %arg1: memref<1x256xf32, #tpu.memory_space<vmem>>, %arg2: memref<256x128xf32, #tpu.memory_space<vmem>>, %arg3: memref<1x128xf32, #tpu.memory_space<vmem>>, %arg4: memref<128x64xf32, #tpu.memory_space<vmem>>, %arg5: memref<1x64xf32, #tpu.memory_space<vmem>>, %arg6: memref<64x1xf32, #tpu.memory_space<vmem>>, %arg7: memref<1x1xf32, #tpu.memory_space<vmem>>, %arg8: memref<16x1xf32, #tpu.memory_space<vmem>>) attributes {dimension_semantics = [], scalar_prefetch = 0 : i64, scratch_operands = 0 : i64, tpu.core_type = #tpu.core_type<tc>} {
    %c0 = arith.constant 0 : index
    %c0_0 = arith.constant 0 : index
    %c0_1 = arith.constant 0 : index
    %0 = vector.load %arg0[%c0, %c0_0, %c0_1] : memref<2x16x256xf32, #tpu.memory_space<vmem>>, vector<1x16x256xf32>
    %1 = vector.shape_cast %0 : vector<1x16x256xf32> to vector<16x256xf32>
    %c1 = arith.constant 1 : index
    %c0_2 = arith.constant 0 : index
    %c0_3 = arith.constant 0 : index
    %2 = vector.load %arg0[%c1, %c0_2, %c0_3] : memref<2x16x256xf32, #tpu.memory_space<vmem>>, vector<1x16x256xf32>
    %3 = vector.shape_cast %2 : vector<1x16x256xf32> to vector<16x256xf32>
    %4 = arith.addf %1, %3 : vector<16x256xf32>
    %c0_4 = arith.constant 0 : index
    %c0_5 = arith.constant 0 : index
    %5 = vector.load %arg1[%c0_4, %c0_5] : memref<1x256xf32, #tpu.memory_space<vmem>>, vector<1x256xf32>
    %6 = vector.broadcast %5 : vector<1x256xf32> to vector<16x256xf32>
    %7 = arith.addf %4, %6 : vector<16x256xf32>
    %cst = arith.constant 0.000000e+00 : f32
    %8 = vector.broadcast %cst : f32 to vector<16x256xf32>
    %9 = arith.cmpf oge, %7, %8 : vector<16x256xf32>
    %cst_6 = arith.constant 2.000000e-01 : f32
    %10 = vector.broadcast %cst_6 : f32 to vector<16x256xf32>
    %11 = arith.mulf %10, %7 : vector<16x256xf32>
    %12 = arith.select %9, %7, %11 : vector<16x256xi1>, vector<16x256xf32>
    %c0_7 = arith.constant 0 : index
    %c0_8 = arith.constant 0 : index
    %13 = vector.load %arg2[%c0_7, %c0_8] : memref<256x128xf32, #tpu.memory_space<vmem>>, vector<256x128xf32>
    %cst_9 = arith.constant dense<0.000000e+00> : vector<16x128xf32>
    %14 = tpu.matmul %12, %13, %cst_9 {dimension_numbers = #tpu.dot_dimension_numbers<[1], [0], [0], [1], [0, 0, 1, 1], [], []>} : vector<16x256xf32>, vector<256x128xf32>, vector<16x128xf32> -> vector<16x128xf32>
    %c0_10 = arith.constant 0 : index
    %c0_11 = arith.constant 0 : index
    %15 = vector.load %arg3[%c0_10, %c0_11] : memref<1x128xf32, #tpu.memory_space<vmem>>, vector<1x128xf32>
    %16 = vector.broadcast %15 : vector<1x128xf32> to vector<16x128xf32>
    %17 = arith.addf %14, %16 : vector<16x128xf32>
    %cst_12 = arith.constant 0.000000e+00 : f32
    %18 = vector.broadcast %cst_12 : f32 to vector<16x128xf32>
    %19 = arith.cmpf oge, %17, %18 : vector<16x128xf32>
    %cst_13 = arith.constant 2.000000e-01 : f32
    %20 = vector.broadcast %cst_13 : f32 to vector<16x128xf32>
    %21 = arith.mulf %20, %17 : vector<16x128xf32>
    %22 = arith.select %19, %17, %21 : vector<16x128xi1>, vector<16x128xf32>
    %c0_14 = arith.constant 0 : index
    %c0_15 = arith.constant 0 : index
    %23 = vector.load %arg4[%c0_14, %c0_15] : memref<128x64xf32, #tpu.memory_space<vmem>>, vector<128x64xf32>
    %cst_16 = arith.constant dense<0.000000e+00> : vector<16x64xf32>
    %24 = tpu.matmul %22, %23, %cst_16 {dimension_numbers = #tpu.dot_dimension_numbers<[1], [0], [0], [1], [0, 0, 1, 1], [], []>} : vector<16x128xf32>, vector<128x64xf32>, vector<16x64xf32> -> vector<16x64xf32>
    %c0_17 = arith.constant 0 : index
    %c0_18 = arith.constant 0 : index
    %25 = vector.load %arg5[%c0_17, %c0_18] : memref<1x64xf32, #tpu.memory_space<vmem>>, vector<1x64xf32>
    %26 = vector.broadcast %25 : vector<1x64xf32> to vector<16x64xf32>
    %27 = arith.addf %24, %26 : vector<16x64xf32>
    %cst_19 = arith.constant 0.000000e+00 : f32
    %28 = vector.broadcast %cst_19 : f32 to vector<16x64xf32>
    %29 = arith.cmpf oge, %27, %28 : vector<16x64xf32>
    %cst_20 = arith.constant 2.000000e-01 : f32
    %30 = vector.broadcast %cst_20 : f32 to vector<16x64xf32>
    %31 = arith.mulf %30, %27 : vector<16x64xf32>
    %32 = arith.select %29, %27, %31 : vector<16x64xi1>, vector<16x64xf32>
    %c0_21 = arith.constant 0 : index
    %c0_22 = arith.constant 0 : index
    %33 = vector.load %arg6[%c0_21, %c0_22] : memref<64x1xf32, #tpu.memory_space<vmem>>, vector<64x1xf32>
    %cst_23 = arith.constant dense<0.000000e+00> : vector<16x1xf32>
    %34 = tpu.matmul %32, %33, %cst_23 {dimension_numbers = #tpu.dot_dimension_numbers<[1], [0], [0], [1], [0, 0, 1, 1], [], []>} : vector<16x64xf32>, vector<64x1xf32>, vector<16x1xf32> -> vector<16x1xf32>
    %c0_24 = arith.constant 0 : index
    %c0_25 = arith.constant 0 : index
    %35 = vector.load %arg7[%c0_24, %c0_25] : memref<1x1xf32, #tpu.memory_space<vmem>>, vector<1x1xf32>
    %36 = vector.broadcast %35 : vector<1x1xf32> to vector<16x1xf32>
    %37 = arith.addf %34, %36 : vector<16x1xf32>
    %c0_26 = arith.constant 0 : index
    %c0_27 = arith.constant 0 : index
    %38 = vector.load %arg8[%c0_26, %c0_27] : memref<16x1xf32, #tpu.memory_space<vmem>>, vector<16x1xf32>
    tpu.vector_store %arg8[%c0_26, %c0_27], %37 {strides = array<i32>} : memref<16x1xf32, #tpu.memory_space<vmem>>, vector<16x1xf32>,
    return
  }
}

</mosaic_0001>

<llo_original>
// kernel: discriminator_forward.3
$region0: #{discriminator_forward.3}
  #allocation0 [shape = 'u32[]', space=smem, size = 0x4, offset = 0x4, fixed_abs, tag = 'smem constant byte address 0x4 - core index']
  #allocation1 [shape = 'u32[72,128]{1,0:T(1,128)}', space=vmem, size = 0x9000, scoped, tag = 'internal scratch']
  #allocation2 [shape = 'f32[1,1]{1,0:T(1,128)S(1)}', space=vmem, size = 0x200, scoped, tag = 'scoped memory for discriminator_forward.3']
  %s0 = inlined_call_operand.vmem [shape: f32[2,16,256], index: 0, kind: input, shape index: {}]
  %s1 = inlined_call_operand.vmem [shape: f32[1,256], index: 1, kind: input, shape index: {}]
  %s2 = inlined_call_operand.vmem [shape: f32[256,128], index: 2, kind: input, shape index: {}]
  %s3 = inlined_call_operand.vmem [shape: f32[1,128], index: 3, kind: input, shape index: {}]
  %s4 = inlined_call_operand.vmem [shape: f32[128,64], index: 4, kind: input, shape index: {}]
  %s5 = inlined_call_operand.vmem [shape: f32[1,64], index: 5, kind: input, shape index: {}]
  %s6 = inlined_call_operand.vmem [shape: f32[64,1], index: 6, kind: input, shape index: {}]
  %s7 = inlined_call_operand.<no memory space> [shape: f32[1,1], index: 7, kind: input, shape index: {}]
  %s8 = inlined_call_operand.vmem [shape: f32[16,1], index: 8, kind: output, shape index: {}]
  %s9 = sld [smem:[#allocation0]]
  $region42: #{discriminator_forward.3} parent=0
    _
  %s11 = ssub.s32 1, %s9
  %s12 = scalar_select 0, %s11, %s9
  %v13 = vstv %s7
  %14 = vst [vmem:[#allocation2] sm:$0x1] %v13
  // Predicated region
  $region2: #{discriminator_forward.3} parent=0 // pred_check
    _
  $region3: #{discriminator_forward.3} parent=0 // pred_check_branch
    %16 = sbr.rel (0) target = $region5
  $region4: #{discriminator_forward.3} parent=0 // pred_region
    _
  $region5: #{discriminator_forward.3} parent=0 // pred_fallthru
    _
  // Predicated region
  $region6: #{discriminator_forward.3} parent=0 // pred_check
    _
  $region7: #{discriminator_forward.3} parent=0 // pred_check_branch
    %18 = sbr.rel (0) target = $region9
  $region8: #{discriminator_forward.3} parent=0 // pred_region
    _
  $region9: #{discriminator_forward.3} parent=0 // pred_fallthru
    _
  // Predicated region
  $region10: #{discriminator_forward.3} parent=0 // pred_check
    _
  $region11: #{discriminator_forward.3} parent=0 // pred_check_branch
    %20 = sbr.rel (0) target = $region13
  $region12: #{discriminator_forward.3} parent=0 // pred_region
    _
  $region13: #{discriminator_forward.3} parent=0 // pred_fallthru
    _
  // Predicated region
  $region14: #{discriminator_forward.3} parent=0 // pred_check
    _
  $region15: #{discriminator_forward.3} parent=0 // pred_check_branch
    %22 = sbr.rel (0) target = $region17
  $region16: #{discriminator_forward.3} parent=0 // pred_region
    _
  $region17: #{discriminator_forward.3} parent=0 // pred_fallthru
    _
  // Predicated region
  $region18: #{discriminator_forward.3} parent=0 // pred_check
    _
  $region19: #{discriminator_forward.3} parent=0 // pred_check_branch
    %24 = sbr.rel (0) target = $region21
  $region20: #{discriminator_forward.3} parent=0 // pred_region
    _
  $region21: #{discriminator_forward.3} parent=0 // pred_fallthru
    _
  // Predicated region
  $region22: #{discriminator_forward.3} parent=0 // pred_check
    _
  $region23: #{discriminator_forward.3} parent=0 // pred_check_branch
    %26 = sbr.rel (0) target = $region25
  $region24: #{discriminator_forward.3} parent=0 // pred_region
    _
  $region25: #{discriminator_forward.3} parent=0 // pred_fallthru
    _
  // Predicated region
  $region26: #{discriminator_forward.3} parent=0 // pred_check
    _
  $region27: #{discriminator_forward.3} parent=0 // pred_check_branch
    %28 = sbr.rel (0) target = $region29
  $region28: #{discriminator_forward.3} parent=0 // pred_region
    _
  $region29: #{discriminator_forward.3} parent=0 // pred_fallthru
    _
  // Predicated region
  $region30: #{discriminator_forward.3} parent=0 // pred_check
    _
  $region31: #{discriminator_forward.3} parent=0 // pred_check_branch
    %30 = sbr.rel (0) target = $region33
  $region32: #{discriminator_forward.3} parent=0 // pred_region
    _
  $region33: #{discriminator_forward.3} parent=0 // pred_fallthru
    _
  %v31 = vld [vmem:[%s0] sm:$0xff]
  %v32 = vld [vmem:[%s0 + $0x8] sm:$0xff]
  %v33 = vld [vmem:[%s0 + $0x10] sm:$0xff]
  %v34 = vld [vmem:[%s0 + $0x18] sm:$0xff]
  %s35 = scalar_lea.vmem %s0, 32
  %v36 = vld [vmem:[%s35] sm:$0xff]
  %v37 = vld [vmem:[%s35 + $0x8] sm:$0xff]
  %v38 = vld [vmem:[%s35 + $0x10] sm:$0xff]
  %v39 = vld [vmem:[%s35 + $0x18] sm:$0xff]
  %v40 = vadd.f32 %v31, %v36
  %v41 = vadd.f32 %v32, %v37
  %v42 = vadd.f32 %v33, %v38
  %v43 = vadd.f32 %v34, %v39
  %v44 = vld [vmem:[%s1] sm:$0x3]
  %v46 = vperm.slane %v44, 0
  %v47 = vperm.slane %v44, 1
  %v50 = vadd.f32 %v40, %v46
  %v51 = vadd.f32 %v41, %v47
  %v52 = vadd.f32 %v42, %v46
  %v53 = vadd.f32 %v43, %v47
  %vm54 = vcmp.ge.f32.partialorder %v50, 0.0
  %vm55 = vcmp.ge.f32.partialorder %v51, 0.0
  %vm56 = vcmp.ge.f32.partialorder %v52, 0.0
  %vm57 = vcmp.ge.f32.partialorder %v53, 0.0
  %v58 = vmul.f32 %v50, 0.2
  %v59 = vmul.f32 %v51, 0.2
  %v60 = vmul.f32 %v52, 0.2
  %v61 = vmul.f32 %v53, 0.2
  %v62 = vsel %vm54, %v50, %v58
  %v63 = vsel %vm55, %v51, %v59
  %v64 = vsel %vm56, %v52, %v60
  %v65 = vsel %vm57, %v53, %v61
  %v66 = vld [vmem:[%s2] sm:$0xff]
  %v67 = vld [vmem:[%s2 + $0x8] sm:$0xff]
  %v68 = vld [vmem:[%s2 + $0x10] sm:$0xff]
  %v69 = vld [vmem:[%s2 + $0x18] sm:$0xff]
  %v70 = vld [vmem:[%s2 + $0x20] sm:$0xff]
  %v71 = vld [vmem:[%s2 + $0x28] sm:$0xff]
  %v72 = vld [vmem:[%s2 + $0x30] sm:$0xff]
  %v73 = vld [vmem:[%s2 + $0x38] sm:$0xff]
  %v74 = vld [vmem:[%s2 + $0x40] sm:$0xff]
  %v75 = vld [vmem:[%s2 + $0x48] sm:$0xff]
  %v76 = vld [vmem:[%s2 + $0x50] sm:$0xff]
  %v77 = vld [vmem:[%s2 + $0x58] sm:$0xff]
  %v78 = vld [vmem:[%s2 + $0x60] sm:$0xff]
  %v79 = vld [vmem:[%s2 + $0x68] sm:$0xff]
  %v80 = vld [vmem:[%s2 + $0x70] sm:$0xff]
  %v81 = vld [vmem:[%s2 + $0x78] sm:$0xff]
  %v82 = vld [vmem:[%s2 + $0x80] sm:$0xff]
  %v83 = vld [vmem:[%s2 + $0x88] sm:$0xff]
  %v84 = vld [vmem:[%s2 + $0x90] sm:$0xff]
  %v85 = vld [vmem:[%s2 + $0x98] sm:$0xff]
  %v86 = vld [vmem:[%s2 + $0xa0] sm:$0xff]
  %v87 = vld [vmem:[%s2 + $0xa8] sm:$0xff]
  %v88 = vld [vmem:[%s2 + $0xb0] sm:$0xff]
  %v89 = vld [vmem:[%s2 + $0xb8] sm:$0xff]
  %v90 = vld [vmem:[%s2 + $0xc0] sm:$0xff]
  %v91 = vld [vmem:[%s2 + $0xc8] sm:$0xff]
  %v92 = vld [vmem:[%s2 + $0xd0] sm:$0xff]
  %v93 = vld [vmem:[%s2 + $0xd8] sm:$0xff]
  %v94 = vld [vmem:[%s2 + $0xe0] sm:$0xff]
  %v95 = vld [vmem:[%s2 + $0xe8] sm:$0xff]
  %v96 = vld [vmem:[%s2 + $0xf0] sm:$0xff]
  %v97 = vld [vmem:[%s2 + $0xf8] sm:$0xff]
  %v98 = vld [vmem:[%s3] sm:$0x1]
  %v100 = vperm.slane %v98, 0
  %102 = vmatpush.msra.mxu0 %v81
  %103 = vmatpush.msra.mxu0 %v80
  %104 = vmatpush.msra.mxu0 %v79
  %105 = vmatpush.msra.mxu0 %v78
  %106 = vmatpush.msra.mxu0 %v77
  %107 = vmatpush.msra.mxu0 %v76
  %108 = vmatpush.msra.mxu0 %v75
  %109 = vmatpush.msra.mxu0 %v74
  %110 = vmatpush.msra.mxu0 %v73
  %111 = vmatpush.msra.mxu0 %v72
  %112 = vmatpush.msra.mxu0 %v71
  %113 = vmatpush.msra.mxu0 %v70
  %114 = vmatpush.msra.mxu0 %v69
  %115 = vmatpush.msra.mxu0 %v68
  %116 = vmatpush.msra.mxu0 %v67
  %117 = vmatpush.msra.mxu0 %v66
  %118 = vmatmul.f32.gmra.mxu0 %v62
  %v119 = vpop.f32.mrf.mxu0
  %v120 = vadd.f32 %v100, %v119
  %121 = vmatmul.f32.gmra.mxu0 %v64
  %v122 = vpop.f32.mrf.mxu0
  %v123 = vadd.f32 %v100, %v122
  %124 = vdwg.mxu0
  %125 = vmatpush.msra.mxu0 %v97
  %126 = vmatpush.msra.mxu0 %v96
  %127 = vmatpush.msra.mxu0 %v95
  %128 = vmatpush.msra.mxu0 %v94
  %129 = vmatpush.msra.mxu0 %v93
  %130 = vmatpush.msra.mxu0 %v92
  %131 = vmatpush.msra.mxu0 %v91
  %132 = vmatpush.msra.mxu0 %v90
  %133 = vmatpush.msra.mxu0 %v89
  %134 = vmatpush.msra.mxu0 %v88
  %135 = vmatpush.msra.mxu0 %v87
  %136 = vmatpush.msra.mxu0 %v86
  %137 = vmatpush.msra.mxu0 %v85
  %138 = vmatpush.msra.mxu0 %v84
  %139 = vmatpush.msra.mxu0 %v83
  %140 = vmatpush.msra.mxu0 %v82
  %141 = vmatmul.f32.gmra.mxu0 %v63
  %v142 = vpop.f32.mrf.mxu0
  %v143 = vadd.f32 %v120, %v142
  %144 = vmatmul.f32.gmra.mxu0 %v65
  %v145 = vpop.f32.mrf.mxu0
  %v146 = vadd.f32 %v123, %v145
  %147 = vdwg.mxu0
  %vm148 = vcmp.ge.f32.partialorder %v143, 0.0
  %vm149 = vcmp.ge.f32.partialorder %v146, 0.0
  %v150 = vmul.f32 %v143, 0.2
  %v151 = vmul.f32 %v146, 0.2
  %v152 = vsel %vm148, %v143, %v150
  %v153 = vsel %vm149, %v146, %v151
  %v154 = vld [vmem:[%s4] sm:$0xff]
  %v155 = vld [vmem:[%s4 + $0x8] sm:$0xff]
  %v156 = vld [vmem:[%s4 + $0x10] sm:$0xff]
  %v157 = vld [vmem:[%s4 + $0x18] sm:$0xff]
  %v158 = vld [vmem:[%s4 + $0x20] sm:$0xff]
  %v159 = vld [vmem:[%s4 + $0x28] sm:$0xff]
  %v160 = vld [vmem:[%s4 + $0x30] sm:$0xff]
  %v161 = vld [vmem:[%s4 + $0x38] sm:$0xff]
  %v162 = vld [vmem:[%s4 + $0x40] sm:$0xff]
  %v163 = vld [vmem:[%s4 + $0x48] sm:$0xff]
  %v164 = vld [vmem:[%s4 + $0x50] sm:$0xff]
  %v165 = vld [vmem:[%s4 + $0x58] sm:$0xff]
  %v166 = vld [vmem:[%s4 + $0x60] sm:$0xff]
  %v167 = vld [vmem:[%s4 + $0x68] sm:$0xff]
  %v168 = vld [vmem:[%s4 + $0x70] sm:$0xff]
  %v169 = vld [vmem:[%s4 + $0x78] sm:$0xff]
  %v170 = vld [vmem:[%s5] sm:$0x1]
  %v172 = vperm.slane %v170, 0
  %174 = vmatpush.msra.mxu0 %v169
  %175 = vmatpush.msra.mxu0 %v168
  %176 = vmatpush.msra.mxu0 %v167
  %177 = vmatpush.msra.mxu0 %v166
  %178 = vmatpush.msra.mxu0 %v165
  %179 = vmatpush.msra.mxu0 %v164
  %180 = vmatpush.msra.mxu0 %v163
  %181 = vmatpush.msra.mxu0 %v162
  %182 = vmatpush.msra.mxu0 %v161
  %183 = vmatpush.msra.mxu0 %v160
  %184 = vmatpush.msra.mxu0 %v159
  %185 = vmatpush.msra.mxu0 %v158
  %186 = vmatpush.msra.mxu0 %v157
  %187 = vmatpush.msra.mxu0 %v156
  %188 = vmatpush.msra.mxu0 %v155
  %189 = vmatpush.msra.mxu0 %v154
  %190 = vmatmul.f32.gmra.mxu0 %v152
  %v191 = vpop.f32.mrf.mxu0
  %v192 = vadd.f32 %v172, %v191
  %193 = vmatmul.f32.gmra.mxu0 %v153
  %v194 = vpop.f32.mrf.mxu0
  %v195 = vadd.f32 %v172, %v194
  %196 = vdwg.mxu0
  %vm197 = vcmp.ge.f32.partialorder %v192, 0.0
  %vm198 = vcmp.ge.f32.partialorder %v195, 0.0
  %v199 = vmul.f32 %v192, 0.2
  %v200 = vmul.f32 %v195, 0.2
  %v201 = vsel %vm197, %v192, %v199
  %v202 = vsel %vm198, %v195, %v200
  %v203 = vld [vmem:[%s6] sm:$0xff]
  %v204 = vld [vmem:[%s6 + $0x8] sm:$0xff]
  %v205 = vld [vmem:[%s6 + $0x10] sm:$0xff]
  %v206 = vld [vmem:[%s6 + $0x18] sm:$0xff]
  %v207 = vld [vmem:[%s6 + $0x20] sm:$0xff]
  %v208 = vld [vmem:[%s6 + $0x28] sm:$0xff]
  %v209 = vld [vmem:[%s6 + $0x30] sm:$0xff]
  %v210 = vld [vmem:[%s6 + $0x38] sm:$0xff]
  %v211 = vld [vmem:[#allocation2] sm:$0x1]
  %v213 = vperm.slane %v211, 0
  %vm215 = vcmask 523264
  %v217 = vsel %vm215, %v201, 0
  %v220 = vsel %vm215, %v202, 0
  %222 = vmatpush.msra.mxu0 0.0
  %223 = vmatpush.msra.mxu0 0.0
  %224 = vmatpush.msra.mxu0 0.0
  %225 = vmatpush.msra.mxu0 0.0
  %226 = vmatpush.msra.mxu0 0.0
  %227 = vmatpush.msra.mxu0 0.0
  %228 = vmatpush.msra.mxu0 0.0
  %229 = vmatpush.msra.mxu0 0.0
  %230 = vmatpush.msra.mxu0 %v210
  %231 = vmatpush.msra.mxu0 %v209
  %232 = vmatpush.msra.mxu0 %v208
  %233 = vmatpush.msra.mxu0 %v207
  %234 = vmatpush.msra.mxu0 %v206
  %235 = vmatpush.msra.mxu0 %v205
  %236 = vmatpush.msra.mxu0 %v204
  %237 = vmatpush.msra.mxu0 %v203
  %238 = vmatmul.f32.gmra.mxu0 %v217
  %v239 = vpop.f32.mrf.mxu0
  %v240 = vadd.f32 %v213, %v239
  %241 = vmatmul.f32.gmra.mxu0 %v220
  %v242 = vpop.f32.mrf.mxu0
  %v243 = vadd.f32 %v213, %v242
  %244 = vdwg.mxu0
  %vm245 = vcmask 7168
  %246 = vst.msk [vmem:[%s8] sm:$0xff] %vm245, %v240
  %247 = vst.msk [vmem:[%s8 + $0x8] sm:$0xff] %vm245, %v243
  // Predicated region
  $region34: #{discriminator_forward.3} parent=0 // pred_check
    _
  $region35: #{discriminator_forward.3} parent=0 // pred_check_branch
    %249 = sbr.rel (0) target = $region37
  $region36: #{discriminator_forward.3} parent=0 // pred_region
    _
  $region37: #{discriminator_forward.3} parent=0 // pred_fallthru
    _
  // Predicated region
  $region38: #{discriminator_forward.3} parent=0 // pred_check
    _
  $region39: #{discriminator_forward.3} parent=0 // pred_check_branch
    %251 = sbr.rel (0) target = $region41
  $region40: #{discriminator_forward.3} parent=0 // pred_region
    _
  $region41: #{discriminator_forward.3} parent=0 // pred_fallthru
    _

// kernel: discriminator_forward.2
$region0: #{discriminator_forward.2}
  #allocation0 [shape = 'u32[]', space=smem, size = 0x4, offset = 0x4, fixed_abs, tag = 'smem constant byte address 0x4 - core index']
  #allocation1 [shape = 'u32[72,128]{1,0:T(1,128)}', space=vmem, size = 0x9000, scoped, tag = 'internal scratch']
  %s0 = inlined_call_operand.vmem [shape: bf16[16,18944], index: 0, kind: input, shape index: {}]
  %s1 = inlined_call_operand.hbm [shape: bf16[18944,256], index: 1, kind: input, shape index: {}]
  %s2 = inlined_call_operand.vmem [shape: f32[2,16,256], index: 2, kind: output, shape index: {}]
  %s3 = sld [smem:[#allocation0]]
  $region75: #{discriminator_forward.2} parent=0
    _
  %s5 = ssub.s32 1, %s3
  %s6 = scalar_select 0, %s5, %s3
  $region1: #{discriminator_forward.2} parent=0
    #allocation2 [shape = 'u8[303104]{0}', space=vmem, size = 0x4a000, scoped, tag = 'input window, operand 0']
    #allocation3 [shape = 'u8[4849664]{0}', space=vmem, size = 0x4a0000, scoped, tag = 'input window, operand 1']
    #allocation4 [shape = 's32[2]{0}', space=sflag, size = 0x8, scoped, tag = 'scoped memory for discriminator_forward.2']
    %7 = vsyncpa [#allocation4], 0
    %s8 = scalar_lea.sflag [#allocation4], 1
    %9 = vsyncpa %s8, 0
    loop: start=0, step=1, limit=6
    $region2: #{discriminator_forward.2} parent=1 // loop_pre_header
      _
    $region3: #{discriminator_forward.2} parent=1 // loop_header
      %s11 = sphi 0, %s15
      %p12 = scmp.ge.s32.totalorder %s11, 6
      %s18 = sphi 0, %s30
      %s19 = sphi 0, %s26
      %s20 = sphi 0, %s18
      %s21 = sphi 0, %s19
      %s22 = sphi 0, %s20
      %s23 = sphi 0, %s21
      %s37 = sphi 0, %s39
      %s40 = sphi 0, %s37
      %s41 = sphi 0, %s40
      %s57 = sphi 0, %s41
      %s67 = sphi 0, %s69
      %s70 = sphi 0, %s67
      %s71 = sphi 0, %s70
      %s87 = sphi 0, %s71
      %s93 = sphi 0, %s95
      %s96 = sphi 0, %s93
      %s97 = sphi 0, %s96
      %s113 = sphi 0, %s97
    $region4: #{discriminator_forward.2} parent=1 // loop_header_branch
      %14 = sbr.rel (%p12) target = $region8
    $region5: #{discriminator_forward.2} parent=1 // loop_body
      %s16 = ssub.s32 %s11, 1
      %s17 = ssub.s32 %s11, 2
      %s24 = sadd.s32 1, %s19
      %p25 = scmp.ge.s32.totalorder %s24, 2
      %s26 = scalar_select %p25, 0, %s24
      %s27 = sadd.s32 1, %s18
      %s28 = scalar_select %p25, %s27, %s18
      %p29 = scmp.ge.s32.totalorder %s28, 2
      %s30 = scalar_select %p29, 0, %s28
      %s31 = smul.u32 %s18, 2
      %s32 = sadd.s32 %s31, %s19
      %s33 = smul.u32 %s30, 2
      %s34 = sadd.s32 %s33, %s26
      %s35 = ssub.s32 %s32, %s34
      %p36 = scmp.eq.s32.totalorder %s35, 0
      %s38 = sadd.s32 %s37, 1
      %s39 = scalar_select %p36, %s37, %s38
      %p42 = pneg %p36
      %p43 = scmp.eq.s32.totalorder %s11, 3
      %p44 = por %p42, %p43
      %p45 = scmp.ne.s32.totalorder %s37, %s40
      %p46 = scmp.eq.s32.totalorder %s11, 0
      %p47 = por %p45, %p46
      %p48 = scmp.ne.s32.totalorder %s37, %s40
      %p49 = scmp.eq.s32.totalorder %s16, 3
      %p50 = por %p48, %p49
      %p51 = scmp.ne.s32.totalorder %s40, %s41
      %p52 = scmp.eq.s32.totalorder %s16, 0
      %p53 = por %p51, %p52
      %p54 = scmp.ne.s32.totalorder %s40, %s41
      %p55 = scmp.eq.s32.totalorder %s17, 3
      %p56 = por %p54, %p55
      %p58 = scmp.ne.s32.totalorder %s41, %s57
      %p59 = scmp.eq.s32.totalorder %s17, 0
      %p60 = por %p58, %p59
      %s61 = smul.u32 %s18, 2
      %s62 = sadd.s32 %s61, %s19
      %s63 = smul.u32 %s30, 2
      %s64 = sadd.s32 %s63, %s26
      %s65 = ssub.s32 %s62, %s64
      %p66 = scmp.eq.s32.totalorder %s65, 0
      %s68 = sadd.s32 %s67, 1
      %s69 = scalar_select %p66, %s67, %s68
      %p72 = pneg %p66
      %p73 = scmp.eq.s32.totalorder %s11, 3
      %p74 = por %p72, %p73
      %p75 = scmp.ne.s32.totalorder %s67, %s70
      %p76 = scmp.eq.s32.totalorder %s11, 0
      %p77 = por %p75, %p76
      %p78 = scmp.ne.s32.totalorder %s67, %s70
      %p79 = scmp.eq.s32.totalorder %s16, 3
      %p80 = por %p78, %p79
      %p81 = scmp.ne.s32.totalorder %s70, %s71
      %p82 = scmp.eq.s32.totalorder %s16, 0
      %p83 = por %p81, %p82
      %p84 = scmp.ne.s32.totalorder %s70, %s71
      %p85 = scmp.eq.s32.totalorder %s17, 3
      %p86 = por %p84, %p85
      %p88 = scmp.ne.s32.totalorder %s71, %s87
      %p89 = scmp.eq.s32.totalorder %s17, 0
      %p90 = por %p88, %p89
      %s91 = ssub.s32 %s18, %s30
      %p92 = scmp.eq.s32.totalorder %s91, 0
      %s94 = sadd.s32 %s93, 1
      %s95 = scalar_select %p92, %s93, %s94
      %p98 = pneg %p92
      %p99 = scmp.eq.s32.totalorder %s11, 3
      %p100 = por %p98, %p99
      %p101 = scmp.ne.s32.totalorder %s93, %s96
      %p102 = scmp.eq.s32.totalorder %s11, 0
      %p103 = por %p101, %p102
      %p104 = scmp.ne.s32.totalorder %s93, %s96
      %p105 = scmp.eq.s32.totalorder %s16, 3
      %p106 = por %p104, %p105
      %p107 = scmp.ne.s32.totalorder %s96, %s97
      %p108 = scmp.eq.s32.totalorder %s16, 0
      %p109 = por %p107, %p108
      %p110 = scmp.ne.s32.totalorder %s96, %s97
      %p111 = scmp.eq.s32.totalorder %s17, 3
      %p112 = por %p110, %p111
      %p114 = scmp.ne.s32.totalorder %s97, %s113
      %p115 = scmp.eq.s32.totalorder %s17, 0
      %p116 = por %p114, %p115
      %p117 = scmp.le.s32.totalorder 1, %s11
      %p118 = scmp.lt.s32.totalorder %s11, 5
      %p119 = pnand %p117, %p118
      %p120 = pneg %p119
      // Predicated region
      $region9: #{discriminator_forward.2} parent=5 // pred_check
        _
      $region10: #{discriminator_forward.2} parent=5 // pred_check_branch
        %122 = sbr.rel (%p119) target = $region12
      $region11: #{discriminator_forward.2} parent=5 // pred_region
        %s123 = ssub.s32 %s11, 1
      $region12: #{discriminator_forward.2} parent=5 // pred_fallthru
        _
      %p124 = scmp.lt.s32.totalorder %s11, 4
      // Predicated region
      $region13: #{discriminator_forward.2} parent=5 // pred_check
        %p125 = pneg %p124
      $region14: #{discriminator_forward.2} parent=5 // pred_check_branch
        %127 = sbr.rel (%p125) target = $region16
      $region15: #{discriminator_forward.2} parent=5 // pred_region
        // Predicated region
        $region17: #{discriminator_forward.2} parent=15 // pred_check
          %p128 = pneg %p47
        $region18: #{discriminator_forward.2} parent=15 // pred_check_branch
          %130 = sbr.rel (%p128) target = $region20
        $region19: #{discriminator_forward.2} parent=15 // pred_region
          %s131 = sand.u32 %s37, 1
          %s132 = sand.u32 %s37, 1
          %s133 = smul.addr %s132, 296
          %s134 = scalar_lea.vmem [#allocation2], %s133
          %s135 = smul.u32 %s18, 2
          %s136 = sadd.s32 %s135, %s19
          %s137 = smul.u32 37, %s136
          %s138 = smul.addr %s137, 4
          %s139 = scalar_lea.vmem %s0, %s138
          // Predicated region
          $region21: #{discriminator_forward.2} parent=19 // pred_check
            _
          $region22: #{discriminator_forward.2} parent=19 // pred_check_branch
            %141 = sbr.rel (0) target = $region24
          $region23: #{discriminator_forward.2} parent=19 // pred_region
            // Predicated region
            $region25: #{discriminator_forward.2} parent=23 // pred_check
              _
            $region26: #{discriminator_forward.2} parent=23 // pred_check_branch
              %143 = sbr.rel (0) target = $region28
            $region27: #{discriminator_forward.2} parent=23 // pred_region
              %s144 = scalar_lea.vmem %s139, 144
              %s145 = scalar_lea.vmem %s134, 144 [#allocation2]
              loop: start=0, step=1, limit=1
              $region29: #{discriminator_forward.2} parent=27 // loop_pre_header
                _
              $region30: #{discriminator_forward.2} parent=27 // loop_header
                %s147 = sphi 0, %s151
                %p148 = scmp.ge.s32.totalorder %s147, 1
                %s152 = sphi %s139, %s139
                %s153 = sphi %s134, %s134
              $region31: #{discriminator_forward.2} parent=27 // loop_header_branch
                %150 = sbr.rel (%p148) target = $region35
              $region32: #{discriminator_forward.2} parent=27 // loop_body
                %v154 = vld [vmem:[%s152] sm:$0xff]
                %155 = vst [vmem:[%s153] sm:$0xff] %v154
                %v156 = vld [vmem:[%s152 + $0x8] sm:$0xff]
                %157 = vst [vmem:[%s153 + $0x8] sm:$0xff] %v156
                %v158 = vld [vmem:[%s152 + $0x10] sm:$0xff]
                %159 = vst [vmem:[%s153 + $0x10] sm:$0xff] %v158
                %v160 = vld [vmem:[%s152 + $0x18] sm:$0xff]
                %161 = vst [vmem:[%s153 + $0x18] sm:$0xff] %v160
                %v162 = vld [vmem:[%s152 + $0x20] sm:$0xff]
                %163 = vst [vmem:[%s153 + $0x20] sm:$0xff] %v162
                %v164 = vld [vmem:[%s152 + $0x28] sm:$0xff]
                %165 = vst [vmem:[%s153 + $0x28] sm:$0xff] %v164
                %v166 = vld [vmem:[%s152 + $0x30] sm:$0xff]
                %167 = vst [vmem:[%s153 + $0x30] sm:$0xff] %v166
                %v168 = vld [vmem:[%s152 + $0x38] sm:$0xff]
                %169 = vst [vmem:[%s153 + $0x38] sm:$0xff] %v168
                %v170 = vld [vmem:[%s152 + $0x40] sm:$0xff]
                %171 = vst [vmem:[%s153 + $0x40] sm:$0xff] %v170
                %v172 = vld [vmem:[%s152 + $0x48] sm:$0xff]
                %173 = vst [vmem:[%s153 + $0x48] sm:$0xff] %v172
                %v174 = vld [vmem:[%s152 + $0x50] sm:$0xff]
                %175 = vst [vmem:[%s153 + $0x50] sm:$0xff] %v174
                %v176 = vld [vmem:[%s152 + $0x58] sm:$0xff]
                %177 = vst [vmem:[%s153 + $0x58] sm:$0xff] %v176
                %v178 = vld [vmem:[%s152 + $0x60] sm:$0xff]
                %179 = vst [vmem:[%s153 + $0x60] sm:$0xff] %v178
                %v180 = vld [vmem:[%s152 + $0x68] sm:$0xff]
                %181 = vst [vmem:[%s153 + $0x68] sm:$0xff] %v180
                %v182 = vld [vmem:[%s152 + $0x70] sm:$0xff]
                %183 = vst [vmem:[%s153 + $0x70] sm:$0xff] %v182
                %v184 = vld [vmem:[%s152 + $0x78] sm:$0xff]
                %185 = vst [vmem:[%s153 + $0x78] sm:$0xff] %v184
                %v186 = vld [vmem:[%s152 + $0x80] sm:$0xff]
                %187 = vst [vmem:[%s153 + $0x80] sm:$0xff] %v186
                %v188 = vld [vmem:[%s152 + $0x88] sm:$0xff]
                %189 = vst [vmem:[%s153 + $0x88] sm:$0xff] %v188
                %v190 = vld [vmem:[%s152 + $0x250] sm:$0xff]
                %191 = vst [vmem:[%s153 + $0x94] sm:$0xff] %v190
                %v192 = vld [vmem:[%s152 + $0x258] sm:$0xff]
                %193 = vst [vmem:[%s153 + $0x9c] sm:$0xff] %v192
                %v194 = vld [vmem:[%s152 + $0x260] sm:$0xff]
                %195 = vst [vmem:[%s153 + $0xa4] sm:$0xff] %v194
                %v196 = vld [vmem:[%s152 + $0x268] sm:$0xff]
                %197 = vst [vmem:[%s153 + $0xac] sm:$0xff] %v196
                %v198 = vld [vmem:[%s152 + $0x270] sm:$0xff]
                %199 = vst [vmem:[%s153 + $0xb4] sm:$0xff] %v198
                %v200 = vld [vmem:[%s152 + $0x278] sm:$0xff]
                %201 = vst [vmem:[%s153 + $0xbc] sm:$0xff] %v200
                %v202 = vld [vmem:[%s152 + $0x280] sm:$0xff]
                %203 = vst [vmem:[%s153 + $0xc4] sm:$0xff] %v202
                %v204 = vld [vmem:[%s152 + $0x288] sm:$0xff]
                %205 = vst [vmem:[%s153 + $0xcc] sm:$0xff] %v204
                %v206 = vld [vmem:[%s152 + $0x290] sm:$0xff]
                %207 = vst [vmem:[%s153 + $0xd4] sm:$0xff] %v206
                %v208 = vld [vmem:[%s152 + $0x298] sm:$0xff]
                %209 = vst [vmem:[%s153 + $0xdc] sm:$0xff] %v208
                %v210 = vld [vmem:[%s152 + $0x2a0] sm:$0xff]
                %211 = vst [vmem:[%s153 + $0xe4] sm:$0xff] %v210
                %v212 = vld [vmem:[%s152 + $0x2a8] sm:$0xff]
                %213 = vst [vmem:[%s153 + $0xec] sm:$0xff] %v212
                %v214 = vld [vmem:[%s152 + $0x2b0] sm:$0xff]
                %215 = vst [vmem:[%s153 + $0xf4] sm:$0xff] %v214
                %v216 = vld [vmem:[%s152 + $0x2b8] sm:$0xff]
                %217 = vst [vmem:[%s153 + $0xfc] sm:$0xff] %v216
                %v218 = vld [vmem:[%s152 + $0x2c0] sm:$0xff]
                %219 = vst [vmem:[%s153 + $0x104] sm:$0xff] %v218
                %v220 = vld [vmem:[%s152 + $0x2c8] sm:$0xff]
                %221 = vst [vmem:[%s153 + $0x10c] sm:$0xff] %v220
                %v222 = vld [vmem:[%s152 + $0x2d0] sm:$0xff]
                %223 = vst [vmem:[%s153 + $0x114] sm:$0xff] %v222
                %v224 = vld [vmem:[%s152 + $0x2d8] sm:$0xff]
                %225 = vst [vmem:[%s153 + $0x11c] sm:$0xff] %v224
              $region33: #{discriminator_forward.2} parent=27 // loop_footer
                %s151 = sadd.s32 1, %s147
              $region34: #{discriminator_forward.2} parent=27 // loop_footer_branch
                %146 = sbr.rel target = $region30
              $region35: #{discriminator_forward.2} parent=27 // loop_exit
                _
              %s227 = ssub.s32 16, 1
              loop: start=0, step=1, limit=1
              $region36: #{discriminator_forward.2} parent=27 // loop_pre_header
                _
              $region37: #{discriminator_forward.2} parent=27 // loop_header
                %s229 = sphi 0, %s233
                %p230 = scmp.ge.s32.totalorder %s229, 1
                %s234 = sphi %s144, %s144
                %s235 = sphi %s145, %s145
              $region38: #{discriminator_forward.2} parent=27 // loop_header_branch
                %232 = sbr.rel (%p230) target = $region42
              $region39: #{discriminator_forward.2} parent=27 // loop_body
                %v236 = vld [vmem:[%s234] sm:%s227]
                %237 = vst [vmem:[%s235] sm:%s227] %v236
                %v238 = vld [vmem:[%s234 + $0x250] sm:%s227]
                %239 = vst [vmem:[%s235 + $0x94] sm:%s227] %v238
              $region40: #{discriminator_forward.2} parent=27 // loop_footer
                %s233 = sadd.s32 1, %s229
              $region41: #{discriminator_forward.2} parent=27 // loop_footer_branch
                %228 = sbr.rel target = $region37
              $region42: #{discriminator_forward.2} parent=27 // loop_exit
                _
            $region28: #{discriminator_forward.2} parent=23 // pred_fallthru
              _
          $region24: #{discriminator_forward.2} parent=19 // pred_fallthru
            _
          %240 = vnop
        $region20: #{discriminator_forward.2} parent=15 // pred_fallthru
          _
        // Predicated region
        $region43: #{discriminator_forward.2} parent=15 // pred_check
          %p241 = pneg %p77
        $region44: #{discriminator_forward.2} parent=15 // pred_check_branch
          %243 = sbr.rel (%p241) target = $region46
        $region45: #{discriminator_forward.2} parent=15 // pred_region
          %s244 = sand.u32 %s67, 1
          %s245 = scalar_lea.sflag [#allocation4], %s244
          %s246 = sand.u32 %s67, 1
          %s247 = smul.addr %s246, 4736
          %s248 = scalar_lea.vmem [#allocation3], %s247
          %s249 = smul.u32 %s18, 2
          %s250 = sadd.s32 %s249, %s19
          %s251 = smul.u32 592, %s250
          %253 = vsyncadd %s245, 0
          %s254 = smul.addr %s251, 2
          %s255 = smul.addr %s254, 4
          %s256 = scalar_lea.hbm %s1, %s255
          %s257 = sshll.u32 %s256, 4
          %s258 = int_to_ptr.hbm [resolvable:$true] %s257
          %s259 = sshll.u32 %s248, 4
          %s260 = int_to_ptr.vmem [resolvable:$true] %s259
          %265 = dma.hbm_to_vmem [thread:$0]  %s258, 75776, %s260, %s245, 128, 128, 8
        $region46: #{discriminator_forward.2} parent=15 // pred_fallthru
          _
      $region16: #{discriminator_forward.2} parent=5 // pred_fallthru
        _
      %p266 = scmp.le.s32.totalorder 1, %s11
      %p267 = scmp.lt.s32.totalorder %s11, 5
      %p268 = pnand %p266, %p267
      %p269 = pneg %p268
      // Predicated region
      $region47: #{discriminator_forward.2} parent=5 // pred_check
        _
      $region48: #{discriminator_forward.2} parent=5 // pred_check_branch
        %271 = sbr.rel (%p268) target = $region50
      $region49: #{discriminator_forward.2} parent=5 // pred_region
        %s272 = ssub.s32 %s11, 1
        %s273 = sand.u32 %s40, 1
        %s274 = sand.u32 %s40, 1
        %s275 = smul.addr %s274, 296
        %s276 = scalar_lea.vmem [#allocation2], %s275
        // Predicated region
        $region51: #{discriminator_forward.2} parent=49 // pred_check
          %p277 = pneg %p53
        $region52: #{discriminator_forward.2} parent=49 // pred_check_branch
          %279 = sbr.rel (%p277) target = $region54
        $region53: #{discriminator_forward.2} parent=49 // pred_region
          _
        $region54: #{discriminator_forward.2} parent=49 // pred_fallthru
          _
        %s280 = sand.u32 %s70, 1
        %s281 = scalar_lea.sflag [#allocation4], %s280
        %s282 = sand.u32 %s70, 1
        %s283 = smul.addr %s282, 4736
        %s284 = scalar_lea.vmem [#allocation3], %s283
        // Predicated region
        $region55: #{discriminator_forward.2} parent=49 // pred_check
          %p285 = pneg %p83
        $region56: #{discriminator_forward.2} parent=49 // pred_check_branch
          %287 = sbr.rel (%p285) target = $region58
        $region57: #{discriminator_forward.2} parent=49 // pred_region
          %289 = dma.done %s281, 75776
        $region58: #{discriminator_forward.2} parent=49 // pred_fallthru
          _
        %s290 = sand.u32 %s40, 1
        %s291 = sand.u32 %s40, 1
        %s292 = smul.addr %s291, 296
        %s293 = scalar_lea.vmem [#allocation2], %s292
        %p294 = pneg %p53
        %p295 = pneg %p50
        %s296 = sand.u32 %s70, 1
        %s297 = scalar_lea.sflag [#allocation4], %s296
        %s298 = sand.u32 %s70, 1
        %s299 = smul.addr %s298, 4736
        %s300 = scalar_lea.vmem [#allocation3], %s299
        %p301 = pneg %p83
        %p302 = pneg %p80
        %p303 = pneg %p109
        %p304 = pneg %p106
        %p305 = scmp.lt.s32.totalorder %s20, 1
        %s306 = scalar_select %p305, %s20, 1
        %s307 = smul.addr %s306, 4
        %s308 = smul.addr %s307, 8
        %s309 = scalar_lea.vmem %s2, %s308
        %s310 = smul.u32 %s20, 2
        %s311 = sadd.s32 %s310, %s21
        %s312 = smul.u32 37, %s311
        %s313 = smul.u32 %s20, 2
        %s314 = sadd.s32 %s313, %s21
        %s315 = smul.u32 592, %s314
        %p316 = scmp.lt.s32.totalorder %s20, 1
        %s317 = scalar_select %p316, %s20, 1
        %s318 = smul.addr %s317, 4
        %s319 = smul.addr %s318, 8
        %s320 = scalar_lea.vmem %s2, %s319
        %p321 = scmp.eq.s32.totalorder %s21, 0
        // Predicated region
        $region59: #{discriminator_forward.2} parent=49 // pred_check
          %p322 = pneg %p321
        $region60: #{discriminator_forward.2} parent=49 // pred_check_branch
          %324 = sbr.rel (%p322) target = $region62
        $region61: #{discriminator_forward.2} parent=49 // pred_region
          %325 = vst [vmem:[%s320] sm:$0xff] 0.0
          %326 = vst [vmem:[%s320 + $0x8] sm:$0xff] 0.0
          %327 = vst [vmem:[%s320 + $0x10] sm:$0xff] 0.0
          %328 = vst [vmem:[%s320 + $0x18] sm:$0xff] 0.0
        $region62: #{discriminator_forward.2} parent=49 // pred_fallthru
          _
        %v329 = vld [vmem:[%s320] sm:$0xff]
        %v330 = vld [vmem:[%s320 + $0x8] sm:$0xff]
        %v331 = vld [vmem:[%s320 + $0x10] sm:$0xff]
        %v332 = vld [vmem:[%s320 + $0x18] sm:$0xff]
        %v333 = vld [vmem:[%s276] sm:$0xff]
        %v334 = vld [vmem:[%s276 + $0x8] sm:$0xff]
        %v335 = vld [vmem:[%s276 + $0x10] sm:$0xff]
        %v336 = vld [vmem:[%s276 + $0x18] sm:$0xff]
        %v337 = vld [vmem:[%s276 + $0x20] sm:$0xff]
        %v338 = vld [vmem:[%s276 + $0x28] sm:$0xff]
        %v339 = vld [vmem:[%s276 + $0x30] sm:$0xff]
        %v340 = vld [vmem:[%s276 + $0x38] sm:$0xff]
        %v341 = vld [vmem:[%s276 + $0x40] sm:$0xff]
        %v342 = vld [vmem:[%s276 + $0x48] sm:$0xff]
        %v343 = vld [vmem:[%s276 + $0x50] sm:$0xff]
        %v344 = vld [vmem:[%s276 + $0x58] sm:$0xff]
        %v345 = vld [vmem:[%s276 + $0x60] sm:$0xff]
        %v346 = vld [vmem:[%s276 + $0x68] sm:$0xff]
        %v347 = vld [vmem:[%s276 + $0x70] sm:$0xff]
        %v348 = vld [vmem:[%s276 + $0x78] sm:$0xff]
        %v349 = vld [vmem:[%s276 + $0x80] sm:$0xff]
        %v350 = vld [vmem:[%s276 + $0x88] sm:$0xff]
        %v351 = vld [vmem:[%s276 + $0x90] sm:$0xf]
        %v352 = vld [vmem:[%s276 + $0x94] sm:$0xff]
        %v353 = vld [vmem:[%s276 + $0x9c] sm:$0xff]
        %v354 = vld [vmem:[%s276 + $0xa4] sm:$0xff]
        %v355 = vld [vmem:[%s276 + $0xac] sm:$0xff]
        %v356 = vld [vmem:[%s276 + $0xb4] sm:$0xff]
        %v357 = vld [vmem:[%s276 + $0xbc] sm:$0xff]
        %v358 = vld [vmem:[%s276 + $0xc4] sm:$0xff]
        %v359 = vld [vmem:[%s276 + $0xcc] sm:$0xff]
        %v360 = vld [vmem:[%s276 + $0xd4] sm:$0xff]
        %v361 = vld [vmem:[%s276 + $0xdc] sm:$0xff]
        %v362 = vld [vmem:[%s276 + $0xe4] sm:$0xff]
        %v363 = vld [vmem:[%s276 + $0xec] sm:$0xff]
        %v364 = vld [vmem:[%s276 + $0xf4] sm:$0xff]
        %v365 = vld [vmem:[%s276 + $0xfc] sm:$0xff]
        %v366 = vld [vmem:[%s276 + $0x104] sm:$0xff]
        %v367 = vld [vmem:[%s276 + $0x10c] sm:$0xff]
        %v368 = vld [vmem:[%s276 + $0x114] sm:$0xff]
        %v369 = vld [vmem:[%s276 + $0x11c] sm:$0xff]
        %v370 = vld [vmem:[%s276 + $0x124] sm:$0xf]
        %v371 = vld [vmem:[%s284] sm:$0xff]
        %v372 = vld [vmem:[%s284 + $0x8] sm:$0xff]
        %v373 = vld [vmem:[%s284 + $0x10] sm:$0xff]
        %v374 = vld [vmem:[%s284 + $0x18] sm:$0xff]
        %v375 = vld [vmem:[%s284 + $0x20] sm:$0xff]
        %v376 = vld [vmem:[%s284 + $0x28] sm:$0xff]
        %v377 = vld [vmem:[%s284 + $0x30] sm:$0xff]
        %v378 = vld [vmem:[%s284 + $0x38] sm:$0xff]
        %v379 = vld [vmem:[%s284 + $0x40] sm:$0xff]
        %v380 = vld [vmem:[%s284 + $0x48] sm:$0xff]
        %v381 = vld [vmem:[%s284 + $0x50] sm:$0xff]
        %v382 = vld [vmem:[%s284 + $0x58] sm:$0xff]
        %v383 = vld [vmem:[%s284 + $0x60] sm:$0xff]
        %v384 = vld [vmem:[%s284 + $0x68] sm:$0xff]
        %v385 = vld [vmem:[%s284 + $0x70] sm:$0xff]
        %v386 = vld [vmem:[%s284 + $0x78] sm:$0xff]
        %v387 = vld [vmem:[%s284 + $0x80] sm:$0xff]
        %v388 = vld [vmem:[%s284 + $0x88] sm:$0xff]
        %v389 = vld [vmem:[%s284 + $0x90] sm:$0xff]
        %v390 = vld [vmem:[%s284 + $0x98] sm:$0xff]
        %v391 = vld [vmem:[%s284 + $0xa0] sm:$0xff]
        %v392 = vld [vmem:[%s284 + $0xa8] sm:$0xff]
        %v393 = vld [vmem:[%s284 + $0xb0] sm:$0xff]
        %v394 = vld [vmem:[%s284 + $0xb8] sm:$0xff]
        %v395 = vld [vmem:[%s284 + $0xc0] sm:$0xff]
        %v396 = vld [vmem:[%s284 + $0xc8] sm:$0xff]
        %v397 = vld [vmem:[%s284 + $0xd0] sm:$0xff]
        %v398 = vld [vmem:[%s284 + $0xd8] sm:$0xff]
        %v399 = vld [vmem:[%s284 + $0xe0] sm:$0xff]
        %v400 = vld [vmem:[%s284 + $0xe8] sm:$0xff]
        %v401 = vld [vmem:[%s284 + $0xf0] sm:$0xff]
        %v402 = vld [vmem:[%s284 + $0xf8] sm:$0xff]
        %v403 = vld [vmem:[%s284 + $0x100] sm:$0xff]
        %v404 = vld [vmem:[%s284 + $0x108] sm:$0xff]
        %v405 = vld [vmem:[%s284 + $0x110] sm:$0xff]
        %v406 = vld [vmem:[%s284 + $0x118] sm:$0xff]
        %v407 = vld [vmem:[%s284 + $0x120] sm:$0xff]
        %v408 = vld [vmem:[%s284 + $0x128] sm:$0xff]
        %v409 = vld [vmem:[%s284 + $0x130] sm:$0xff]
        %v410 = vld [vmem:[%s284 + $0x138] sm:$0xff]
        %v411 = vld [vmem:[%s284 + $0x140] sm:$0xff]
        %v412 = vld [vmem:[%s284 + $0x148] sm:$0xff]
        %v413 = vld [vmem:[%s284 + $0x150] sm:$0xff]
        %v414 = vld [vmem:[%s284 + $0x158] sm:$0xff]
        %v415 = vld [vmem:[%s284 + $0x160] sm:$0xff]
        %v416 = vld [vmem:[%s284 + $0x168] sm:$0xff]
        %v417 = vld [vmem:[%s284 + $0x170] sm:$0xff]
        %v418 = vld [vmem:[%s284 + $0x178] sm:$0xff]
        %v419 = vld [vmem:[%s284 + $0x180] sm:$0xff]
        %v420 = vld [vmem:[%s284 + $0x188] sm:$0xff]
        %v421 = vld [vmem:[%s284 + $0x190] sm:$0xff]
        %v422 = vld [vmem:[%s284 + $0x198] sm:$0xff]
        %v423 = vld [vmem:[%s284 + $0x1a0] sm:$0xff]
        %v424 = vld [vmem:[%s284 + $0x1a8] sm:$0xff]
        %v425 = vld [vmem:[%s284 + $0x1b0] sm:$0xff]
        %v426 = vld [vmem:[%s284 + $0x1b8] sm:$0xff]
        %v427 = vld [vmem:[%s284 + $0x1c0] sm:$0xff]
        %v428 = vld [vmem:[%s284 + $0x1c8] sm:$0xff]
        %v429 = vld [vmem:[%s284 + $0x1d0] sm:$0xff]
        %v430 = vld [vmem:[%s284 + $0x1d8] sm:$0xff]
        %v431 = vld [vmem:[%s284 + $0x1e0] sm:$0xff]
        %v432 = vld [vmem:[%s284 + $0x1e8] sm:$0xff]
        %v433 = vld [vmem:[%s284 + $0x1f0] sm:$0xff]
        %v434 = vld [vmem:[%s284 + $0x1f8] sm:$0xff]
        %v435 = vld [vmem:[%s284 + $0x200] sm:$0xff]
        %v436 = vld [vmem:[%s284 + $0x208] sm:$0xff]
        %v437 = vld [vmem:[%s284 + $0x210] sm:$0xff]
        %v438 = vld [vmem:[%s284 + $0x218] sm:$0xff]
        %v439 = vld [vmem:[%s284 + $0x220] sm:$0xff]
        %v440 = vld [vmem:[%s284 + $0x228] sm:$0xff]
        %v441 = vld [vmem:[%s284 + $0x230] sm:$0xff]
        %v442 = vld [vmem:[%s284 + $0x238] sm:$0xff]
        %v443 = vld [vmem:[%s284 + $0x240] sm:$0xff]
        %v444 = vld [vmem:[%s284 + $0x248] sm:$0xff]
        %v445 = vld [vmem:[%s284 + $0x250] sm:$0xff]
        %v446 = vld [vmem:[%s284 + $0x258] sm:$0xff]
        %v447 = vld [vmem:[%s284 + $0x260] sm:$0xff]
        %v448 = vld [vmem:[%s284 + $0x268] sm:$0xff]
        %v449 = vld [vmem:[%s284 + $0x270] sm:$0xff]
        %v450 = vld [vmem:[%s284 + $0x278] sm:$0xff]
        %v451 = vld [vmem:[%s284 + $0x280] sm:$0xff]
        %v452 = vld [vmem:[%s284 + $0x288] sm:$0xff]
        %v453 = vld [vmem:[%s284 + $0x290] sm:$0xff]
        %v454 = vld [vmem:[%s284 + $0x298] sm:$0xff]
        %v455 = vld [vmem:[%s284 + $0x2a0] sm:$0xff]
        %v456 = vld [vmem:[%s284 + $0x2a8] sm:$0xff]
        %v457 = vld [vmem:[%s284 + $0x2b0] sm:$0xff]
        %v458 = vld [vmem:[%s284 + $0x2b8] sm:$0xff]
        %v459 = vld [vmem:[%s284 + $0x2c0] sm:$0xff]
        %v460 = vld [vmem:[%s284 + $0x2c8] sm:$0xff]
        %v461 = vld [vmem:[%s284 + $0x2d0] sm:$0xff]
        %v462 = vld [vmem:[%s284 + $0x2d8] sm:$0xff]
        %v463 = vld [vmem:[%s284 + $0x2e0] sm:$0xff]
        %v464 = vld [vmem:[%s284 + $0x2e8] sm:$0xff]
        %v465 = vld [vmem:[%s284 + $0x2f0] sm:$0xff]
        %v466 = vld [vmem:[%s284 + $0x2f8] sm:$0xff]
        %v467 = vld [vmem:[%s284 + $0x300] sm:$0xff]
        %v468 = vld [vmem:[%s284 + $0x308] sm:$0xff]
        %v469 = vld [vmem:[%s284 + $0x310] sm:$0xff]
        %v470 = vld [vmem:[%s284 + $0x318] sm:$0xff]
        %v471 = vld [vmem:[%s284 + $0x320] sm:$0xff]
        %v472 = vld [vmem:[%s284 + $0x328] sm:$0xff]
        %v473 = vld [vmem:[%s284 + $0x330] sm:$0xff]
        %v474 = vld [vmem:[%s284 + $0x338] sm:$0xff]
        %v475 = vld [vmem:[%s284 + $0x340] sm:$0xff]
        %v476 = vld [vmem:[%s284 + $0x348] sm:$0xff]
        %v477 = vld [vmem:[%s284 + $0x350] sm:$0xff]
        %v478 = vld [vmem:[%s284 + $0x358] sm:$0xff]
        %v479 = vld [vmem:[%s284 + $0x360] sm:$0xff]
        %v480 = vld [vmem:[%s284 + $0x368] sm:$0xff]
        %v481 = vld [vmem:[%s284 + $0x370] sm:$0xff]
        %v482 = vld [vmem:[%s284 + $0x378] sm:$0xff]
        %v483 = vld [vmem:[%s284 + $0x380] sm:$0xff]
        %v484 = vld [vmem:[%s284 + $0x388] sm:$0xff]
        %v485 = vld [vmem:[%s284 + $0x390] sm:$0xff]
        %v486 = vld [vmem:[%s284 + $0x398] sm:$0xff]
        %v487 = vld [vmem:[%s284 + $0x3a0] sm:$0xff]
        %v488 = vld [vmem:[%s284 + $0x3a8] sm:$0xff]
        %v489 = vld [vmem:[%s284 + $0x3b0] sm:$0xff]
        %v490 = vld [vmem:[%s284 + $0x3b8] sm:$0xff]
        %v491 = vld [vmem:[%s284 + $0x3c0] sm:$0xff]
        %v492 = vld [vmem:[%s284 + $0x3c8] sm:$0xff]
        %v493 = vld [vmem:[%s284 + $0x3d0] sm:$0xff]
        %v494 = vld [vmem:[%s284 + $0x3d8] sm:$0xff]
        %v495 = vld [vmem:[%s284 + $0x3e0] sm:$0xff]
        %v496 = vld [vmem:[%s284 + $0x3e8] sm:$0xff]
        %v497 = vld [vmem:[%s284 + $0x3f0] sm:$0xff]
        %v498 = vld [vmem:[%s284 + $0x3f8] sm:$0xff]
        %v499 = vld [vmem:[%s284 + $0x400] sm:$0xff]
        %v500 = vld [vmem:[%s284 + $0x408] sm:$0xff]
        %v501 = vld [vmem:[%s284 + $0x410] sm:$0xff]
        %v502 = vld [vmem:[%s284 + $0x418] sm:$0xff]
        %v503 = vld [vmem:[%s284 + $0x420] sm:$0xff]
        %v504 = vld [vmem:[%s284 + $0x428] sm:$0xff]
        %v505 = vld [vmem:[%s284 + $0x430] sm:$0xff]
        %v506 = vld [vmem:[%s284 + $0x438] sm:$0xff]
        %v507 = vld [vmem:[%s284 + $0x440] sm:$0xff]
        %v508 = vld [vmem:[%s284 + $0x448] sm:$0xff]
        %v509 = vld [vmem:[%s284 + $0x450] sm:$0xff]
        %v510 = vld [vmem:[%s284 + $0x458] sm:$0xff]
        %v511 = vld [vmem:[%s284 + $0x460] sm:$0xff]
        %v512 = vld [vmem:[%s284 + $0x468] sm:$0xff]
        %v513 = vld [vmem:[%s284 + $0x470] sm:$0xff]
        %v514 = vld [vmem:[%s284 + $0x478] sm:$0xff]
        %v515 = vld [vmem:[%s284 + $0x480] sm:$0xff]
        %v516 = vld [vmem:[%s284 + $0x488] sm:$0xff]
        %v517 = vld [vmem:[%s284 + $0x490] sm:$0xff]
        %v518 = vld [vmem:[%s284 + $0x498] sm:$0xff]
        %v519 = vld [vmem:[%s284 + $0x4a0] sm:$0xff]
        %v520 = vld [vmem:[%s284 + $0x4a8] sm:$0xff]
        %v521 = vld [vmem:[%s284 + $0x4b0] sm:$0xff]
        %v522 = vld [vmem:[%s284 + $0x4b8] sm:$0xff]
        %v523 = vld [vmem:[%s284 + $0x4c0] sm:$0xff]
        %v524 = vld [vmem:[%s284 + $0x4c8] sm:$0xff]
        %v525 = vld [vmem:[%s284 + $0x4d0] sm:$0xff]
        %v526 = vld [vmem:[%s284 + $0x4d8] sm:$0xff]
        %v527 = vld [vmem:[%s284 + $0x4e0] sm:$0xff]
        %v528 = vld [vmem:[%s284 + $0x4e8] sm:$0xff]
        %v529 = vld [vmem:[%s284 + $0x4f0] sm:$0xff]
        %v530 = vld [vmem:[%s284 + $0x4f8] sm:$0xff]
        %v531 = vld [vmem:[%s284 + $0x500] sm:$0xff]
        %v532 = vld [vmem:[%s284 + $0x508] sm:$0xff]
        %v533 = vld [vmem:[%s284 + $0x510] sm:$0xff]
        %v534 = vld [vmem:[%s284 + $0x518] sm:$0xff]
        %v535 = vld [vmem:[%s284 + $0x520] sm:$0xff]
        %v536 = vld [vmem:[%s284 + $0x528] sm:$0xff]
        %v537 = vld [vmem:[%s284 + $0x530] sm:$0xff]
        %v538 = vld [vmem:[%s284 + $0x538] sm:$0xff]
        %v539 = vld [vmem:[%s284 + $0x540] sm:$0xff]
        %v540 = vld [vmem:[%s284 + $0x548] sm:$0xff]
        %v541 = vld [vmem:[%s284 + $0x550] sm:$0xff]
        %v542 = vld [vmem:[%s284 + $0x558] sm:$0xff]
        %v543 = vld [vmem:[%s284 + $0x560] sm:$0xff]
        %v544 = vld [vmem:[%s284 + $0x568] sm:$0xff]
        %v545 = vld [vmem:[%s284 + $0x570] sm:$0xff]
        %v546 = vld [vmem:[%s284 + $0x578] sm:$0xff]
        %v547 = vld [vmem:[%s284 + $0x580] sm:$0xff]
        %v548 = vld [vmem:[%s284 + $0x588] sm:$0xff]
        %v549 = vld [vmem:[%s284 + $0x590] sm:$0xff]
        %v550 = vld [vmem:[%s284 + $0x598] sm:$0xff]
        %v551 = vld [vmem:[%s284 + $0x5a0] sm:$0xff]
        %v552 = vld [vmem:[%s284 + $0x5a8] sm:$0xff]
        %v553 = vld [vmem:[%s284 + $0x5b0] sm:$0xff]
        %v554 = vld [vmem:[%s284 + $0x5b8] sm:$0xff]
        %v555 = vld [vmem:[%s284 + $0x5c0] sm:$0xff]
        %v556 = vld [vmem:[%s284 + $0x5c8] sm:$0xff]
        %v557 = vld [vmem:[%s284 + $0x5d0] sm:$0xff]
        %v558 = vld [vmem:[%s284 + $0x5d8] sm:$0xff]
        %v559 = vld [vmem:[%s284 + $0x5e0] sm:$0xff]
        %v560 = vld [vmem:[%s284 + $0x5e8] sm:$0xff]
        %v561 = vld [vmem:[%s284 + $0x5f0] sm:$0xff]
        %v562 = vld [vmem:[%s284 + $0x5f8] sm:$0xff]
        %v563 = vld [vmem:[%s284 + $0x600] sm:$0xff]
        %v564 = vld [vmem:[%s284 + $0x608] sm:$0xff]
        %v565 = vld [vmem:[%s284 + $0x610] sm:$0xff]
        %v566 = vld [vmem:[%s284 + $0x618] sm:$0xff]
        %v567 = vld [vmem:[%s284 + $0x620] sm:$0xff]
        %v568 = vld [vmem:[%s284 + $0x628] sm:$0xff]
        %v569 = vld [vmem:[%s284 + $0x630] sm:$0xff]
        %v570 = vld [vmem:[%s284 + $0x638] sm:$0xff]
        %v571 = vld [vmem:[%s284 + $0x640] sm:$0xff]
        %v572 = vld [vmem:[%s284 + $0x648] sm:$0xff]
        %v573 = vld [vmem:[%s284 + $0x650] sm:$0xff]
        %v574 = vld [vmem:[%s284 + $0x658] sm:$0xff]
        %v575 = vld [vmem:[%s284 + $0x660] sm:$0xff]
        %v576 = vld [vmem:[%s284 + $0x668] sm:$0xff]
        %v577 = vld [vmem:[%s284 + $0x670] sm:$0xff]
        %v578 = vld [vmem:[%s284 + $0x678] sm:$0xff]
        %v579 = vld [vmem:[%s284 + $0x680] sm:$0xff]
        %v580 = vld [vmem:[%s284 + $0x688] sm:$0xff]
        %v581 = vld [vmem:[%s284 + $0x690] sm:$0xff]
        %v582 = vld [vmem:[%s284 + $0x698] sm:$0xff]
        %v583 = vld [vmem:[%s284 + $0x6a0] sm:$0xff]
        %v584 = vld [vmem:[%s284 + $0x6a8] sm:$0xff]
        %v585 = vld [vmem:[%s284 + $0x6b0] sm:$0xff]
        %v586 = vld [vmem:[%s284 + $0x6b8] sm:$0xff]
        %v587 = vld [vmem:[%s284 + $0x6c0] sm:$0xff]
        %v588 = vld [vmem:[%s284 + $0x6c8] sm:$0xff]
        %v589 = vld [vmem:[%s284 + $0x6d0] sm:$0xff]
        %v590 = vld [vmem:[%s284 + $0x6d8] sm:$0xff]
        %v591 = vld [vmem:[%s284 + $0x6e0] sm:$0xff]
        %v592 = vld [vmem:[%s284 + $0x6e8] sm:$0xff]
        %v593 = vld [vmem:[%s284 + $0x6f0] sm:$0xff]
        %v594 = vld [vmem:[%s284 + $0x6f8] sm:$0xff]
        %v595 = vld [vmem:[%s284 + $0x700] sm:$0xff]
        %v596 = vld [vmem:[%s284 + $0x708] sm:$0xff]
        %v597 = vld [vmem:[%s284 + $0x710] sm:$0xff]
        %v598 = vld [vmem:[%s284 + $0x718] sm:$0xff]
        %v599 = vld [vmem:[%s284 + $0x720] sm:$0xff]
        %v600 = vld [vmem:[%s284 + $0x728] sm:$0xff]
        %v601 = vld [vmem:[%s284 + $0x730] sm:$0xff]
        %v602 = vld [vmem:[%s284 + $0x738] sm:$0xff]
        %v603 = vld [vmem:[%s284 + $0x740] sm:$0xff]
        %v604 = vld [vmem:[%s284 + $0x748] sm:$0xff]
        %v605 = vld [vmem:[%s284 + $0x750] sm:$0xff]
        %v606 = vld [vmem:[%s284 + $0x758] sm:$0xff]
        %v607 = vld [vmem:[%s284 + $0x760] sm:$0xff]
        %v608 = vld [vmem:[%s284 + $0x768] sm:$0xff]
        %v609 = vld [vmem:[%s284 + $0x770] sm:$0xff]
        %v610 = vld [vmem:[%s284 + $0x778] sm:$0xff]
        %v611 = vld [vmem:[%s284 + $0x780] sm:$0xff]
        %v612 = vld [vmem:[%s284 + $0x788] sm:$0xff]
        %v613 = vld [vmem:[%s284 + $0x790] sm:$0xff]
        %v614 = vld [vmem:[%s284 + $0x798] sm:$0xff]
        %v615 = vld [vmem:[%s284 + $0x7a0] sm:$0xff]
        %v616 = vld [vmem:[%s284 + $0x7a8] sm:$0xff]
        %v617 = vld [vmem:[%s284 + $0x7b0] sm:$0xff]
        %v618 = vld [vmem:[%s284 + $0x7b8] sm:$0xff]
        %v619 = vld [vmem:[%s284 + $0x7c0] sm:$0xff]
        %v620 = vld [vmem:[%s284 + $0x7c8] sm:$0xff]
        %v621 = vld [vmem:[%s284 + $0x7d0] sm:$0xff]
        %v622 = vld [vmem:[%s284 + $0x7d8] sm:$0xff]
        %v623 = vld [vmem:[%s284 + $0x7e0] sm:$0xff]
        %v624 = vld [vmem:[%s284 + $0x7e8] sm:$0xff]
        %v625 = vld [vmem:[%s284 + $0x7f0] sm:$0xff]
        %v626 = vld [vmem:[%s284 + $0x7f8] sm:$0xff]
        %v627 = vld [vmem:[%s284 + $0x800] sm:$0xff]
        %v628 = vld [vmem:[%s284 + $0x808] sm:$0xff]
        %v629 = vld [vmem:[%s284 + $0x810] sm:$0xff]
        %v630 = vld [vmem:[%s284 + $0x818] sm:$0xff]
        %v631 = vld [vmem:[%s284 + $0x820] sm:$0xff]
        %v632 = vld [vmem:[%s284 + $0x828] sm:$0xff]
        %v633 = vld [vmem:[%s284 + $0x830] sm:$0xff]
        %v634 = vld [vmem:[%s284 + $0x838] sm:$0xff]
        %v635 = vld [vmem:[%s284 + $0x840] sm:$0xff]
        %v636 = vld [vmem:[%s284 + $0x848] sm:$0xff]
        %v637 = vld [vmem:[%s284 + $0x850] sm:$0xff]
        %v638 = vld [vmem:[%s284 + $0x858] sm:$0xff]
        %v639 = vld [vmem:[%s284 + $0x860] sm:$0xff]
        %v640 = vld [vmem:[%s284 + $0x868] sm:$0xff]
        %v641 = vld [vmem:[%s284 + $0x870] sm:$0xff]
        %v642 = vld [vmem:[%s284 + $0x878] sm:$0xff]
        %v643 = vld [vmem:[%s284 + $0x880] sm:$0xff]
        %v644 = vld [vmem:[%s284 + $0x888] sm:$0xff]
        %v645 = vld [vmem:[%s284 + $0x890] sm:$0xff]
        %v646 = vld [vmem:[%s284 + $0x898] sm:$0xff]
        %v647 = vld [vmem:[%s284 + $0x8a0] sm:$0xff]
        %v648 = vld [vmem:[%s284 + $0x8a8] sm:$0xff]
        %v649 = vld [vmem:[%s284 + $0x8b0] sm:$0xff]
        %v650 = vld [vmem:[%s284 + $0x8b8] sm:$0xff]
        %v651 = vld [vmem:[%s284 + $0x8c0] sm:$0xff]
        %v652 = vld [vmem:[%s284 + $0x8c8] sm:$0xff]
        %v653 = vld [vmem:[%s284 + $0x8d0] sm:$0xff]
        %v654 = vld [vmem:[%s284 + $0x8d8] sm:$0xff]
        %v655 = vld [vmem:[%s284 + $0x8e0] sm:$0xff]
        %v656 = vld [vmem:[%s284 + $0x8e8] sm:$0xff]
        %v657 = vld [vmem:[%s284 + $0x8f0] sm:$0xff]
        %v658 = vld [vmem:[%s284 + $0x8f8] sm:$0xff]
        %v659 = vld [vmem:[%s284 + $0x900] sm:$0xff]
        %v660 = vld [vmem:[%s284 + $0x908] sm:$0xff]
        %v661 = vld [vmem:[%s284 + $0x910] sm:$0xff]
        %v662 = vld [vmem:[%s284 + $0x918] sm:$0xff]
        %v663 = vld [vmem:[%s284 + $0x920] sm:$0xff]
        %v664 = vld [vmem:[%s284 + $0x928] sm:$0xff]
        %v665 = vld [vmem:[%s284 + $0x930] sm:$0xff]
        %v666 = vld [vmem:[%s284 + $0x938] sm:$0xff]
        %v667 = vld [vmem:[%s284 + $0x940] sm:$0xff]
        %v668 = vld [vmem:[%s284 + $0x948] sm:$0xff]
        %v669 = vld [vmem:[%s284 + $0x950] sm:$0xff]
        %v670 = vld [vmem:[%s284 + $0x958] sm:$0xff]
        %v671 = vld [vmem:[%s284 + $0x960] sm:$0xff]
        %v672 = vld [vmem:[%s284 + $0x968] sm:$0xff]
        %v673 = vld [vmem:[%s284 + $0x970] sm:$0xff]
        %v674 = vld [vmem:[%s284 + $0x978] sm:$0xff]
        %v675 = vld [vmem:[%s284 + $0x980] sm:$0xff]
        %v676 = vld [vmem:[%s284 + $0x988] sm:$0xff]
        %v677 = vld [vmem:[%s284 + $0x990] sm:$0xff]
        %v678 = vld [vmem:[%s284 + $0x998] sm:$0xff]
        %v679 = vld [vmem:[%s284 + $0x9a0] sm:$0xff]
        %v680 = vld [vmem:[%s284 + $0x9a8] sm:$0xff]
        %v681 = vld [vmem:[%s284 + $0x9b0] sm:$0xff]
        %v682 = vld [vmem:[%s284 + $0x9b8] sm:$0xff]
        %v683 = vld [vmem:[%s284 + $0x9c0] sm:$0xff]
        %v684 = vld [vmem:[%s284 + $0x9c8] sm:$0xff]
        %v685 = vld [vmem:[%s284 + $0x9d0] sm:$0xff]
        %v686 = vld [vmem:[%s284 + $0x9d8] sm:$0xff]
        %v687 = vld [vmem:[%s284 + $0x9e0] sm:$0xff]
        %v688 = vld [vmem:[%s284 + $0x9e8] sm:$0xff]
        %v689 = vld [vmem:[%s284 + $0x9f0] sm:$0xff]
        %v690 = vld [vmem:[%s284 + $0x9f8] sm:$0xff]
        %v691 = vld [vmem:[%s284 + $0xa00] sm:$0xff]
        %v692 = vld [vmem:[%s284 + $0xa08] sm:$0xff]
        %v693 = vld [vmem:[%s284 + $0xa10] sm:$0xff]
        %v694 = vld [vmem:[%s284 + $0xa18] sm:$0xff]
        %v695 = vld [vmem:[%s284 + $0xa20] sm:$0xff]
        %v696 = vld [vmem:[%s284 + $0xa28] sm:$0xff]
        %v697 = vld [vmem:[%s284 + $0xa30] sm:$0xff]
        %v698 = vld [vmem:[%s284 + $0xa38] sm:$0xff]
        %v699 = vld [vmem:[%s284 + $0xa40] sm:$0xff]
        %v700 = vld [vmem:[%s284 + $0xa48] sm:$0xff]
        %v701 = vld [vmem:[%s284 + $0xa50] sm:$0xff]
        %v702 = vld [vmem:[%s284 + $0xa58] sm:$0xff]
        %v703 = vld [vmem:[%s284 + $0xa60] sm:$0xff]
        %v704 = vld [vmem:[%s284 + $0xa68] sm:$0xff]
        %v705 = vld [vmem:[%s284 + $0xa70] sm:$0xff]
        %v706 = vld [vmem:[%s284 + $0xa78] sm:$0xff]
        %v707 = vld [vmem:[%s284 + $0xa80] sm:$0xff]
        %v708 = vld [vmem:[%s284 + $0xa88] sm:$0xff]
        %v709 = vld [vmem:[%s284 + $0xa90] sm:$0xff]
        %v710 = vld [vmem:[%s284 + $0xa98] sm:$0xff]
        %v711 = vld [vmem:[%s284 + $0xaa0] sm:$0xff]
        %v712 = vld [vmem:[%s284 + $0xaa8] sm:$0xff]
        %v713 = vld [vmem:[%s284 + $0xab0] sm:$0xff]
        %v714 = vld [vmem:[%s284 + $0xab8] sm:$0xff]
        %v715 = vld [vmem:[%s284 + $0xac0] sm:$0xff]
        %v716 = vld [vmem:[%s284 + $0xac8] sm:$0xff]
        %v717 = vld [vmem:[%s284 + $0xad0] sm:$0xff]
        %v718 = vld [vmem:[%s284 + $0xad8] sm:$0xff]
        %v719 = vld [vmem:[%s284 + $0xae0] sm:$0xff]
        %v720 = vld [vmem:[%s284 + $0xae8] sm:$0xff]
        %v721 = vld [vmem:[%s284 + $0xaf0] sm:$0xff]
        %v722 = vld [vmem:[%s284 + $0xaf8] sm:$0xff]
        %v723 = vld [vmem:[%s284 + $0xb00] sm:$0xff]
        %v724 = vld [vmem:[%s284 + $0xb08] sm:$0xff]
        %v725 = vld [vmem:[%s284 + $0xb10] sm:$0xff]
        %v726 = vld [vmem:[%s284 + $0xb18] sm:$0xff]
        %v727 = vld [vmem:[%s284 + $0xb20] sm:$0xff]
        %v728 = vld [vmem:[%s284 + $0xb28] sm:$0xff]
        %v729 = vld [vmem:[%s284 + $0xb30] sm:$0xff]
        %v730 = vld [vmem:[%s284 + $0xb38] sm:$0xff]
        %v731 = vld [vmem:[%s284 + $0xb40] sm:$0xff]
        %v732 = vld [vmem:[%s284 + $0xb48] sm:$0xff]
        %v733 = vld [vmem:[%s284 + $0xb50] sm:$0xff]
        %v734 = vld [vmem:[%s284 + $0xb58] sm:$0xff]
        %v735 = vld [vmem:[%s284 + $0xb60] sm:$0xff]
        %v736 = vld [vmem:[%s284 + $0xb68] sm:$0xff]
        %v737 = vld [vmem:[%s284 + $0xb70] sm:$0xff]
        %v738 = vld [vmem:[%s284 + $0xb78] sm:$0xff]
        %v739 = vld [vmem:[%s284 + $0xb80] sm:$0xff]
        %v740 = vld [vmem:[%s284 + $0xb88] sm:$0xff]
        %v741 = vld [vmem:[%s284 + $0xb90] sm:$0xff]
        %v742 = vld [vmem:[%s284 + $0xb98] sm:$0xff]
        %v743 = vld [vmem:[%s284 + $0xba0] sm:$0xff]
        %v744 = vld [vmem:[%s284 + $0xba8] sm:$0xff]
        %v745 = vld [vmem:[%s284 + $0xbb0] sm:$0xff]
        %v746 = vld [vmem:[%s284 + $0xbb8] sm:$0xff]
        %v747 = vld [vmem:[%s284 + $0xbc0] sm:$0xff]
        %v748 = vld [vmem:[%s284 + $0xbc8] sm:$0xff]
        %v749 = vld [vmem:[%s284 + $0xbd0] sm:$0xff]
        %v750 = vld [vmem:[%s284 + $0xbd8] sm:$0xff]
        %v751 = vld [vmem:[%s284 + $0xbe0] sm:$0xff]
        %v752 = vld [vmem:[%s284 + $0xbe8] sm:$0xff]
        %v753 = vld [vmem:[%s284 + $0xbf0] sm:$0xff]
        %v754 = vld [vmem:[%s284 + $0xbf8] sm:$0xff]
        %v755 = vld [vmem:[%s284 + $0xc00] sm:$0xff]
        %v756 = vld [vmem:[%s284 + $0xc08] sm:$0xff]
        %v757 = vld [vmem:[%s284 + $0xc10] sm:$0xff]
        %v758 = vld [vmem:[%s284 + $0xc18] sm:$0xff]
        %v759 = vld [vmem:[%s284 + $0xc20] sm:$0xff]
        %v760 = vld [vmem:[%s284 + $0xc28] sm:$0xff]
        %v761 = vld [vmem:[%s284 + $0xc30] sm:$0xff]
        %v762 = vld [vmem:[%s284 + $0xc38] sm:$0xff]
        %v763 = vld [vmem:[%s284 + $0xc40] sm:$0xff]
        %v764 = vld [vmem:[%s284 + $0xc48] sm:$0xff]
        %v765 = vld [vmem:[%s284 + $0xc50] sm:$0xff]
        %v766 = vld [vmem:[%s284 + $0xc58] sm:$0xff]
        %v767 = vld [vmem:[%s284 + $0xc60] sm:$0xff]
        %v768 = vld [vmem:[%s284 + $0xc68] sm:$0xff]
        %v769 = vld [vmem:[%s284 + $0xc70] sm:$0xff]
        %v770 = vld [vmem:[%s284 + $0xc78] sm:$0xff]
        %v771 = vld [vmem:[%s284 + $0xc80] sm:$0xff]
        %v772 = vld [vmem:[%s284 + $0xc88] sm:$0xff]
        %v773 = vld [vmem:[%s284 + $0xc90] sm:$0xff]
        %v774 = vld [vmem:[%s284 + $0xc98] sm:$0xff]
        %v775 = vld [vmem:[%s284 + $0xca0] sm:$0xff]
        %v776 = vld [vmem:[%s284 + $0xca8] sm:$0xff]
        %v777 = vld [vmem:[%s284 + $0xcb0] sm:$0xff]
        %v778 = vld [vmem:[%s284 + $0xcb8] sm:$0xff]
        %v779 = vld [vmem:[%s284 + $0xcc0] sm:$0xff]
        %v780 = vld [vmem:[%s284 + $0xcc8] sm:$0xff]
        %v781 = vld [vmem:[%s284 + $0xcd0] sm:$0xff]
        %v782 = vld [vmem:[%s284 + $0xcd8] sm:$0xff]
        %v783 = vld [vmem:[%s284 + $0xce0] sm:$0xff]
        %v784 = vld [vmem:[%s284 + $0xce8] sm:$0xff]
        %v785 = vld [vmem:[%s284 + $0xcf0] sm:$0xff]
        %v786 = vld [vmem:[%s284 + $0xcf8] sm:$0xff]
        %v787 = vld [vmem:[%s284 + $0xd00] sm:$0xff]
        %v788 = vld [vmem:[%s284 + $0xd08] sm:$0xff]
        %v789 = vld [vmem:[%s284 + $0xd10] sm:$0xff]
        %v790 = vld [vmem:[%s284 + $0xd18] sm:$0xff]
        %v791 = vld [vmem:[%s284 + $0xd20] sm:$0xff]
        %v792 = vld [vmem:[%s284 + $0xd28] sm:$0xff]
        %v793 = vld [vmem:[%s284 + $0xd30] sm:$0xff]
        %v794 = vld [vmem:[%s284 + $0xd38] sm:$0xff]
        %v795 = vld [vmem:[%s284 + $0xd40] sm:$0xff]
        %v796 = vld [vmem:[%s284 + $0xd48] sm:$0xff]
        %v797 = vld [vmem:[%s284 + $0xd50] sm:$0xff]
        %v798 = vld [vmem:[%s284 + $0xd58] sm:$0xff]
        %v799 = vld [vmem:[%s284 + $0xd60] sm:$0xff]
        %v800 = vld [vmem:[%s284 + $0xd68] sm:$0xff]
        %v801 = vld [vmem:[%s284 + $0xd70] sm:$0xff]
        %v802 = vld [vmem:[%s284 + $0xd78] sm:$0xff]
        %v803 = vld [vmem:[%s284 + $0xd80] sm:$0xff]
        %v804 = vld [vmem:[%s284 + $0xd88] sm:$0xff]
        %v805 = vld [vmem:[%s284 + $0xd90] sm:$0xff]
        %v806 = vld [vmem:[%s284 + $0xd98] sm:$0xff]
        %v807 = vld [vmem:[%s284 + $0xda0] sm:$0xff]
        %v808 = vld [vmem:[%s284 + $0xda8] sm:$0xff]
        %v809 = vld [vmem:[%s284 + $0xdb0] sm:$0xff]
        %v810 = vld [vmem:[%s284 + $0xdb8] sm:$0xff]
        %v811 = vld [vmem:[%s284 + $0xdc0] sm:$0xff]
        %v812 = vld [vmem:[%s284 + $0xdc8] sm:$0xff]
        %v813 = vld [vmem:[%s284 + $0xdd0] sm:$0xff]
        %v814 = vld [vmem:[%s284 + $0xdd8] sm:$0xff]
        %v815 = vld [vmem:[%s284 + $0xde0] sm:$0xff]
        %v816 = vld [vmem:[%s284 + $0xde8] sm:$0xff]
        %v817 = vld [vmem:[%s284 + $0xdf0] sm:$0xff]
        %v818 = vld [vmem:[%s284 + $0xdf8] sm:$0xff]
        %v819 = vld [vmem:[%s284 + $0xe00] sm:$0xff]
        %v820 = vld [vmem:[%s284 + $0xe08] sm:$0xff]
        %v821 = vld [vmem:[%s284 + $0xe10] sm:$0xff]
        %v822 = vld [vmem:[%s284 + $0xe18] sm:$0xff]
        %v823 = vld [vmem:[%s284 + $0xe20] sm:$0xff]
        %v824 = vld [vmem:[%s284 + $0xe28] sm:$0xff]
        %v825 = vld [vmem:[%s284 + $0xe30] sm:$0xff]
        %v826 = vld [vmem:[%s284 + $0xe38] sm:$0xff]
        %v827 = vld [vmem:[%s284 + $0xe40] sm:$0xff]
        %v828 = vld [vmem:[%s284 + $0xe48] sm:$0xff]
        %v829 = vld [vmem:[%s284 + $0xe50] sm:$0xff]
        %v830 = vld [vmem:[%s284 + $0xe58] sm:$0xff]
        %v831 = vld [vmem:[%s284 + $0xe60] sm:$0xff]
        %v832 = vld [vmem:[%s284 + $0xe68] sm:$0xff]
        %v833 = vld [vmem:[%s284 + $0xe70] sm:$0xff]
        %v834 = vld [vmem:[%s284 + $0xe78] sm:$0xff]
        %v835 = vld [vmem:[%s284 + $0xe80] sm:$0xff]
        %v836 = vld [vmem:[%s284 + $0xe88] sm:$0xff]
        %v837 = vld [vmem:[%s284 + $0xe90] sm:$0xff]
        %v838 = vld [vmem:[%s284 + $0xe98] sm:$0xff]
        %v839 = vld [vmem:[%s284 + $0xea0] sm:$0xff]
        %v840 = vld [vmem:[%s284 + $0xea8] sm:$0xff]
        %v841 = vld [vmem:[%s284 + $0xeb0] sm:$0xff]
        %v842 = vld [vmem:[%s284 + $0xeb8] sm:$0xff]
        %v843 = vld [vmem:[%s284 + $0xec0] sm:$0xff]
        %v844 = vld [vmem:[%s284 + $0xec8] sm:$0xff]
        %v845 = vld [vmem:[%s284 + $0xed0] sm:$0xff]
        %v846 = vld [vmem:[%s284 + $0xed8] sm:$0xff]
        %v847 = vld [vmem:[%s284 + $0xee0] sm:$0xff]
        %v848 = vld [vmem:[%s284 + $0xee8] sm:$0xff]
        %v849 = vld [vmem:[%s284 + $0xef0] sm:$0xff]
        %v850 = vld [vmem:[%s284 + $0xef8] sm:$0xff]
        %v851 = vld [vmem:[%s284 + $0xf00] sm:$0xff]
        %v852 = vld [vmem:[%s284 + $0xf08] sm:$0xff]
        %v853 = vld [vmem:[%s284 + $0xf10] sm:$0xff]
        %v854 = vld [vmem:[%s284 + $0xf18] sm:$0xff]
        %v855 = vld [vmem:[%s284 + $0xf20] sm:$0xff]
        %v856 = vld [vmem:[%s284 + $0xf28] sm:$0xff]
        %v857 = vld [vmem:[%s284 + $0xf30] sm:$0xff]
        %v858 = vld [vmem:[%s284 + $0xf38] sm:$0xff]
        %v859 = vld [vmem:[%s284 + $0xf40] sm:$0xff]
        %v860 = vld [vmem:[%s284 + $0xf48] sm:$0xff]
        %v861 = vld [vmem:[%s284 + $0xf50] sm:$0xff]
        %v862 = vld [vmem:[%s284 + $0xf58] sm:$0xff]
        %v863 = vld [vmem:[%s284 + $0xf60] sm:$0xff]
        %v864 = vld [vmem:[%s284 + $0xf68] sm:$0xff]
        %v865 = vld [vmem:[%s284 + $0xf70] sm:$0xff]
        %v866 = vld [vmem:[%s284 + $0xf78] sm:$0xff]
        %v867 = vld [vmem:[%s284 + $0xf80] sm:$0xff]
        %v868 = vld [vmem:[%s284 + $0xf88] sm:$0xff]
        %v869 = vld [vmem:[%s284 + $0xf90] sm:$0xff]
        %v870 = vld [vmem:[%s284 + $0xf98] sm:$0xff]
        %v871 = vld [vmem:[%s284 + $0xfa0] sm:$0xff]
        %v872 = vld [vmem:[%s284 + $0xfa8] sm:$0xff]
        %v873 = vld [vmem:[%s284 + $0xfb0] sm:$0xff]
        %v874 = vld [vmem:[%s284 + $0xfb8] sm:$0xff]
        %v875 = vld [vmem:[%s284 + $0xfc0] sm:$0xff]
        %v876 = vld [vmem:[%s284 + $0xfc8] sm:$0xff]
        %v877 = vld [vmem:[%s284 + $0xfd0] sm:$0xff]
        %v878 = vld [vmem:[%s284 + $0xfd8] sm:$0xff]
        %v879 = vld [vmem:[%s284 + $0xfe0] sm:$0xff]
        %v880 = vld [vmem:[%s284 + $0xfe8] sm:$0xff]
        %v881 = vld [vmem:[%s284 + $0xff0] sm:$0xff]
        %v882 = vld [vmem:[%s284 + $0xff8] sm:$0xff]
        %v883 = vld [vmem:[%s284 + $0x1000] sm:$0xff]
        %v884 = vld [vmem:[%s284 + $0x1008] sm:$0xff]
        %v885 = vld [vmem:[%s284 + $0x1010] sm:$0xff]
        %v886 = vld [vmem:[%s284 + $0x1018] sm:$0xff]
        %v887 = vld [vmem:[%s284 + $0x1020] sm:$0xff]
        %v888 = vld [vmem:[%s284 + $0x1028] sm:$0xff]
        %v889 = vld [vmem:[%s284 + $0x1030] sm:$0xff]
        %v890 = vld [vmem:[%s284 + $0x1038] sm:$0xff]
        %v891 = vld [vmem:[%s284 + $0x1040] sm:$0xff]
        %v892 = vld [vmem:[%s284 + $0x1048] sm:$0xff]
        %v893 = vld [vmem:[%s284 + $0x1050] sm:$0xff]
        %v894 = vld [vmem:[%s284 + $0x1058] sm:$0xff]
        %v895 = vld [vmem:[%s284 + $0x1060] sm:$0xff]
        %v896 = vld [vmem:[%s284 + $0x1068] sm:$0xff]
        %v897 = vld [vmem:[%s284 + $0x1070] sm:$0xff]
        %v898 = vld [vmem:[%s284 + $0x1078] sm:$0xff]
        %v899 = vld [vmem:[%s284 + $0x1080] sm:$0xff]
        %v900 = vld [vmem:[%s284 + $0x1088] sm:$0xff]
        %v901 = vld [vmem:[%s284 + $0x1090] sm:$0xff]
        %v902 = vld [vmem:[%s284 + $0x1098] sm:$0xff]
        %v903 = vld [vmem:[%s284 + $0x10a0] sm:$0xff]
        %v904 = vld [vmem:[%s284 + $0x10a8] sm:$0xff]
        %v905 = vld [vmem:[%s284 + $0x10b0] sm:$0xff]
        %v906 = vld [vmem:[%s284 + $0x10b8] sm:$0xff]
        %v907 = vld [vmem:[%s284 + $0x10c0] sm:$0xff]
        %v908 = vld [vmem:[%s284 + $0x10c8] sm:$0xff]
        %v909 = vld [vmem:[%s284 + $0x10d0] sm:$0xff]
        %v910 = vld [vmem:[%s284 + $0x10d8] sm:$0xff]
        %v911 = vld [vmem:[%s284 + $0x10e0] sm:$0xff]
        %v912 = vld [vmem:[%s284 + $0x10e8] sm:$0xff]
        %v913 = vld [vmem:[%s284 + $0x10f0] sm:$0xff]
        %v914 = vld [vmem:[%s284 + $0x10f8] sm:$0xff]
        %v915 = vld [vmem:[%s284 + $0x1100] sm:$0xff]
        %v916 = vld [vmem:[%s284 + $0x1108] sm:$0xff]
        %v917 = vld [vmem:[%s284 + $0x1110] sm:$0xff]
        %v918 = vld [vmem:[%s284 + $0x1118] sm:$0xff]
        %v919 = vld [vmem:[%s284 + $0x1120] sm:$0xff]
        %v920 = vld [vmem:[%s284 + $0x1128] sm:$0xff]
        %v921 = vld [vmem:[%s284 + $0x1130] sm:$0xff]
        %v922 = vld [vmem:[%s284 + $0x1138] sm:$0xff]
        %v923 = vld [vmem:[%s284 + $0x1140] sm:$0xff]
        %v924 = vld [vmem:[%s284 + $0x1148] sm:$0xff]
        %v925 = vld [vmem:[%s284 + $0x1150] sm:$0xff]
        %v926 = vld [vmem:[%s284 + $0x1158] sm:$0xff]
        %v927 = vld [vmem:[%s284 + $0x1160] sm:$0xff]
        %v928 = vld [vmem:[%s284 + $0x1168] sm:$0xff]
        %v929 = vld [vmem:[%s284 + $0x1170] sm:$0xff]
        %v930 = vld [vmem:[%s284 + $0x1178] sm:$0xff]
        %v931 = vld [vmem:[%s284 + $0x1180] sm:$0xff]
        %v932 = vld [vmem:[%s284 + $0x1188] sm:$0xff]
        %v933 = vld [vmem:[%s284 + $0x1190] sm:$0xff]
        %v934 = vld [vmem:[%s284 + $0x1198] sm:$0xff]
        %v935 = vld [vmem:[%s284 + $0x11a0] sm:$0xff]
        %v936 = vld [vmem:[%s284 + $0x11a8] sm:$0xff]
        %v937 = vld [vmem:[%s284 + $0x11b0] sm:$0xff]
        %v938 = vld [vmem:[%s284 + $0x11b8] sm:$0xff]
        %v939 = vld [vmem:[%s284 + $0x11c0] sm:$0xff]
        %v940 = vld [vmem:[%s284 + $0x11c8] sm:$0xff]
        %v941 = vld [vmem:[%s284 + $0x11d0] sm:$0xff]
        %v942 = vld [vmem:[%s284 + $0x11d8] sm:$0xff]
        %v943 = vld [vmem:[%s284 + $0x11e0] sm:$0xff]
        %v944 = vld [vmem:[%s284 + $0x11e8] sm:$0xff]
        %v945 = vld [vmem:[%s284 + $0x11f0] sm:$0xff]
        %v946 = vld [vmem:[%s284 + $0x11f8] sm:$0xff]
        %v947 = vld [vmem:[%s284 + $0x1200] sm:$0xff]
        %v948 = vld [vmem:[%s284 + $0x1208] sm:$0xff]
        %v949 = vld [vmem:[%s284 + $0x1210] sm:$0xff]
        %v950 = vld [vmem:[%s284 + $0x1218] sm:$0xff]
        %v951 = vld [vmem:[%s284 + $0x1220] sm:$0xff]
        %v952 = vld [vmem:[%s284 + $0x1228] sm:$0xff]
        %v953 = vld [vmem:[%s284 + $0x1230] sm:$0xff]
        %v954 = vld [vmem:[%s284 + $0x1238] sm:$0xff]
        %v955 = vld [vmem:[%s284 + $0x1240] sm:$0xff]
        %v956 = vld [vmem:[%s284 + $0x1248] sm:$0xff]
        %v957 = vld [vmem:[%s284 + $0x1250] sm:$0xff]
        %v958 = vld [vmem:[%s284 + $0x1258] sm:$0xff]
        %v959 = vld [vmem:[%s284 + $0x1260] sm:$0xff]
        %v960 = vld [vmem:[%s284 + $0x1268] sm:$0xff]
        %v961 = vld [vmem:[%s284 + $0x1270] sm:$0xff]
        %v962 = vld [vmem:[%s284 + $0x1278] sm:$0xff]
        %v1001 = vunpack.c.l.b16 %v333
        %v1002 = vunpack.c.h.b16 %v333
        %v1003 = vunpack.c.l.b16 %v334
        %v1004 = vunpack.c.h.b16 %v334
        %v1005 = vunpack.c.l.b16 %v335
        %v1006 = vunpack.c.h.b16 %v335
        %v1007 = vunpack.c.l.b16 %v336
        %v1008 = vunpack.c.h.b16 %v336
        %v1009 = vunpack.c.l.b16 %v337
        %v1010 = vunpack.c.h.b16 %v337
        %v1011 = vunpack.c.l.b16 %v338
        %v1012 = vunpack.c.h.b16 %v338
        %v1013 = vunpack.c.l.b16 %v339
        %v1014 = vunpack.c.h.b16 %v339
        %v1015 = vunpack.c.l.b16 %v340
        %v1016 = vunpack.c.h.b16 %v340
        %v1017 = vunpack.c.l.b16 %v341
        %v1018 = vunpack.c.h.b16 %v341
        %v1019 = vunpack.c.l.b16 %v342
        %v1020 = vunpack.c.h.b16 %v342
        %v1021 = vunpack.c.l.b16 %v343
        %v1022 = vunpack.c.h.b16 %v343
        %v1023 = vunpack.c.l.b16 %v344
        %v1024 = vunpack.c.h.b16 %v344
        %v1025 = vunpack.c.l.b16 %v345
        %v1026 = vunpack.c.h.b16 %v345
        %v1027 = vunpack.c.l.b16 %v346
        %v1028 = vunpack.c.h.b16 %v346
        %v1029 = vunpack.c.l.b16 %v347
        %v1030 = vunpack.c.h.b16 %v347
        %v1031 = vunpack.c.l.b16 %v348
        %v1032 = vunpack.c.h.b16 %v348
        %v1033 = vunpack.c.l.b16 %v349
        %v1034 = vunpack.c.h.b16 %v349
        %v1035 = vunpack.c.l.b16 %v350
        %v1036 = vunpack.c.h.b16 %v350
        %v1037 = vunpack.c.l.b16 %v351
        %v1038 = vunpack.c.l.b16 %v352
        %v1039 = vunpack.c.h.b16 %v352
        %v1040 = vunpack.c.l.b16 %v353
        %v1041 = vunpack.c.h.b16 %v353
        %v1042 = vunpack.c.l.b16 %v354
        %v1043 = vunpack.c.h.b16 %v354
        %v1044 = vunpack.c.l.b16 %v355
        %v1045 = vunpack.c.h.b16 %v355
        %v1046 = vunpack.c.l.b16 %v356
        %v1047 = vunpack.c.h.b16 %v356
        %v1048 = vunpack.c.l.b16 %v357
        %v1049 = vunpack.c.h.b16 %v357
        %v1050 = vunpack.c.l.b16 %v358
        %v1051 = vunpack.c.h.b16 %v358
        %v1052 = vunpack.c.l.b16 %v359
        %v1053 = vunpack.c.h.b16 %v359
        %v1054 = vunpack.c.l.b16 %v360
        %v1055 = vunpack.c.h.b16 %v360
        %v1056 = vunpack.c.l.b16 %v361
        %v1057 = vunpack.c.h.b16 %v361
        %v1058 = vunpack.c.l.b16 %v362
        %v1059 = vunpack.c.h.b16 %v362
        %v1060 = vunpack.c.l.b16 %v363
        %v1061 = vunpack.c.h.b16 %v363
        %v1062 = vunpack.c.l.b16 %v364
        %v1063 = vunpack.c.h.b16 %v364
        %v1064 = vunpack.c.l.b16 %v365
        %v1065 = vunpack.c.h.b16 %v365
        %v1066 = vunpack.c.l.b16 %v366
        %v1067 = vunpack.c.h.b16 %v366
        %v1068 = vunpack.c.l.b16 %v367
        %v1069 = vunpack.c.h.b16 %v367
        %v1070 = vunpack.c.l.b16 %v368
        %v1071 = vunpack.c.h.b16 %v368
        %v1072 = vunpack.c.l.b16 %v369
        %v1073 = vunpack.c.h.b16 %v369
        %v1074 = vunpack.c.l.b16 %v370
        %v1075 = vpack.c.b16 %v1038, %v1001
        %v1076 = vpack.c.b16 %v1039, %v1002
        %v1077 = vpack.c.b16 %v1040, %v1003
        %v1078 = vpack.c.b16 %v1041, %v1004
        %v1079 = vpack.c.b16 %v1042, %v1005
        %v1080 = vpack.c.b16 %v1043, %v1006
        %v1081 = vpack.c.b16 %v1044, %v1007
        %v1082 = vpack.c.b16 %v1045, %v1008
        %v1083 = vpack.c.b16 %v1046, %v1009
        %v1084 = vpack.c.b16 %v1047, %v1010
        %v1085 = vpack.c.b16 %v1048, %v1011
        %v1086 = vpack.c.b16 %v1049, %v1012
        %v1087 = vpack.c.b16 %v1050, %v1013
        %v1088 = vpack.c.b16 %v1051, %v1014
        %v1089 = vpack.c.b16 %v1052, %v1015
        %v1090 = vpack.c.b16 %v1053, %v1016
        %v1091 = vpack.c.b16 %v1054, %v1017
        %v1092 = vpack.c.b16 %v1055, %v1018
        %v1093 = vpack.c.b16 %v1056, %v1019
        %v1094 = vpack.c.b16 %v1057, %v1020
        %v1095 = vpack.c.b16 %v1058, %v1021
        %v1096 = vpack.c.b16 %v1059, %v1022
        %v1097 = vpack.c.b16 %v1060, %v1023
        %v1098 = vpack.c.b16 %v1061, %v1024
        %v1099 = vpack.c.b16 %v1062, %v1025
        %v1100 = vpack.c.b16 %v1063, %v1026
        %v1101 = vpack.c.b16 %v1064, %v1027
        %v1102 = vpack.c.b16 %v1065, %v1028
        %v1103 = vpack.c.b16 %v1066, %v1029
        %v1104 = vpack.c.b16 %v1067, %v1030
        %v1105 = vpack.c.b16 %v1068, %v1031
        %v1106 = vpack.c.b16 %v1069, %v1032
        %v1107 = vpack.c.b16 %v1070, %v1033
        %v1108 = vpack.c.b16 %v1071, %v1034
        %v1109 = vpack.c.b16 %v1072, %v1035
        %v1110 = vpack.c.b16 %v1073, %v1036
        %v1111 = vpack.c.b16 %v1074, %v1037
        %v1741 = vunpack.c.l.b16 %v371
        %v1742 = vunpack.c.h.b16 %v371
        %v1743 = vunpack.c.l.b16 %v372
        %v1744 = vunpack.c.h.b16 %v372
        %v1745 = vunpack.c.l.b16 %v373
        %v1746 = vunpack.c.h.b16 %v373
        %v1747 = vunpack.c.l.b16 %v374
        %v1748 = vunpack.c.h.b16 %v374
        %v1749 = vunpack.c.l.b16 %v375
        %v1750 = vunpack.c.h.b16 %v375
        %v1751 = vunpack.c.l.b16 %v376
        %v1752 = vunpack.c.h.b16 %v376
        %v1753 = vunpack.c.l.b16 %v377
        %v1754 = vunpack.c.h.b16 %v377
        %v1755 = vunpack.c.l.b16 %v378
        %v1756 = vunpack.c.h.b16 %v378
        %v1757 = vunpack.c.l.b16 %v379
        %v1758 = vunpack.c.h.b16 %v379
        %v1759 = vunpack.c.l.b16 %v380
        %v1760 = vunpack.c.h.b16 %v380
        %v1761 = vunpack.c.l.b16 %v381
        %v1762 = vunpack.c.h.b16 %v381
        %v1763 = vunpack.c.l.b16 %v382
        %v1764 = vunpack.c.h.b16 %v382
        %v1765 = vunpack.c.l.b16 %v383
        %v1766 = vunpack.c.h.b16 %v383
        %v1767 = vunpack.c.l.b16 %v384
        %v1768 = vunpack.c.h.b16 %v384
        %v1769 = vunpack.c.l.b16 %v385
        %v1770 = vunpack.c.h.b16 %v385
        %v1771 = vunpack.c.l.b16 %v386
        %v1772 = vunpack.c.h.b16 %v386
        %v1773 = vunpack.c.l.b16 %v387
        %v1774 = vunpack.c.h.b16 %v387
        %v1775 = vunpack.c.l.b16 %v388
        %v1776 = vunpack.c.h.b16 %v388
        %v1777 = vunpack.c.l.b16 %v389
        %v1778 = vunpack.c.h.b16 %v389
        %v1779 = vunpack.c.l.b16 %v390
        %v1780 = vunpack.c.h.b16 %v390
        %v1781 = vunpack.c.l.b16 %v391
        %v1782 = vunpack.c.h.b16 %v391
        %v1783 = vunpack.c.l.b16 %v392
        %v1784 = vunpack.c.h.b16 %v392
        %v1785 = vunpack.c.l.b16 %v393
        %v1786 = vunpack.c.h.b16 %v393
        %v1787 = vunpack.c.l.b16 %v394
        %v1788 = vunpack.c.h.b16 %v394
        %v1789 = vunpack.c.l.b16 %v395
        %v1790 = vunpack.c.h.b16 %v395
        %v1791 = vunpack.c.l.b16 %v396
        %v1792 = vunpack.c.h.b16 %v396
        %v1793 = vunpack.c.l.b16 %v397
        %v1794 = vunpack.c.h.b16 %v397
        %v1795 = vunpack.c.l.b16 %v398
        %v1796 = vunpack.c.h.b16 %v398
        %v1797 = vunpack.c.l.b16 %v399
        %v1798 = vunpack.c.h.b16 %v399
        %v1799 = vunpack.c.l.b16 %v400
        %v1800 = vunpack.c.h.b16 %v400
        %v1801 = vunpack.c.l.b16 %v401
        %v1802 = vunpack.c.h.b16 %v401
        %v1803 = vunpack.c.l.b16 %v402
        %v1804 = vunpack.c.h.b16 %v402
        %v1805 = vunpack.c.l.b16 %v403
        %v1806 = vunpack.c.h.b16 %v403
        %v1807 = vunpack.c.l.b16 %v404
        %v1808 = vunpack.c.h.b16 %v404
        %v1809 = vunpack.c.l.b16 %v405
        %v1810 = vunpack.c.h.b16 %v405
        %v1811 = vunpack.c.l.b16 %v406
        %v1812 = vunpack.c.h.b16 %v406
        %v1813 = vunpack.c.l.b16 %v407
        %v1814 = vunpack.c.h.b16 %v407
        %v1815 = vunpack.c.l.b16 %v408
        %v1816 = vunpack.c.h.b16 %v408
        %v1817 = vunpack.c.l.b16 %v409
        %v1818 = vunpack.c.h.b16 %v409
        %v1819 = vunpack.c.l.b16 %v410
        %v1820 = vunpack.c.h.b16 %v410
        %v1821 = vunpack.c.l.b16 %v411
        %v1822 = vunpack.c.h.b16 %v411
        %v1823 = vunpack.c.l.b16 %v412
        %v1824 = vunpack.c.h.b16 %v412
        %v1825 = vunpack.c.l.b16 %v413
        %v1826 = vunpack.c.h.b16 %v413
        %v1827 = vunpack.c.l.b16 %v414
        %v1828 = vunpack.c.h.b16 %v414
        %v1829 = vunpack.c.l.b16 %v415
        %v1830 = vunpack.c.h.b16 %v415
        %v1831 = vunpack.c.l.b16 %v416
        %v1832 = vunpack.c.h.b16 %v416
        %v1833 = vunpack.c.l.b16 %v417
        %v1834 = vunpack.c.h.b16 %v417
        %v1835 = vunpack.c.l.b16 %v418
        %v1836 = vunpack.c.h.b16 %v418
        %v1837 = vunpack.c.l.b16 %v419
        %v1838 = vunpack.c.h.b16 %v419
        %v1839 = vunpack.c.l.b16 %v420
        %v1840 = vunpack.c.h.b16 %v420
        %v1841 = vunpack.c.l.b16 %v421
        %v1842 = vunpack.c.h.b16 %v421
        %v1843 = vunpack.c.l.b16 %v422
        %v1844 = vunpack.c.h.b16 %v422
        %v1845 = vunpack.c.l.b16 %v423
        %v1846 = vunpack.c.h.b16 %v423
        %v1847 = vunpack.c.l.b16 %v424
        %v1848 = vunpack.c.h.b16 %v424
        %v1849 = vunpack.c.l.b16 %v425
        %v1850 = vunpack.c.h.b16 %v425
        %v1851 = vunpack.c.l.b16 %v426
        %v1852 = vunpack.c.h.b16 %v426
        %v1853 = vunpack.c.l.b16 %v427
        %v1854 = vunpack.c.h.b16 %v427
        %v1855 = vunpack.c.l.b16 %v428
        %v1856 = vunpack.c.h.b16 %v428
        %v1857 = vunpack.c.l.b16 %v429
        %v1858 = vunpack.c.h.b16 %v429
        %v1859 = vunpack.c.l.b16 %v430
        %v1860 = vunpack.c.h.b16 %v430
        %v1861 = vunpack.c.l.b16 %v431
        %v1862 = vunpack.c.h.b16 %v431
        %v1863 = vunpack.c.l.b16 %v432
        %v1864 = vunpack.c.h.b16 %v432
        %v1865 = vunpack.c.l.b16 %v433
        %v1866 = vunpack.c.h.b16 %v433
        %v1867 = vunpack.c.l.b16 %v434
        %v1868 = vunpack.c.h.b16 %v434
        %v1869 = vunpack.c.l.b16 %v435
        %v1870 = vunpack.c.h.b16 %v435
        %v1871 = vunpack.c.l.b16 %v436
        %v1872 = vunpack.c.h.b16 %v436
        %v1873 = vunpack.c.l.b16 %v437
        %v1874 = vunpack.c.h.b16 %v437
        %v1875 = vunpack.c.l.b16 %v438
        %v1876 = vunpack.c.h.b16 %v438
        %v1877 = vunpack.c.l.b16 %v439
        %v1878 = vunpack.c.h.b16 %v439
        %v1879 = vunpack.c.l.b16 %v440
        %v1880 = vunpack.c.h.b16 %v440
        %v1881 = vunpack.c.l.b16 %v441
        %v1882 = vunpack.c.h.b16 %v441
        %v1883 = vunpack.c.l.b16 %v442
        %v1884 = vunpack.c.h.b16 %v442
        %v1885 = vunpack.c.l.b16 %v443
        %v1886 = vunpack.c.h.b16 %v443
        %v1887 = vunpack.c.l.b16 %v444
        %v1888 = vunpack.c.h.b16 %v444
        %v1889 = vunpack.c.l.b16 %v445
        %v1890 = vunpack.c.h.b16 %v445
        %v1891 = vunpack.c.l.b16 %v446
        %v1892 = vunpack.c.h.b16 %v446
        %v1893 = vunpack.c.l.b16 %v447
        %v1894 = vunpack.c.h.b16 %v447
        %v1895 = vunpack.c.l.b16 %v448
        %v1896 = vunpack.c.h.b16 %v448
        %v1897 = vunpack.c.l.b16 %v449
        %v1898 = vunpack.c.h.b16 %v449
        %v1899 = vunpack.c.l.b16 %v450
        %v1900 = vunpack.c.h.b16 %v450
        %v1901 = vunpack.c.l.b16 %v451
        %v1902 = vunpack.c.h.b16 %v451
        %v1903 = vunpack.c.l.b16 %v452
        %v1904 = vunpack.c.h.b16 %v452
        %v1905 = vunpack.c.l.b16 %v453
        %v1906 = vunpack.c.h.b16 %v453
        %v1907 = vunpack.c.l.b16 %v454
        %v1908 = vunpack.c.h.b16 %v454
        %v1909 = vunpack.c.l.b16 %v455
        %v1910 = vunpack.c.h.b16 %v455
        %v1911 = vunpack.c.l.b16 %v456
        %v1912 = vunpack.c.h.b16 %v456
        %v1913 = vunpack.c.l.b16 %v457
        %v1914 = vunpack.c.h.b16 %v457
        %v1915 = vunpack.c.l.b16 %v458
        %v1916 = vunpack.c.h.b16 %v458
        %v1917 = vunpack.c.l.b16 %v459
        %v1918 = vunpack.c.h.b16 %v459
        %v1919 = vunpack.c.l.b16 %v460
        %v1920 = vunpack.c.h.b16 %v460
        %v1921 = vunpack.c.l.b16 %v461
        %v1922 = vunpack.c.h.b16 %v461
        %v1923 = vunpack.c.l.b16 %v462
        %v1924 = vunpack.c.h.b16 %v462
        %v1925 = vunpack.c.l.b16 %v463
        %v1926 = vunpack.c.h.b16 %v463
        %v1927 = vunpack.c.l.b16 %v464
        %v1928 = vunpack.c.h.b16 %v464
        %v1929 = vunpack.c.l.b16 %v465
        %v1930 = vunpack.c.h.b16 %v465
        %v1931 = vunpack.c.l.b16 %v466
        %v1932 = vunpack.c.h.b16 %v466
        %v1933 = vunpack.c.l.b16 %v467
        %v1934 = vunpack.c.h.b16 %v467
        %v1935 = vunpack.c.l.b16 %v468
        %v1936 = vunpack.c.h.b16 %v468
        %v1937 = vunpack.c.l.b16 %v469
        %v1938 = vunpack.c.h.b16 %v469
        %v1939 = vunpack.c.l.b16 %v470
        %v1940 = vunpack.c.h.b16 %v470
        %v1941 = vunpack.c.l.b16 %v471
        %v1942 = vunpack.c.h.b16 %v471
        %v1943 = vunpack.c.l.b16 %v472
        %v1944 = vunpack.c.h.b16 %v472
        %v1945 = vunpack.c.l.b16 %v473
        %v1946 = vunpack.c.h.b16 %v473
        %v1947 = vunpack.c.l.b16 %v474
        %v1948 = vunpack.c.h.b16 %v474
        %v1949 = vunpack.c.l.b16 %v475
        %v1950 = vunpack.c.h.b16 %v475
        %v1951 = vunpack.c.l.b16 %v476
        %v1952 = vunpack.c.h.b16 %v476
        %v1953 = vunpack.c.l.b16 %v477
        %v1954 = vunpack.c.h.b16 %v477
        %v1955 = vunpack.c.l.b16 %v478
        %v1956 = vunpack.c.h.b16 %v478
        %v1957 = vunpack.c.l.b16 %v479
        %v1958 = vunpack.c.h.b16 %v479
        %v1959 = vunpack.c.l.b16 %v480
        %v1960 = vunpack.c.h.b16 %v480
        %v1961 = vunpack.c.l.b16 %v481
        %v1962 = vunpack.c.h.b16 %v481
        %v1963 = vunpack.c.l.b16 %v482
        %v1964 = vunpack.c.h.b16 %v482
        %v1965 = vunpack.c.l.b16 %v483
        %v1966 = vunpack.c.h.b16 %v483
        %v1967 = vunpack.c.l.b16 %v484
        %v1968 = vunpack.c.h.b16 %v484
        %v1969 = vunpack.c.l.b16 %v485
        %v1970 = vunpack.c.h.b16 %v485
        %v1971 = vunpack.c.l.b16 %v486
        %v1972 = vunpack.c.h.b16 %v486
        %v1973 = vunpack.c.l.b16 %v487
        %v1974 = vunpack.c.h.b16 %v487
        %v1975 = vunpack.c.l.b16 %v488
        %v1976 = vunpack.c.h.b16 %v488
        %v1977 = vunpack.c.l.b16 %v489
        %v1978 = vunpack.c.h.b16 %v489
        %v1979 = vunpack.c.l.b16 %v490
        %v1980 = vunpack.c.h.b16 %v490
        %v1981 = vunpack.c.l.b16 %v491
        %v1982 = vunpack.c.h.b16 %v491
        %v1983 = vunpack.c.l.b16 %v492
        %v1984 = vunpack.c.h.b16 %v492
        %v1985 = vunpack.c.l.b16 %v493
        %v1986 = vunpack.c.h.b16 %v493
        %v1987 = vunpack.c.l.b16 %v494
        %v1988 = vunpack.c.h.b16 %v494
        %v1989 = vunpack.c.l.b16 %v495
        %v1990 = vunpack.c.h.b16 %v495
        %v1991 = vunpack.c.l.b16 %v496
        %v1992 = vunpack.c.h.b16 %v496
        %v1993 = vunpack.c.l.b16 %v497
        %v1994 = vunpack.c.h.b16 %v497
        %v1995 = vunpack.c.l.b16 %v498
        %v1996 = vunpack.c.h.b16 %v498
        %v1997 = vunpack.c.l.b16 %v499
        %v1998 = vunpack.c.h.b16 %v499
        %v1999 = vunpack.c.l.b16 %v500
        %v2000 = vunpack.c.h.b16 %v500
        %v2001 = vunpack.c.l.b16 %v501
        %v2002 = vunpack.c.h.b16 %v501
        %v2003 = vunpack.c.l.b16 %v502
        %v2004 = vunpack.c.h.b16 %v502
        %v2005 = vunpack.c.l.b16 %v503
        %v2006 = vunpack.c.h.b16 %v503
        %v2007 = vunpack.c.l.b16 %v504
        %v2008 = vunpack.c.h.b16 %v504
        %v2009 = vunpack.c.l.b16 %v505
        %v2010 = vunpack.c.h.b16 %v505
        %v2011 = vunpack.c.l.b16 %v506
        %v2012 = vunpack.c.h.b16 %v506
        %v2013 = vunpack.c.l.b16 %v507
        %v2014 = vunpack.c.h.b16 %v507
        %v2015 = vunpack.c.l.b16 %v508
        %v2016 = vunpack.c.h.b16 %v508
        %v2017 = vunpack.c.l.b16 %v509
        %v2018 = vunpack.c.h.b16 %v509
        %v2019 = vunpack.c.l.b16 %v510
        %v2020 = vunpack.c.h.b16 %v510
        %v2021 = vunpack.c.l.b16 %v511
        %v2022 = vunpack.c.h.b16 %v511
        %v2023 = vunpack.c.l.b16 %v512
        %v2024 = vunpack.c.h.b16 %v512
        %v2025 = vunpack.c.l.b16 %v513
        %v2026 = vunpack.c.h.b16 %v513
        %v2027 = vunpack.c.l.b16 %v514
        %v2028 = vunpack.c.h.b16 %v514
        %v2029 = vunpack.c.l.b16 %v515
        %v2030 = vunpack.c.h.b16 %v515
        %v2031 = vunpack.c.l.b16 %v516
        %v2032 = vunpack.c.h.b16 %v516
        %v2033 = vunpack.c.l.b16 %v517
        %v2034 = vunpack.c.h.b16 %v517
        %v2035 = vunpack.c.l.b16 %v518
        %v2036 = vunpack.c.h.b16 %v518
        %v2037 = vunpack.c.l.b16 %v519
        %v2038 = vunpack.c.h.b16 %v519
        %v2039 = vunpack.c.l.b16 %v520
        %v2040 = vunpack.c.h.b16 %v520
        %v2041 = vunpack.c.l.b16 %v521
        %v2042 = vunpack.c.h.b16 %v521
        %v2043 = vunpack.c.l.b16 %v522
        %v2044 = vunpack.c.h.b16 %v522
        %v2045 = vunpack.c.l.b16 %v523
        %v2046 = vunpack.c.h.b16 %v523
        %v2047 = vunpack.c.l.b16 %v524
        %v2048 = vunpack.c.h.b16 %v524
        %v2049 = vunpack.c.l.b16 %v525
        %v2050 = vunpack.c.h.b16 %v525
        %v2051 = vunpack.c.l.b16 %v526
        %v2052 = vunpack.c.h.b16 %v526
        %v2053 = vunpack.c.l.b16 %v527
        %v2054 = vunpack.c.h.b16 %v527
        %v2055 = vunpack.c.l.b16 %v528
        %v2056 = vunpack.c.h.b16 %v528
        %v2057 = vunpack.c.l.b16 %v529
        %v2058 = vunpack.c.h.b16 %v529
        %v2059 = vunpack.c.l.b16 %v530
        %v2060 = vunpack.c.h.b16 %v530
        %v2061 = vunpack.c.l.b16 %v531
        %v2062 = vunpack.c.h.b16 %v531
        %v2063 = vunpack.c.l.b16 %v532
        %v2064 = vunpack.c.h.b16 %v532
        %v2065 = vunpack.c.l.b16 %v533
        %v2066 = vunpack.c.h.b16 %v533
        %v2067 = vunpack.c.l.b16 %v534
        %v2068 = vunpack.c.h.b16 %v534
        %v2069 = vunpack.c.l.b16 %v535
        %v2070 = vunpack.c.h.b16 %v535
        %v2071 = vunpack.c.l.b16 %v536
        %v2072 = vunpack.c.h.b16 %v536
        %v2073 = vunpack.c.l.b16 %v537
        %v2074 = vunpack.c.h.b16 %v537
        %v2075 = vunpack.c.l.b16 %v538
        %v2076 = vunpack.c.h.b16 %v538
        %v2077 = vunpack.c.l.b16 %v539
        %v2078 = vunpack.c.h.b16 %v539
        %v2079 = vunpack.c.l.b16 %v540
        %v2080 = vunpack.c.h.b16 %v540
        %v2081 = vunpack.c.l.b16 %v541
        %v2082 = vunpack.c.h.b16 %v541
        %v2083 = vunpack.c.l.b16 %v542
        %v2084 = vunpack.c.h.b16 %v542
        %v2085 = vunpack.c.l.b16 %v543
        %v2086 = vunpack.c.h.b16 %v543
        %v2087 = vunpack.c.l.b16 %v544
        %v2088 = vunpack.c.h.b16 %v544
        %v2089 = vunpack.c.l.b16 %v545
        %v2090 = vunpack.c.h.b16 %v545
        %v2091 = vunpack.c.l.b16 %v546
        %v2092 = vunpack.c.h.b16 %v546
        %v2093 = vunpack.c.l.b16 %v547
        %v2094 = vunpack.c.h.b16 %v547
        %v2095 = vunpack.c.l.b16 %v548
        %v2096 = vunpack.c.h.b16 %v548
        %v2097 = vunpack.c.l.b16 %v549
        %v2098 = vunpack.c.h.b16 %v549
        %v2099 = vunpack.c.l.b16 %v550
        %v2100 = vunpack.c.h.b16 %v550
        %v2101 = vunpack.c.l.b16 %v551
        %v2102 = vunpack.c.h.b16 %v551
        %v2103 = vunpack.c.l.b16 %v552
        %v2104 = vunpack.c.h.b16 %v552
        %v2105 = vunpack.c.l.b16 %v553
        %v2106 = vunpack.c.h.b16 %v553
        %v2107 = vunpack.c.l.b16 %v554
        %v2108 = vunpack.c.h.b16 %v554
        %v2109 = vunpack.c.l.b16 %v555
        %v2110 = vunpack.c.h.b16 %v555
        %v2111 = vunpack.c.l.b16 %v556
        %v2112 = vunpack.c.h.b16 %v556
        %v2113 = vunpack.c.l.b16 %v557
        %v2114 = vunpack.c.h.b16 %v557
        %v2115 = vunpack.c.l.b16 %v558
        %v2116 = vunpack.c.h.b16 %v558
        %v2117 = vunpack.c.l.b16 %v559
        %v2118 = vunpack.c.h.b16 %v559
        %v2119 = vunpack.c.l.b16 %v560
        %v2120 = vunpack.c.h.b16 %v560
        %v2121 = vunpack.c.l.b16 %v561
        %v2122 = vunpack.c.h.b16 %v561
        %v2123 = vunpack.c.l.b16 %v562
        %v2124 = vunpack.c.h.b16 %v562
        %v2125 = vunpack.c.l.b16 %v563
        %v2126 = vunpack.c.h.b16 %v563
        %v2127 = vunpack.c.l.b16 %v564
        %v2128 = vunpack.c.h.b16 %v564
        %v2129 = vunpack.c.l.b16 %v565
        %v2130 = vunpack.c.h.b16 %v565
        %v2131 = vunpack.c.l.b16 %v566
        %v2132 = vunpack.c.h.b16 %v566
        %v2133 = vunpack.c.l.b16 %v567
        %v2134 = vunpack.c.h.b16 %v567
        %v2135 = vunpack.c.l.b16 %v568
        %v2136 = vunpack.c.h.b16 %v568
        %v2137 = vunpack.c.l.b16 %v569
        %v2138 = vunpack.c.h.b16 %v569
        %v2139 = vunpack.c.l.b16 %v570
        %v2140 = vunpack.c.h.b16 %v570
        %v2141 = vunpack.c.l.b16 %v571
        %v2142 = vunpack.c.h.b16 %v571
        %v2143 = vunpack.c.l.b16 %v572
        %v2144 = vunpack.c.h.b16 %v572
        %v2145 = vunpack.c.l.b16 %v573
        %v2146 = vunpack.c.h.b16 %v573
        %v2147 = vunpack.c.l.b16 %v574
        %v2148 = vunpack.c.h.b16 %v574
        %v2149 = vunpack.c.l.b16 %v575
        %v2150 = vunpack.c.h.b16 %v575
        %v2151 = vunpack.c.l.b16 %v576
        %v2152 = vunpack.c.h.b16 %v576
        %v2153 = vunpack.c.l.b16 %v577
        %v2154 = vunpack.c.h.b16 %v577
        %v2155 = vunpack.c.l.b16 %v578
        %v2156 = vunpack.c.h.b16 %v578
        %v2157 = vunpack.c.l.b16 %v579
        %v2158 = vunpack.c.h.b16 %v579
        %v2159 = vunpack.c.l.b16 %v580
        %v2160 = vunpack.c.h.b16 %v580
        %v2161 = vunpack.c.l.b16 %v581
        %v2162 = vunpack.c.h.b16 %v581
        %v2163 = vunpack.c.l.b16 %v582
        %v2164 = vunpack.c.h.b16 %v582
        %v2165 = vunpack.c.l.b16 %v583
        %v2166 = vunpack.c.h.b16 %v583
        %v2167 = vunpack.c.l.b16 %v584
        %v2168 = vunpack.c.h.b16 %v584
        %v2169 = vunpack.c.l.b16 %v585
        %v2170 = vunpack.c.h.b16 %v585
        %v2171 = vunpack.c.l.b16 %v586
        %v2172 = vunpack.c.h.b16 %v586
        %v2173 = vunpack.c.l.b16 %v587
        %v2174 = vunpack.c.h.b16 %v587
        %v2175 = vunpack.c.l.b16 %v588
        %v2176 = vunpack.c.h.b16 %v588
        %v2177 = vunpack.c.l.b16 %v589
        %v2178 = vunpack.c.h.b16 %v589
        %v2179 = vunpack.c.l.b16 %v590
        %v2180 = vunpack.c.h.b16 %v590
        %v2181 = vunpack.c.l.b16 %v591
        %v2182 = vunpack.c.h.b16 %v591
        %v2183 = vunpack.c.l.b16 %v592
        %v2184 = vunpack.c.h.b16 %v592
        %v2185 = vunpack.c.l.b16 %v593
        %v2186 = vunpack.c.h.b16 %v593
        %v2187 = vunpack.c.l.b16 %v594
        %v2188 = vunpack.c.h.b16 %v594
        %v2189 = vunpack.c.l.b16 %v595
        %v2190 = vunpack.c.h.b16 %v595
        %v2191 = vunpack.c.l.b16 %v596
        %v2192 = vunpack.c.h.b16 %v596
        %v2193 = vunpack.c.l.b16 %v597
        %v2194 = vunpack.c.h.b16 %v597
        %v2195 = vunpack.c.l.b16 %v598
        %v2196 = vunpack.c.h.b16 %v598
        %v2197 = vunpack.c.l.b16 %v599
        %v2198 = vunpack.c.h.b16 %v599
        %v2199 = vunpack.c.l.b16 %v600
        %v2200 = vunpack.c.h.b16 %v600
        %v2201 = vunpack.c.l.b16 %v601
        %v2202 = vunpack.c.h.b16 %v601
        %v2203 = vunpack.c.l.b16 %v602
        %v2204 = vunpack.c.h.b16 %v602
        %v2205 = vunpack.c.l.b16 %v603
        %v2206 = vunpack.c.h.b16 %v603
        %v2207 = vunpack.c.l.b16 %v604
        %v2208 = vunpack.c.h.b16 %v604
        %v2209 = vunpack.c.l.b16 %v605
        %v2210 = vunpack.c.h.b16 %v605
        %v2211 = vunpack.c.l.b16 %v606
        %v2212 = vunpack.c.h.b16 %v606
        %v2213 = vunpack.c.l.b16 %v607
        %v2214 = vunpack.c.h.b16 %v607
        %v2215 = vunpack.c.l.b16 %v608
        %v2216 = vunpack.c.h.b16 %v608
        %v2217 = vunpack.c.l.b16 %v609
        %v2218 = vunpack.c.h.b16 %v609
        %v2219 = vunpack.c.l.b16 %v610
        %v2220 = vunpack.c.h.b16 %v610
        %v2221 = vunpack.c.l.b16 %v611
        %v2222 = vunpack.c.h.b16 %v611
        %v2223 = vunpack.c.l.b16 %v612
        %v2224 = vunpack.c.h.b16 %v612
        %v2225 = vunpack.c.l.b16 %v613
        %v2226 = vunpack.c.h.b16 %v613
        %v2227 = vunpack.c.l.b16 %v614
        %v2228 = vunpack.c.h.b16 %v614
        %v2229 = vunpack.c.l.b16 %v615
        %v2230 = vunpack.c.h.b16 %v615
        %v2231 = vunpack.c.l.b16 %v616
        %v2232 = vunpack.c.h.b16 %v616
        %v2233 = vunpack.c.l.b16 %v617
        %v2234 = vunpack.c.h.b16 %v617
        %v2235 = vunpack.c.l.b16 %v618
        %v2236 = vunpack.c.h.b16 %v618
        %v2237 = vunpack.c.l.b16 %v619
        %v2238 = vunpack.c.h.b16 %v619
        %v2239 = vunpack.c.l.b16 %v620
        %v2240 = vunpack.c.h.b16 %v620
        %v2241 = vunpack.c.l.b16 %v621
        %v2242 = vunpack.c.h.b16 %v621
        %v2243 = vunpack.c.l.b16 %v622
        %v2244 = vunpack.c.h.b16 %v622
        %v2245 = vunpack.c.l.b16 %v623
        %v2246 = vunpack.c.h.b16 %v623
        %v2247 = vunpack.c.l.b16 %v624
        %v2248 = vunpack.c.h.b16 %v624
        %v2249 = vunpack.c.l.b16 %v625
        %v2250 = vunpack.c.h.b16 %v625
        %v2251 = vunpack.c.l.b16 %v626
        %v2252 = vunpack.c.h.b16 %v626
        %v2253 = vunpack.c.l.b16 %v627
        %v2254 = vunpack.c.h.b16 %v627
        %v2255 = vunpack.c.l.b16 %v628
        %v2256 = vunpack.c.h.b16 %v628
        %v2257 = vunpack.c.l.b16 %v629
        %v2258 = vunpack.c.h.b16 %v629
        %v2259 = vunpack.c.l.b16 %v630
        %v2260 = vunpack.c.h.b16 %v630
        %v2261 = vunpack.c.l.b16 %v631
        %v2262 = vunpack.c.h.b16 %v631
        %v2263 = vunpack.c.l.b16 %v632
        %v2264 = vunpack.c.h.b16 %v632
        %v2265 = vunpack.c.l.b16 %v633
        %v2266 = vunpack.c.h.b16 %v633
        %v2267 = vunpack.c.l.b16 %v634
        %v2268 = vunpack.c.h.b16 %v634
        %v2269 = vunpack.c.l.b16 %v635
        %v2270 = vunpack.c.h.b16 %v635
        %v2271 = vunpack.c.l.b16 %v636
        %v2272 = vunpack.c.h.b16 %v636
        %v2273 = vunpack.c.l.b16 %v637
        %v2274 = vunpack.c.h.b16 %v637
        %v2275 = vunpack.c.l.b16 %v638
        %v2276 = vunpack.c.h.b16 %v638
        %v2277 = vunpack.c.l.b16 %v639
        %v2278 = vunpack.c.h.b16 %v639
        %v2279 = vunpack.c.l.b16 %v640
        %v2280 = vunpack.c.h.b16 %v640
        %v2281 = vunpack.c.l.b16 %v641
        %v2282 = vunpack.c.h.b16 %v641
        %v2283 = vunpack.c.l.b16 %v642
        %v2284 = vunpack.c.h.b16 %v642
        %v2285 = vunpack.c.l.b16 %v643
        %v2286 = vunpack.c.h.b16 %v643
        %v2287 = vunpack.c.l.b16 %v644
        %v2288 = vunpack.c.h.b16 %v644
        %v2289 = vunpack.c.l.b16 %v645
        %v2290 = vunpack.c.h.b16 %v645
        %v2291 = vunpack.c.l.b16 %v646
        %v2292 = vunpack.c.h.b16 %v646
        %v2293 = vunpack.c.l.b16 %v647
        %v2294 = vunpack.c.h.b16 %v647
        %v2295 = vunpack.c.l.b16 %v648
        %v2296 = vunpack.c.h.b16 %v648
        %v2297 = vunpack.c.l.b16 %v649
        %v2298 = vunpack.c.h.b16 %v649
        %v2299 = vunpack.c.l.b16 %v650
        %v2300 = vunpack.c.h.b16 %v650
        %v2301 = vunpack.c.l.b16 %v651
        %v2302 = vunpack.c.h.b16 %v651
        %v2303 = vunpack.c.l.b16 %v652
        %v2304 = vunpack.c.h.b16 %v652
        %v2305 = vunpack.c.l.b16 %v653
        %v2306 = vunpack.c.h.b16 %v653
        %v2307 = vunpack.c.l.b16 %v654
        %v2308 = vunpack.c.h.b16 %v654
        %v2309 = vunpack.c.l.b16 %v655
        %v2310 = vunpack.c.h.b16 %v655
        %v2311 = vunpack.c.l.b16 %v656
        %v2312 = vunpack.c.h.b16 %v656
        %v2313 = vunpack.c.l.b16 %v657
        %v2314 = vunpack.c.h.b16 %v657
        %v2315 = vunpack.c.l.b16 %v658
        %v2316 = vunpack.c.h.b16 %v658
        %v2317 = vunpack.c.l.b16 %v659
        %v2318 = vunpack.c.h.b16 %v659
        %v2319 = vunpack.c.l.b16 %v660
        %v2320 = vunpack.c.h.b16 %v660
        %v2321 = vunpack.c.l.b16 %v661
        %v2322 = vunpack.c.h.b16 %v661
        %v2323 = vunpack.c.l.b16 %v662
        %v2324 = vunpack.c.h.b16 %v662
        %v2325 = vunpack.c.l.b16 %v663
        %v2326 = vunpack.c.h.b16 %v663
        %v2327 = vunpack.c.l.b16 %v664
        %v2328 = vunpack.c.h.b16 %v664
        %v2329 = vunpack.c.l.b16 %v665
        %v2330 = vunpack.c.h.b16 %v665
        %v2331 = vunpack.c.l.b16 %v666
        %v2332 = vunpack.c.h.b16 %v666
        %v2333 = vunpack.c.l.b16 %v667
        %v2334 = vunpack.c.h.b16 %v667
        %v2335 = vunpack.c.l.b16 %v668
        %v2336 = vunpack.c.h.b16 %v668
        %v2337 = vunpack.c.l.b16 %v669
        %v2338 = vunpack.c.h.b16 %v669
        %v2339 = vunpack.c.l.b16 %v670
        %v2340 = vunpack.c.h.b16 %v670
        %v2341 = vunpack.c.l.b16 %v671
        %v2342 = vunpack.c.h.b16 %v671
        %v2343 = vunpack.c.l.b16 %v672
        %v2344 = vunpack.c.h.b16 %v672
        %v2345 = vunpack.c.l.b16 %v673
        %v2346 = vunpack.c.h.b16 %v673
        %v2347 = vunpack.c.l.b16 %v674
        %v2348 = vunpack.c.h.b16 %v674
        %v2349 = vunpack.c.l.b16 %v675
        %v2350 = vunpack.c.h.b16 %v675
        %v2351 = vunpack.c.l.b16 %v676
        %v2352 = vunpack.c.h.b16 %v676
        %v2353 = vunpack.c.l.b16 %v677
        %v2354 = vunpack.c.h.b16 %v677
        %v2355 = vunpack.c.l.b16 %v678
        %v2356 = vunpack.c.h.b16 %v678
        %v2357 = vunpack.c.l.b16 %v679
        %v2358 = vunpack.c.h.b16 %v679
        %v2359 = vunpack.c.l.b16 %v680
        %v2360 = vunpack.c.h.b16 %v680
        %v2361 = vunpack.c.l.b16 %v681
        %v2362 = vunpack.c.h.b16 %v681
        %v2363 = vunpack.c.l.b16 %v682
        %v2364 = vunpack.c.h.b16 %v682
        %v2365 = vunpack.c.l.b16 %v683
        %v2366 = vunpack.c.h.b16 %v683
        %v2367 = vunpack.c.l.b16 %v684
        %v2368 = vunpack.c.h.b16 %v684
        %v2369 = vunpack.c.l.b16 %v685
        %v2370 = vunpack.c.h.b16 %v685
        %v2371 = vunpack.c.l.b16 %v686
        %v2372 = vunpack.c.h.b16 %v686
        %v2373 = vunpack.c.l.b16 %v687
        %v2374 = vunpack.c.h.b16 %v687
        %v2375 = vunpack.c.l.b16 %v688
        %v2376 = vunpack.c.h.b16 %v688
        %v2377 = vunpack.c.l.b16 %v689
        %v2378 = vunpack.c.h.b16 %v689
        %v2379 = vunpack.c.l.b16 %v690
        %v2380 = vunpack.c.h.b16 %v690
        %v2381 = vunpack.c.l.b16 %v691
        %v2382 = vunpack.c.h.b16 %v691
        %v2383 = vunpack.c.l.b16 %v692
        %v2384 = vunpack.c.h.b16 %v692
        %v2385 = vunpack.c.l.b16 %v693
        %v2386 = vunpack.c.h.b16 %v693
        %v2387 = vunpack.c.l.b16 %v694
        %v2388 = vunpack.c.h.b16 %v694
        %v2389 = vunpack.c.l.b16 %v695
        %v2390 = vunpack.c.h.b16 %v695
        %v2391 = vunpack.c.l.b16 %v696
        %v2392 = vunpack.c.h.b16 %v696
        %v2393 = vunpack.c.l.b16 %v697
        %v2394 = vunpack.c.h.b16 %v697
        %v2395 = vunpack.c.l.b16 %v698
        %v2396 = vunpack.c.h.b16 %v698
        %v2397 = vunpack.c.l.b16 %v699
        %v2398 = vunpack.c.h.b16 %v699
        %v2399 = vunpack.c.l.b16 %v700
        %v2400 = vunpack.c.h.b16 %v700
        %v2401 = vunpack.c.l.b16 %v701
        %v2402 = vunpack.c.h.b16 %v701
        %v2403 = vunpack.c.l.b16 %v702
        %v2404 = vunpack.c.h.b16 %v702
        %v2405 = vunpack.c.l.b16 %v703
        %v2406 = vunpack.c.h.b16 %v703
        %v2407 = vunpack.c.l.b16 %v704
        %v2408 = vunpack.c.h.b16 %v704
        %v2409 = vunpack.c.l.b16 %v705
        %v2410 = vunpack.c.h.b16 %v705
        %v2411 = vunpack.c.l.b16 %v706
        %v2412 = vunpack.c.h.b16 %v706
        %v2413 = vunpack.c.l.b16 %v707
        %v2414 = vunpack.c.h.b16 %v707
        %v2415 = vunpack.c.l.b16 %v708
        %v2416 = vunpack.c.h.b16 %v708
        %v2417 = vunpack.c.l.b16 %v709
        %v2418 = vunpack.c.h.b16 %v709
        %v2419 = vunpack.c.l.b16 %v710
        %v2420 = vunpack.c.h.b16 %v710
        %v2421 = vunpack.c.l.b16 %v711
        %v2422 = vunpack.c.h.b16 %v711
        %v2423 = vunpack.c.l.b16 %v712
        %v2424 = vunpack.c.h.b16 %v712
        %v2425 = vunpack.c.l.b16 %v713
        %v2426 = vunpack.c.h.b16 %v713
        %v2427 = vunpack.c.l.b16 %v714
        %v2428 = vunpack.c.h.b16 %v714
        %v2429 = vunpack.c.l.b16 %v715
        %v2430 = vunpack.c.h.b16 %v715
        %v2431 = vunpack.c.l.b16 %v716
        %v2432 = vunpack.c.h.b16 %v716
        %v2433 = vunpack.c.l.b16 %v717
        %v2434 = vunpack.c.h.b16 %v717
        %v2435 = vunpack.c.l.b16 %v718
        %v2436 = vunpack.c.h.b16 %v718
        %v2437 = vunpack.c.l.b16 %v719
        %v2438 = vunpack.c.h.b16 %v719
        %v2439 = vunpack.c.l.b16 %v720
        %v2440 = vunpack.c.h.b16 %v720
        %v2441 = vunpack.c.l.b16 %v721
        %v2442 = vunpack.c.h.b16 %v721
        %v2443 = vunpack.c.l.b16 %v722
        %v2444 = vunpack.c.h.b16 %v722
        %v2445 = vunpack.c.l.b16 %v723
        %v2446 = vunpack.c.h.b16 %v723
        %v2447 = vunpack.c.l.b16 %v724
        %v2448 = vunpack.c.h.b16 %v724
        %v2449 = vunpack.c.l.b16 %v725
        %v2450 = vunpack.c.h.b16 %v725
        %v2451 = vunpack.c.l.b16 %v726
        %v2452 = vunpack.c.h.b16 %v726
        %v2453 = vunpack.c.l.b16 %v727
        %v2454 = vunpack.c.h.b16 %v727
        %v2455 = vunpack.c.l.b16 %v728
        %v2456 = vunpack.c.h.b16 %v728
        %v2457 = vunpack.c.l.b16 %v729
        %v2458 = vunpack.c.h.b16 %v729
        %v2459 = vunpack.c.l.b16 %v730
        %v2460 = vunpack.c.h.b16 %v730
        %v2461 = vunpack.c.l.b16 %v731
        %v2462 = vunpack.c.h.b16 %v731
        %v2463 = vunpack.c.l.b16 %v732
        %v2464 = vunpack.c.h.b16 %v732
        %v2465 = vunpack.c.l.b16 %v733
        %v2466 = vunpack.c.h.b16 %v733
        %v2467 = vunpack.c.l.b16 %v734
        %v2468 = vunpack.c.h.b16 %v734
        %v2469 = vunpack.c.l.b16 %v735
        %v2470 = vunpack.c.h.b16 %v735
        %v2471 = vunpack.c.l.b16 %v736
        %v2472 = vunpack.c.h.b16 %v736
        %v2473 = vunpack.c.l.b16 %v737
        %v2474 = vunpack.c.h.b16 %v737
        %v2475 = vunpack.c.l.b16 %v738
        %v2476 = vunpack.c.h.b16 %v738
        %v2477 = vunpack.c.l.b16 %v739
        %v2478 = vunpack.c.h.b16 %v739
        %v2479 = vunpack.c.l.b16 %v740
        %v2480 = vunpack.c.h.b16 %v740
        %v2481 = vunpack.c.l.b16 %v741
        %v2482 = vunpack.c.h.b16 %v741
        %v2483 = vunpack.c.l.b16 %v742
        %v2484 = vunpack.c.h.b16 %v742
        %v2485 = vunpack.c.l.b16 %v743
        %v2486 = vunpack.c.h.b16 %v743
        %v2487 = vunpack.c.l.b16 %v744
        %v2488 = vunpack.c.h.b16 %v744
        %v2489 = vunpack.c.l.b16 %v745
        %v2490 = vunpack.c.h.b16 %v745
        %v2491 = vunpack.c.l.b16 %v746
        %v2492 = vunpack.c.h.b16 %v746
        %v2493 = vunpack.c.l.b16 %v747
        %v2494 = vunpack.c.h.b16 %v747
        %v2495 = vunpack.c.l.b16 %v748
        %v2496 = vunpack.c.h.b16 %v748
        %v2497 = vunpack.c.l.b16 %v749
        %v2498 = vunpack.c.h.b16 %v749
        %v2499 = vunpack.c.l.b16 %v750
        %v2500 = vunpack.c.h.b16 %v750
        %v2501 = vunpack.c.l.b16 %v751
        %v2502 = vunpack.c.h.b16 %v751
        %v2503 = vunpack.c.l.b16 %v752
        %v2504 = vunpack.c.h.b16 %v752
        %v2505 = vunpack.c.l.b16 %v753
        %v2506 = vunpack.c.h.b16 %v753
        %v2507 = vunpack.c.l.b16 %v754
        %v2508 = vunpack.c.h.b16 %v754
        %v2509 = vunpack.c.l.b16 %v755
        %v2510 = vunpack.c.h.b16 %v755
        %v2511 = vunpack.c.l.b16 %v756
        %v2512 = vunpack.c.h.b16 %v756
        %v2513 = vunpack.c.l.b16 %v757
        %v2514 = vunpack.c.h.b16 %v757
        %v2515 = vunpack.c.l.b16 %v758
        %v2516 = vunpack.c.h.b16 %v758
        %v2517 = vunpack.c.l.b16 %v759
        %v2518 = vunpack.c.h.b16 %v759
        %v2519 = vunpack.c.l.b16 %v760
        %v2520 = vunpack.c.h.b16 %v760
        %v2521 = vunpack.c.l.b16 %v761
        %v2522 = vunpack.c.h.b16 %v761
        %v2523 = vunpack.c.l.b16 %v762
        %v2524 = vunpack.c.h.b16 %v762
        %v2525 = vunpack.c.l.b16 %v763
        %v2526 = vunpack.c.h.b16 %v763
        %v2527 = vunpack.c.l.b16 %v764
        %v2528 = vunpack.c.h.b16 %v764
        %v2529 = vunpack.c.l.b16 %v765
        %v2530 = vunpack.c.h.b16 %v765
        %v2531 = vunpack.c.l.b16 %v766
        %v2532 = vunpack.c.h.b16 %v766
        %v2533 = vunpack.c.l.b16 %v767
        %v2534 = vunpack.c.h.b16 %v767
        %v2535 = vunpack.c.l.b16 %v768
        %v2536 = vunpack.c.h.b16 %v768
        %v2537 = vunpack.c.l.b16 %v769
        %v2538 = vunpack.c.h.b16 %v769
        %v2539 = vunpack.c.l.b16 %v770
        %v2540 = vunpack.c.h.b16 %v770
        %v2541 = vunpack.c.l.b16 %v771
        %v2542 = vunpack.c.h.b16 %v771
        %v2543 = vunpack.c.l.b16 %v772
        %v2544 = vunpack.c.h.b16 %v772
        %v2545 = vunpack.c.l.b16 %v773
        %v2546 = vunpack.c.h.b16 %v773
        %v2547 = vunpack.c.l.b16 %v774
        %v2548 = vunpack.c.h.b16 %v774
        %v2549 = vunpack.c.l.b16 %v775
        %v2550 = vunpack.c.h.b16 %v775
        %v2551 = vunpack.c.l.b16 %v776
        %v2552 = vunpack.c.h.b16 %v776
        %v2553 = vunpack.c.l.b16 %v777
        %v2554 = vunpack.c.h.b16 %v777
        %v2555 = vunpack.c.l.b16 %v778
        %v2556 = vunpack.c.h.b16 %v778
        %v2557 = vunpack.c.l.b16 %v779
        %v2558 = vunpack.c.h.b16 %v779
        %v2559 = vunpack.c.l.b16 %v780
        %v2560 = vunpack.c.h.b16 %v780
        %v2561 = vunpack.c.l.b16 %v781
        %v2562 = vunpack.c.h.b16 %v781
        %v2563 = vunpack.c.l.b16 %v782
        %v2564 = vunpack.c.h.b16 %v782
        %v2565 = vunpack.c.l.b16 %v783
        %v2566 = vunpack.c.h.b16 %v783
        %v2567 = vunpack.c.l.b16 %v784
        %v2568 = vunpack.c.h.b16 %v784
        %v2569 = vunpack.c.l.b16 %v785
        %v2570 = vunpack.c.h.b16 %v785
        %v2571 = vunpack.c.l.b16 %v786
        %v2572 = vunpack.c.h.b16 %v786
        %v2573 = vunpack.c.l.b16 %v787
        %v2574 = vunpack.c.h.b16 %v787
        %v2575 = vunpack.c.l.b16 %v788
        %v2576 = vunpack.c.h.b16 %v788
        %v2577 = vunpack.c.l.b16 %v789
        %v2578 = vunpack.c.h.b16 %v789
        %v2579 = vunpack.c.l.b16 %v790
        %v2580 = vunpack.c.h.b16 %v790
        %v2581 = vunpack.c.l.b16 %v791
        %v2582 = vunpack.c.h.b16 %v791
        %v2583 = vunpack.c.l.b16 %v792
        %v2584 = vunpack.c.h.b16 %v792
        %v2585 = vunpack.c.l.b16 %v793
        %v2586 = vunpack.c.h.b16 %v793
        %v2587 = vunpack.c.l.b16 %v794
        %v2588 = vunpack.c.h.b16 %v794
        %v2589 = vunpack.c.l.b16 %v795
        %v2590 = vunpack.c.h.b16 %v795
        %v2591 = vunpack.c.l.b16 %v796
        %v2592 = vunpack.c.h.b16 %v796
        %v2593 = vunpack.c.l.b16 %v797
        %v2594 = vunpack.c.h.b16 %v797
        %v2595 = vunpack.c.l.b16 %v798
        %v2596 = vunpack.c.h.b16 %v798
        %v2597 = vunpack.c.l.b16 %v799
        %v2598 = vunpack.c.h.b16 %v799
        %v2599 = vunpack.c.l.b16 %v800
        %v2600 = vunpack.c.h.b16 %v800
        %v2601 = vunpack.c.l.b16 %v801
        %v2602 = vunpack.c.h.b16 %v801
        %v2603 = vunpack.c.l.b16 %v802
        %v2604 = vunpack.c.h.b16 %v802
        %v2605 = vunpack.c.l.b16 %v803
        %v2606 = vunpack.c.h.b16 %v803
        %v2607 = vunpack.c.l.b16 %v804
        %v2608 = vunpack.c.h.b16 %v804
        %v2609 = vunpack.c.l.b16 %v805
        %v2610 = vunpack.c.h.b16 %v805
        %v2611 = vunpack.c.l.b16 %v806
        %v2612 = vunpack.c.h.b16 %v806
        %v2613 = vunpack.c.l.b16 %v807
        %v2614 = vunpack.c.h.b16 %v807
        %v2615 = vunpack.c.l.b16 %v808
        %v2616 = vunpack.c.h.b16 %v808
        %v2617 = vunpack.c.l.b16 %v809
        %v2618 = vunpack.c.h.b16 %v809
        %v2619 = vunpack.c.l.b16 %v810
        %v2620 = vunpack.c.h.b16 %v810
        %v2621 = vunpack.c.l.b16 %v811
        %v2622 = vunpack.c.h.b16 %v811
        %v2623 = vunpack.c.l.b16 %v812
        %v2624 = vunpack.c.h.b16 %v812
        %v2625 = vunpack.c.l.b16 %v813
        %v2626 = vunpack.c.h.b16 %v813
        %v2627 = vunpack.c.l.b16 %v814
        %v2628 = vunpack.c.h.b16 %v814
        %v2629 = vunpack.c.l.b16 %v815
        %v2630 = vunpack.c.h.b16 %v815
        %v2631 = vunpack.c.l.b16 %v816
        %v2632 = vunpack.c.h.b16 %v816
        %v2633 = vunpack.c.l.b16 %v817
        %v2634 = vunpack.c.h.b16 %v817
        %v2635 = vunpack.c.l.b16 %v818
        %v2636 = vunpack.c.h.b16 %v818
        %v2637 = vunpack.c.l.b16 %v819
        %v2638 = vunpack.c.h.b16 %v819
        %v2639 = vunpack.c.l.b16 %v820
        %v2640 = vunpack.c.h.b16 %v820
        %v2641 = vunpack.c.l.b16 %v821
        %v2642 = vunpack.c.h.b16 %v821
        %v2643 = vunpack.c.l.b16 %v822
        %v2644 = vunpack.c.h.b16 %v822
        %v2645 = vunpack.c.l.b16 %v823
        %v2646 = vunpack.c.h.b16 %v823
        %v2647 = vunpack.c.l.b16 %v824
        %v2648 = vunpack.c.h.b16 %v824
        %v2649 = vunpack.c.l.b16 %v825
        %v2650 = vunpack.c.h.b16 %v825
        %v2651 = vunpack.c.l.b16 %v826
        %v2652 = vunpack.c.h.b16 %v826
        %v2653 = vunpack.c.l.b16 %v827
        %v2654 = vunpack.c.h.b16 %v827
        %v2655 = vunpack.c.l.b16 %v828
        %v2656 = vunpack.c.h.b16 %v828
        %v2657 = vunpack.c.l.b16 %v829
        %v2658 = vunpack.c.h.b16 %v829
        %v2659 = vunpack.c.l.b16 %v830
        %v2660 = vunpack.c.h.b16 %v830
        %v2661 = vunpack.c.l.b16 %v831
        %v2662 = vunpack.c.h.b16 %v831
        %v2663 = vunpack.c.l.b16 %v832
        %v2664 = vunpack.c.h.b16 %v832
        %v2665 = vunpack.c.l.b16 %v833
        %v2666 = vunpack.c.h.b16 %v833
        %v2667 = vunpack.c.l.b16 %v834
        %v2668 = vunpack.c.h.b16 %v834
        %v2669 = vunpack.c.l.b16 %v835
        %v2670 = vunpack.c.h.b16 %v835
        %v2671 = vunpack.c.l.b16 %v836
        %v2672 = vunpack.c.h.b16 %v836
        %v2673 = vunpack.c.l.b16 %v837
        %v2674 = vunpack.c.h.b16 %v837
        %v2675 = vunpack.c.l.b16 %v838
        %v2676 = vunpack.c.h.b16 %v838
        %v2677 = vunpack.c.l.b16 %v839
        %v2678 = vunpack.c.h.b16 %v839
        %v2679 = vunpack.c.l.b16 %v840
        %v2680 = vunpack.c.h.b16 %v840
        %v2681 = vunpack.c.l.b16 %v841
        %v2682 = vunpack.c.h.b16 %v841
        %v2683 = vunpack.c.l.b16 %v842
        %v2684 = vunpack.c.h.b16 %v842
        %v2685 = vunpack.c.l.b16 %v843
        %v2686 = vunpack.c.h.b16 %v843
        %v2687 = vunpack.c.l.b16 %v844
        %v2688 = vunpack.c.h.b16 %v844
        %v2689 = vunpack.c.l.b16 %v845
        %v2690 = vunpack.c.h.b16 %v845
        %v2691 = vunpack.c.l.b16 %v846
        %v2692 = vunpack.c.h.b16 %v846
        %v2693 = vunpack.c.l.b16 %v847
        %v2694 = vunpack.c.h.b16 %v847
        %v2695 = vunpack.c.l.b16 %v848
        %v2696 = vunpack.c.h.b16 %v848
        %v2697 = vunpack.c.l.b16 %v849
        %v2698 = vunpack.c.h.b16 %v849
        %v2699 = vunpack.c.l.b16 %v850
        %v2700 = vunpack.c.h.b16 %v850
        %v2701 = vunpack.c.l.b16 %v851
        %v2702 = vunpack.c.h.b16 %v851
        %v2703 = vunpack.c.l.b16 %v852
        %v2704 = vunpack.c.h.b16 %v852
        %v2705 = vunpack.c.l.b16 %v853
        %v2706 = vunpack.c.h.b16 %v853
        %v2707 = vunpack.c.l.b16 %v854
        %v2708 = vunpack.c.h.b16 %v854
        %v2709 = vunpack.c.l.b16 %v855
        %v2710 = vunpack.c.h.b16 %v855
        %v2711 = vunpack.c.l.b16 %v856
        %v2712 = vunpack.c.h.b16 %v856
        %v2713 = vunpack.c.l.b16 %v857
        %v2714 = vunpack.c.h.b16 %v857
        %v2715 = vunpack.c.l.b16 %v858
        %v2716 = vunpack.c.h.b16 %v858
        %v2717 = vunpack.c.l.b16 %v859
        %v2718 = vunpack.c.h.b16 %v859
        %v2719 = vunpack.c.l.b16 %v860
        %v2720 = vunpack.c.h.b16 %v860
        %v2721 = vunpack.c.l.b16 %v861
        %v2722 = vunpack.c.h.b16 %v861
        %v2723 = vunpack.c.l.b16 %v862
        %v2724 = vunpack.c.h.b16 %v862
        %v2725 = vunpack.c.l.b16 %v863
        %v2726 = vunpack.c.h.b16 %v863
        %v2727 = vunpack.c.l.b16 %v864
        %v2728 = vunpack.c.h.b16 %v864
        %v2729 = vunpack.c.l.b16 %v865
        %v2730 = vunpack.c.h.b16 %v865
        %v2731 = vunpack.c.l.b16 %v866
        %v2732 = vunpack.c.h.b16 %v866
        %v2733 = vunpack.c.l.b16 %v867
        %v2734 = vunpack.c.h.b16 %v867
        %v2735 = vunpack.c.l.b16 %v868
        %v2736 = vunpack.c.h.b16 %v868
        %v2737 = vunpack.c.l.b16 %v869
        %v2738 = vunpack.c.h.b16 %v869
        %v2739 = vunpack.c.l.b16 %v870
        %v2740 = vunpack.c.h.b16 %v870
        %v2741 = vunpack.c.l.b16 %v871
        %v2742 = vunpack.c.h.b16 %v871
        %v2743 = vunpack.c.l.b16 %v872
        %v2744 = vunpack.c.h.b16 %v872
        %v2745 = vunpack.c.l.b16 %v873
        %v2746 = vunpack.c.h.b16 %v873
        %v2747 = vunpack.c.l.b16 %v874
        %v2748 = vunpack.c.h.b16 %v874
        %v2749 = vunpack.c.l.b16 %v875
        %v2750 = vunpack.c.h.b16 %v875
        %v2751 = vunpack.c.l.b16 %v876
        %v2752 = vunpack.c.h.b16 %v876
        %v2753 = vunpack.c.l.b16 %v877
        %v2754 = vunpack.c.h.b16 %v877
        %v2755 = vunpack.c.l.b16 %v878
        %v2756 = vunpack.c.h.b16 %v878
        %v2757 = vunpack.c.l.b16 %v879
        %v2758 = vunpack.c.h.b16 %v879
        %v2759 = vunpack.c.l.b16 %v880
        %v2760 = vunpack.c.h.b16 %v880
        %v2761 = vunpack.c.l.b16 %v881
        %v2762 = vunpack.c.h.b16 %v881
        %v2763 = vunpack.c.l.b16 %v882
        %v2764 = vunpack.c.h.b16 %v882
        %v2765 = vunpack.c.l.b16 %v883
        %v2766 = vunpack.c.h.b16 %v883
        %v2767 = vunpack.c.l.b16 %v884
        %v2768 = vunpack.c.h.b16 %v884
        %v2769 = vunpack.c.l.b16 %v885
        %v2770 = vunpack.c.h.b16 %v885
        %v2771 = vunpack.c.l.b16 %v886
        %v2772 = vunpack.c.h.b16 %v886
        %v2773 = vunpack.c.l.b16 %v887
        %v2774 = vunpack.c.h.b16 %v887
        %v2775 = vunpack.c.l.b16 %v888
        %v2776 = vunpack.c.h.b16 %v888
        %v2777 = vunpack.c.l.b16 %v889
        %v2778 = vunpack.c.h.b16 %v889
        %v2779 = vunpack.c.l.b16 %v890
        %v2780 = vunpack.c.h.b16 %v890
        %v2781 = vunpack.c.l.b16 %v891
        %v2782 = vunpack.c.h.b16 %v891
        %v2783 = vunpack.c.l.b16 %v892
        %v2784 = vunpack.c.h.b16 %v892
        %v2785 = vunpack.c.l.b16 %v893
        %v2786 = vunpack.c.h.b16 %v893
        %v2787 = vunpack.c.l.b16 %v894
        %v2788 = vunpack.c.h.b16 %v894
        %v2789 = vunpack.c.l.b16 %v895
        %v2790 = vunpack.c.h.b16 %v895
        %v2791 = vunpack.c.l.b16 %v896
        %v2792 = vunpack.c.h.b16 %v896
        %v2793 = vunpack.c.l.b16 %v897
        %v2794 = vunpack.c.h.b16 %v897
        %v2795 = vunpack.c.l.b16 %v898
        %v2796 = vunpack.c.h.b16 %v898
        %v2797 = vunpack.c.l.b16 %v899
        %v2798 = vunpack.c.h.b16 %v899
        %v2799 = vunpack.c.l.b16 %v900
        %v2800 = vunpack.c.h.b16 %v900
        %v2801 = vunpack.c.l.b16 %v901
        %v2802 = vunpack.c.h.b16 %v901
        %v2803 = vunpack.c.l.b16 %v902
        %v2804 = vunpack.c.h.b16 %v902
        %v2805 = vunpack.c.l.b16 %v903
        %v2806 = vunpack.c.h.b16 %v903
        %v2807 = vunpack.c.l.b16 %v904
        %v2808 = vunpack.c.h.b16 %v904
        %v2809 = vunpack.c.l.b16 %v905
        %v2810 = vunpack.c.h.b16 %v905
        %v2811 = vunpack.c.l.b16 %v906
        %v2812 = vunpack.c.h.b16 %v906
        %v2813 = vunpack.c.l.b16 %v907
        %v2814 = vunpack.c.h.b16 %v907
        %v2815 = vunpack.c.l.b16 %v908
        %v2816 = vunpack.c.h.b16 %v908
        %v2817 = vunpack.c.l.b16 %v909
        %v2818 = vunpack.c.h.b16 %v909
        %v2819 = vunpack.c.l.b16 %v910
        %v2820 = vunpack.c.h.b16 %v910
        %v2821 = vunpack.c.l.b16 %v911
        %v2822 = vunpack.c.h.b16 %v911
        %v2823 = vunpack.c.l.b16 %v912
        %v2824 = vunpack.c.h.b16 %v912
        %v2825 = vunpack.c.l.b16 %v913
        %v2826 = vunpack.c.h.b16 %v913
        %v2827 = vunpack.c.l.b16 %v914
        %v2828 = vunpack.c.h.b16 %v914
        %v2829 = vunpack.c.l.b16 %v915
        %v2830 = vunpack.c.h.b16 %v915
        %v2831 = vunpack.c.l.b16 %v916
        %v2832 = vunpack.c.h.b16 %v916
        %v2833 = vunpack.c.l.b16 %v917
        %v2834 = vunpack.c.h.b16 %v917
        %v2835 = vunpack.c.l.b16 %v918
        %v2836 = vunpack.c.h.b16 %v918
        %v2837 = vunpack.c.l.b16 %v919
        %v2838 = vunpack.c.h.b16 %v919
        %v2839 = vunpack.c.l.b16 %v920
        %v2840 = vunpack.c.h.b16 %v920
        %v2841 = vunpack.c.l.b16 %v921
        %v2842 = vunpack.c.h.b16 %v921
        %v2843 = vunpack.c.l.b16 %v922
        %v2844 = vunpack.c.h.b16 %v922
        %v2845 = vunpack.c.l.b16 %v923
        %v2846 = vunpack.c.h.b16 %v923
        %v2847 = vunpack.c.l.b16 %v924
        %v2848 = vunpack.c.h.b16 %v924
        %v2849 = vunpack.c.l.b16 %v925
        %v2850 = vunpack.c.h.b16 %v925
        %v2851 = vunpack.c.l.b16 %v926
        %v2852 = vunpack.c.h.b16 %v926
        %v2853 = vunpack.c.l.b16 %v927
        %v2854 = vunpack.c.h.b16 %v927
        %v2855 = vunpack.c.l.b16 %v928
        %v2856 = vunpack.c.h.b16 %v928
        %v2857 = vunpack.c.l.b16 %v929
        %v2858 = vunpack.c.h.b16 %v929
        %v2859 = vunpack.c.l.b16 %v930
        %v2860 = vunpack.c.h.b16 %v930
        %v2861 = vunpack.c.l.b16 %v931
        %v2862 = vunpack.c.h.b16 %v931
        %v2863 = vunpack.c.l.b16 %v932
        %v2864 = vunpack.c.h.b16 %v932
        %v2865 = vunpack.c.l.b16 %v933
        %v2866 = vunpack.c.h.b16 %v933
        %v2867 = vunpack.c.l.b16 %v934
        %v2868 = vunpack.c.h.b16 %v934
        %v2869 = vunpack.c.l.b16 %v935
        %v2870 = vunpack.c.h.b16 %v935
        %v2871 = vunpack.c.l.b16 %v936
        %v2872 = vunpack.c.h.b16 %v936
        %v2873 = vunpack.c.l.b16 %v937
        %v2874 = vunpack.c.h.b16 %v937
        %v2875 = vunpack.c.l.b16 %v938
        %v2876 = vunpack.c.h.b16 %v938
        %v2877 = vunpack.c.l.b16 %v939
        %v2878 = vunpack.c.h.b16 %v939
        %v2879 = vunpack.c.l.b16 %v940
        %v2880 = vunpack.c.h.b16 %v940
        %v2881 = vunpack.c.l.b16 %v941
        %v2882 = vunpack.c.h.b16 %v941
        %v2883 = vunpack.c.l.b16 %v942
        %v2884 = vunpack.c.h.b16 %v942
        %v2885 = vunpack.c.l.b16 %v943
        %v2886 = vunpack.c.h.b16 %v943
        %v2887 = vunpack.c.l.b16 %v944
        %v2888 = vunpack.c.h.b16 %v944
        %v2889 = vunpack.c.l.b16 %v945
        %v2890 = vunpack.c.h.b16 %v945
        %v2891 = vunpack.c.l.b16 %v946
        %v2892 = vunpack.c.h.b16 %v946
        %v2893 = vunpack.c.l.b16 %v947
        %v2894 = vunpack.c.h.b16 %v947
        %v2895 = vunpack.c.l.b16 %v948
        %v2896 = vunpack.c.h.b16 %v948
        %v2897 = vunpack.c.l.b16 %v949
        %v2898 = vunpack.c.h.b16 %v949
        %v2899 = vunpack.c.l.b16 %v950
        %v2900 = vunpack.c.h.b16 %v950
        %v2901 = vunpack.c.l.b16 %v951
        %v2902 = vunpack.c.h.b16 %v951
        %v2903 = vunpack.c.l.b16 %v952
        %v2904 = vunpack.c.h.b16 %v952
        %v2905 = vunpack.c.l.b16 %v953
        %v2906 = vunpack.c.h.b16 %v953
        %v2907 = vunpack.c.l.b16 %v954
        %v2908 = vunpack.c.h.b16 %v954
        %v2909 = vunpack.c.l.b16 %v955
        %v2910 = vunpack.c.h.b16 %v955
        %v2911 = vunpack.c.l.b16 %v956
        %v2912 = vunpack.c.h.b16 %v956
        %v2913 = vunpack.c.l.b16 %v957
        %v2914 = vunpack.c.h.b16 %v957
        %v2915 = vunpack.c.l.b16 %v958
        %v2916 = vunpack.c.h.b16 %v958
        %v2917 = vunpack.c.l.b16 %v959
        %v2918 = vunpack.c.h.b16 %v959
        %v2919 = vunpack.c.l.b16 %v960
        %v2920 = vunpack.c.h.b16 %v960
        %v2921 = vunpack.c.l.b16 %v961
        %v2922 = vunpack.c.h.b16 %v961
        %v2923 = vunpack.c.l.b16 %v962
        %v2924 = vunpack.c.h.b16 %v962
        %v2925 = vpack.c.b16 %v1743, %v1741
        %v2926 = vpack.c.b16 %v1744, %v1742
        %v2927 = vpack.c.b16 %v1747, %v1745
        %v2928 = vpack.c.b16 %v1748, %v1746
        %v2929 = vpack.c.b16 %v1751, %v1749
        %v2930 = vpack.c.b16 %v1752, %v1750
        %v2931 = vpack.c.b16 %v1755, %v1753
        %v2932 = vpack.c.b16 %v1756, %v1754
        %v2933 = vpack.c.b16 %v1759, %v1757
        %v2934 = vpack.c.b16 %v1760, %v1758
        %v2935 = vpack.c.b16 %v1763, %v1761
        %v2936 = vpack.c.b16 %v1764, %v1762
        %v2937 = vpack.c.b16 %v1767, %v1765
        %v2938 = vpack.c.b16 %v1768, %v1766
        %v2939 = vpack.c.b16 %v1771, %v1769
        %v2940 = vpack.c.b16 %v1772, %v1770
        %v2941 = vpack.c.b16 %v1775, %v1773
        %v2942 = vpack.c.b16 %v1776, %v1774
        %v2943 = vpack.c.b16 %v1779, %v1777
        %v2944 = vpack.c.b16 %v1780, %v1778
        %v2945 = vpack.c.b16 %v1783, %v1781
        %v2946 = vpack.c.b16 %v1784, %v1782
        %v2947 = vpack.c.b16 %v1787, %v1785
        %v2948 = vpack.c.b16 %v1788, %v1786
        %v2949 = vpack.c.b16 %v1791, %v1789
        %v2950 = vpack.c.b16 %v1792, %v1790
        %v2951 = vpack.c.b16 %v1795, %v1793
        %v2952 = vpack.c.b16 %v1796, %v1794
        %v2953 = vpack.c.b16 %v1799, %v1797
        %v2954 = vpack.c.b16 %v1800, %v1798
        %v2955 = vpack.c.b16 %v1803, %v1801
        %v2956 = vpack.c.b16 %v1804, %v1802
        %v2957 = vpack.c.b16 %v1807, %v1805
        %v2958 = vpack.c.b16 %v1808, %v1806
        %v2959 = vpack.c.b16 %v1811, %v1809
        %v2960 = vpack.c.b16 %v1812, %v1810
        %v2961 = vpack.c.b16 %v1815, %v1813
        %v2962 = vpack.c.b16 %v1816, %v1814
        %v2963 = vpack.c.b16 %v1819, %v1817
        %v2964 = vpack.c.b16 %v1820, %v1818
        %v2965 = vpack.c.b16 %v1823, %v1821
        %v2966 = vpack.c.b16 %v1824, %v1822
        %v2967 = vpack.c.b16 %v1827, %v1825
        %v2968 = vpack.c.b16 %v1828, %v1826
        %v2969 = vpack.c.b16 %v1831, %v1829
        %v2970 = vpack.c.b16 %v1832, %v1830
        %v2971 = vpack.c.b16 %v1835, %v1833
        %v2972 = vpack.c.b16 %v1836, %v1834
        %v2973 = vpack.c.b16 %v1839, %v1837
        %v2974 = vpack.c.b16 %v1840, %v1838
        %v2975 = vpack.c.b16 %v1843, %v1841
        %v2976 = vpack.c.b16 %v1844, %v1842
        %v2977 = vpack.c.b16 %v1847, %v1845
        %v2978 = vpack.c.b16 %v1848, %v1846
        %v2979 = vpack.c.b16 %v1851, %v1849
        %v2980 = vpack.c.b16 %v1852, %v1850
        %v2981 = vpack.c.b16 %v1855, %v1853
        %v2982 = vpack.c.b16 %v1856, %v1854
        %v2983 = vpack.c.b16 %v1859, %v1857
        %v2984 = vpack.c.b16 %v1860, %v1858
        %v2985 = vpack.c.b16 %v1863, %v1861
        %v2986 = vpack.c.b16 %v1864, %v1862
        %v2987 = vpack.c.b16 %v1867, %v1865
        %v2988 = vpack.c.b16 %v1868, %v1866
        %v2989 = vpack.c.b16 %v1871, %v1869
        %v2990 = vpack.c.b16 %v1872, %v1870
        %v2991 = vpack.c.b16 %v1875, %v1873
        %v2992 = vpack.c.b16 %v1876, %v1874
        %v2993 = vpack.c.b16 %v1879, %v1877
        %v2994 = vpack.c.b16 %v1880, %v1878
        %v2995 = vpack.c.b16 %v1883, %v1881
        %v2996 = vpack.c.b16 %v1884, %v1882
        %v2997 = vpack.c.b16 %v1887, %v1885
        %v2998 = vpack.c.b16 %v1888, %v1886
        %v2999 = vpack.c.b16 %v1891, %v1889
        %v3000 = vpack.c.b16 %v1892, %v1890
        %v3001 = vpack.c.b16 %v1895, %v1893
        %v3002 = vpack.c.b16 %v1896, %v1894
        %v3003 = vpack.c.b16 %v1899, %v1897
        %v3004 = vpack.c.b16 %v1900, %v1898
        %v3005 = vpack.c.b16 %v1903, %v1901
        %v3006 = vpack.c.b16 %v1904, %v1902
        %v3007 = vpack.c.b16 %v1907, %v1905
        %v3008 = vpack.c.b16 %v1908, %v1906
        %v3009 = vpack.c.b16 %v1911, %v1909
        %v3010 = vpack.c.b16 %v1912, %v1910
        %v3011 = vpack.c.b16 %v1915, %v1913
        %v3012 = vpack.c.b16 %v1916, %v1914
        %v3013 = vpack.c.b16 %v1919, %v1917
        %v3014 = vpack.c.b16 %v1920, %v1918
        %v3015 = vpack.c.b16 %v1923, %v1921
        %v3016 = vpack.c.b16 %v1924, %v1922
        %v3017 = vpack.c.b16 %v1927, %v1925
        %v3018 = vpack.c.b16 %v1928, %v1926
        %v3019 = vpack.c.b16 %v1931, %v1929
        %v3020 = vpack.c.b16 %v1932, %v1930
        %v3021 = vpack.c.b16 %v1935, %v1933
        %v3022 = vpack.c.b16 %v1936, %v1934
        %v3023 = vpack.c.b16 %v1939, %v1937
        %v3024 = vpack.c.b16 %v1940, %v1938
        %v3025 = vpack.c.b16 %v1943, %v1941
        %v3026 = vpack.c.b16 %v1944, %v1942
        %v3027 = vpack.c.b16 %v1947, %v1945
        %v3028 = vpack.c.b16 %v1948, %v1946
        %v3029 = vpack.c.b16 %v1951, %v1949
        %v3030 = vpack.c.b16 %v1952, %v1950
        %v3031 = vpack.c.b16 %v1955, %v1953
        %v3032 = vpack.c.b16 %v1956, %v1954
        %v3033 = vpack.c.b16 %v1959, %v1957
        %v3034 = vpack.c.b16 %v1960, %v1958
        %v3035 = vpack.c.b16 %v1963, %v1961
        %v3036 = vpack.c.b16 %v1964, %v1962
        %v3037 = vpack.c.b16 %v1967, %v1965
        %v3038 = vpack.c.b16 %v1968, %v1966
        %v3039 = vpack.c.b16 %v1971, %v1969
        %v3040 = vpack.c.b16 %v1972, %v1970
        %v3041 = vpack.c.b16 %v1975, %v1973
        %v3042 = vpack.c.b16 %v1976, %v1974
        %v3043 = vpack.c.b16 %v1979, %v1977
        %v3044 = vpack.c.b16 %v1980, %v1978
        %v3045 = vpack.c.b16 %v1983, %v1981
        %v3046 = vpack.c.b16 %v1984, %v1982
        %v3047 = vpack.c.b16 %v1987, %v1985
        %v3048 = vpack.c.b16 %v1988, %v1986
        %v3049 = vpack.c.b16 %v1991, %v1989
        %v3050 = vpack.c.b16 %v1992, %v1990
        %v3051 = vpack.c.b16 %v1995, %v1993
        %v3052 = vpack.c.b16 %v1996, %v1994
        %v3053 = vpack.c.b16 %v1999, %v1997
        %v3054 = vpack.c.b16 %v2000, %v1998
        %v3055 = vpack.c.b16 %v2003, %v2001
        %v3056 = vpack.c.b16 %v2004, %v2002
        %v3057 = vpack.c.b16 %v2007, %v2005
        %v3058 = vpack.c.b16 %v2008, %v2006
        %v3059 = vpack.c.b16 %v2011, %v2009
        %v3060 = vpack.c.b16 %v2012, %v2010
        %v3061 = vpack.c.b16 %v2015, %v2013
        %v3062 = vpack.c.b16 %v2016, %v2014
        %v3063 = vpack.c.b16 %v2019, %v2017
        %v3064 = vpack.c.b16 %v2020, %v2018
        %v3065 = vpack.c.b16 %v2023, %v2021
        %v3066 = vpack.c.b16 %v2024, %v2022
        %v3067 = vpack.c.b16 %v2027, %v2025
        %v3068 = vpack.c.b16 %v2028, %v2026
        %v3069 = vpack.c.b16 %v2031, %v2029
        %v3070 = vpack.c.b16 %v2032, %v2030
        %v3071 = vpack.c.b16 %v2035, %v2033
        %v3072 = vpack.c.b16 %v2036, %v2034
        %v3073 = vpack.c.b16 %v2039, %v2037
        %v3074 = vpack.c.b16 %v2040, %v2038
        %v3075 = vpack.c.b16 %v2043, %v2041
        %v3076 = vpack.c.b16 %v2044, %v2042
        %v3077 = vpack.c.b16 %v2047, %v2045
        %v3078 = vpack.c.b16 %v2048, %v2046
        %v3079 = vpack.c.b16 %v2051, %v2049
        %v3080 = vpack.c.b16 %v2052, %v2050
        %v3081 = vpack.c.b16 %v2055, %v2053
        %v3082 = vpack.c.b16 %v2056, %v2054
        %v3083 = vpack.c.b16 %v2059, %v2057
        %v3084 = vpack.c.b16 %v2060, %v2058
        %v3085 = vpack.c.b16 %v2063, %v2061
        %v3086 = vpack.c.b16 %v2064, %v2062
        %v3087 = vpack.c.b16 %v2067, %v2065
        %v3088 = vpack.c.b16 %v2068, %v2066
        %v3089 = vpack.c.b16 %v2071, %v2069
        %v3090 = vpack.c.b16 %v2072, %v2070
        %v3091 = vpack.c.b16 %v2075, %v2073
        %v3092 = vpack.c.b16 %v2076, %v2074
        %v3093 = vpack.c.b16 %v2079, %v2077
        %v3094 = vpack.c.b16 %v2080, %v2078
        %v3095 = vpack.c.b16 %v2083, %v2081
        %v3096 = vpack.c.b16 %v2084, %v2082
        %v3097 = vpack.c.b16 %v2087, %v2085
        %v3098 = vpack.c.b16 %v2088, %v2086
        %v3099 = vpack.c.b16 %v2091, %v2089
        %v3100 = vpack.c.b16 %v2092, %v2090
        %v3101 = vpack.c.b16 %v2095, %v2093
        %v3102 = vpack.c.b16 %v2096, %v2094
        %v3103 = vpack.c.b16 %v2099, %v2097
        %v3104 = vpack.c.b16 %v2100, %v2098
        %v3105 = vpack.c.b16 %v2103, %v2101
        %v3106 = vpack.c.b16 %v2104, %v2102
        %v3107 = vpack.c.b16 %v2107, %v2105
        %v3108 = vpack.c.b16 %v2108, %v2106
        %v3109 = vpack.c.b16 %v2111, %v2109
        %v3110 = vpack.c.b16 %v2112, %v2110
        %v3111 = vpack.c.b16 %v2115, %v2113
        %v3112 = vpack.c.b16 %v2116, %v2114
        %v3113 = vpack.c.b16 %v2119, %v2117
        %v3114 = vpack.c.b16 %v2120, %v2118
        %v3115 = vpack.c.b16 %v2123, %v2121
        %v3116 = vpack.c.b16 %v2124, %v2122
        %v3117 = vpack.c.b16 %v2127, %v2125
        %v3118 = vpack.c.b16 %v2128, %v2126
        %v3119 = vpack.c.b16 %v2131, %v2129
        %v3120 = vpack.c.b16 %v2132, %v2130
        %v3121 = vpack.c.b16 %v2135, %v2133
        %v3122 = vpack.c.b16 %v2136, %v2134
        %v3123 = vpack.c.b16 %v2139, %v2137
        %v3124 = vpack.c.b16 %v2140, %v2138
        %v3125 = vpack.c.b16 %v2143, %v2141
        %v3126 = vpack.c.b16 %v2144, %v2142
        %v3127 = vpack.c.b16 %v2147, %v2145
        %v3128 = vpack.c.b16 %v2148, %v2146
        %v3129 = vpack.c.b16 %v2151, %v2149
        %v3130 = vpack.c.b16 %v2152, %v2150
        %v3131 = vpack.c.b16 %v2155, %v2153
        %v3132 = vpack.c.b16 %v2156, %v2154
        %v3133 = vpack.c.b16 %v2159, %v2157
        %v3134 = vpack.c.b16 %v2160, %v2158
        %v3135 = vpack.c.b16 %v2163, %v2161
        %v3136 = vpack.c.b16 %v2164, %v2162
        %v3137 = vpack.c.b16 %v2167, %v2165
        %v3138 = vpack.c.b16 %v2168, %v2166
        %v3139 = vpack.c.b16 %v2171, %v2169
        %v3140 = vpack.c.b16 %v2172, %v2170
        %v3141 = vpack.c.b16 %v2175, %v2173
        %v3142 = vpack.c.b16 %v2176, %v2174
        %v3143 = vpack.c.b16 %v2179, %v2177
        %v3144 = vpack.c.b16 %v2180, %v2178
        %v3145 = vpack.c.b16 %v2183, %v2181
        %v3146 = vpack.c.b16 %v2184, %v2182
        %v3147 = vpack.c.b16 %v2187, %v2185
        %v3148 = vpack.c.b16 %v2188, %v2186
        %v3149 = vpack.c.b16 %v2191, %v2189
        %v3150 = vpack.c.b16 %v2192, %v2190
        %v3151 = vpack.c.b16 %v2195, %v2193
        %v3152 = vpack.c.b16 %v2196, %v2194
        %v3153 = vpack.c.b16 %v2199, %v2197
        %v3154 = vpack.c.b16 %v2200, %v2198
        %v3155 = vpack.c.b16 %v2203, %v2201
        %v3156 = vpack.c.b16 %v2204, %v2202
        %v3157 = vpack.c.b16 %v2207, %v2205
        %v3158 = vpack.c.b16 %v2208, %v2206
        %v3159 = vpack.c.b16 %v2211, %v2209
        %v3160 = vpack.c.b16 %v2212, %v2210
        %v3161 = vpack.c.b16 %v2215, %v2213
        %v3162 = vpack.c.b16 %v2216, %v2214
        %v3163 = vpack.c.b16 %v2219, %v2217
        %v3164 = vpack.c.b16 %v2220, %v2218
        %v3165 = vpack.c.b16 %v2223, %v2221
        %v3166 = vpack.c.b16 %v2224, %v2222
        %v3167 = vpack.c.b16 %v2227, %v2225
        %v3168 = vpack.c.b16 %v2228, %v2226
        %v3169 = vpack.c.b16 %v2231, %v2229
        %v3170 = vpack.c.b16 %v2232, %v2230
        %v3171 = vpack.c.b16 %v2235, %v2233
        %v3172 = vpack.c.b16 %v2236, %v2234
        %v3173 = vpack.c.b16 %v2239, %v2237
        %v3174 = vpack.c.b16 %v2240, %v2238
        %v3175 = vpack.c.b16 %v2243, %v2241
        %v3176 = vpack.c.b16 %v2244, %v2242
        %v3177 = vpack.c.b16 %v2247, %v2245
        %v3178 = vpack.c.b16 %v2248, %v2246
        %v3179 = vpack.c.b16 %v2251, %v2249
        %v3180 = vpack.c.b16 %v2252, %v2250
        %v3181 = vpack.c.b16 %v2255, %v2253
        %v3182 = vpack.c.b16 %v2256, %v2254
        %v3183 = vpack.c.b16 %v2259, %v2257
        %v3184 = vpack.c.b16 %v2260, %v2258
        %v3185 = vpack.c.b16 %v2263, %v2261
        %v3186 = vpack.c.b16 %v2264, %v2262
        %v3187 = vpack.c.b16 %v2267, %v2265
        %v3188 = vpack.c.b16 %v2268, %v2266
        %v3189 = vpack.c.b16 %v2271, %v2269
        %v3190 = vpack.c.b16 %v2272, %v2270
        %v3191 = vpack.c.b16 %v2275, %v2273
        %v3192 = vpack.c.b16 %v2276, %v2274
        %v3193 = vpack.c.b16 %v2279, %v2277
        %v3194 = vpack.c.b16 %v2280, %v2278
        %v3195 = vpack.c.b16 %v2283, %v2281
        %v3196 = vpack.c.b16 %v2284, %v2282
        %v3197 = vpack.c.b16 %v2287, %v2285
        %v3198 = vpack.c.b16 %v2288, %v2286
        %v3199 = vpack.c.b16 %v2291, %v2289
        %v3200 = vpack.c.b16 %v2292, %v2290
        %v3201 = vpack.c.b16 %v2295, %v2293
        %v3202 = vpack.c.b16 %v2296, %v2294
        %v3203 = vpack.c.b16 %v2299, %v2297
        %v3204 = vpack.c.b16 %v2300, %v2298
        %v3205 = vpack.c.b16 %v2303, %v2301
        %v3206 = vpack.c.b16 %v2304, %v2302
        %v3207 = vpack.c.b16 %v2307, %v2305
        %v3208 = vpack.c.b16 %v2308, %v2306
        %v3209 = vpack.c.b16 %v2311, %v2309
        %v3210 = vpack.c.b16 %v2312, %v2310
        %v3211 = vpack.c.b16 %v2315, %v2313
        %v3212 = vpack.c.b16 %v2316, %v2314
        %v3213 = vpack.c.b16 %v2319, %v2317
        %v3214 = vpack.c.b16 %v2320, %v2318
        %v3215 = vpack.c.b16 %v2323, %v2321
        %v3216 = vpack.c.b16 %v2324, %v2322
        %v3217 = vpack.c.b16 %v2327, %v2325
        %v3218 = vpack.c.b16 %v2328, %v2326
        %v3219 = vpack.c.b16 %v2331, %v2329
        %v3220 = vpack.c.b16 %v2332, %v2330
        %v3221 = vpack.c.b16 %v2335, %v2333
        %v3222 = vpack.c.b16 %v2336, %v2334
        %v3223 = vpack.c.b16 %v2339, %v2337
        %v3224 = vpack.c.b16 %v2340, %v2338
        %v3225 = vpack.c.b16 %v2343, %v2341
        %v3226 = vpack.c.b16 %v2344, %v2342
        %v3227 = vpack.c.b16 %v2347, %v2345
        %v3228 = vpack.c.b16 %v2348, %v2346
        %v3229 = vpack.c.b16 %v2351, %v2349
        %v3230 = vpack.c.b16 %v2352, %v2350
        %v3231 = vpack.c.b16 %v2355, %v2353
        %v3232 = vpack.c.b16 %v2356, %v2354
        %v3233 = vpack.c.b16 %v2359, %v2357
        %v3234 = vpack.c.b16 %v2360, %v2358
        %v3235 = vpack.c.b16 %v2363, %v2361
        %v3236 = vpack.c.b16 %v2364, %v2362
        %v3237 = vpack.c.b16 %v2367, %v2365
        %v3238 = vpack.c.b16 %v2368, %v2366
        %v3239 = vpack.c.b16 %v2371, %v2369
        %v3240 = vpack.c.b16 %v2372, %v2370
        %v3241 = vpack.c.b16 %v2375, %v2373
        %v3242 = vpack.c.b16 %v2376, %v2374
        %v3243 = vpack.c.b16 %v2379, %v2377
        %v3244 = vpack.c.b16 %v2380, %v2378
        %v3245 = vpack.c.b16 %v2383, %v2381
        %v3246 = vpack.c.b16 %v2384, %v2382
        %v3247 = vpack.c.b16 %v2387, %v2385
        %v3248 = vpack.c.b16 %v2388, %v2386
        %v3249 = vpack.c.b16 %v2391, %v2389
        %v3250 = vpack.c.b16 %v2392, %v2390
        %v3251 = vpack.c.b16 %v2395, %v2393
        %v3252 = vpack.c.b16 %v2396, %v2394
        %v3253 = vpack.c.b16 %v2399, %v2397
        %v3254 = vpack.c.b16 %v2400, %v2398
        %v3255 = vpack.c.b16 %v2403, %v2401
        %v3256 = vpack.c.b16 %v2404, %v2402
        %v3257 = vpack.c.b16 %v2407, %v2405
        %v3258 = vpack.c.b16 %v2408, %v2406
        %v3259 = vpack.c.b16 %v2411, %v2409
        %v3260 = vpack.c.b16 %v2412, %v2410
        %v3261 = vpack.c.b16 %v2415, %v2413
        %v3262 = vpack.c.b16 %v2416, %v2414
        %v3263 = vpack.c.b16 %v2419, %v2417
        %v3264 = vpack.c.b16 %v2420, %v2418
        %v3265 = vpack.c.b16 %v2423, %v2421
        %v3266 = vpack.c.b16 %v2424, %v2422
        %v3267 = vpack.c.b16 %v2427, %v2425
        %v3268 = vpack.c.b16 %v2428, %v2426
        %v3269 = vpack.c.b16 %v2431, %v2429
        %v3270 = vpack.c.b16 %v2432, %v2430
        %v3271 = vpack.c.b16 %v2435, %v2433
        %v3272 = vpack.c.b16 %v2436, %v2434
        %v3273 = vpack.c.b16 %v2439, %v2437
        %v3274 = vpack.c.b16 %v2440, %v2438
        %v3275 = vpack.c.b16 %v2443, %v2441
        %v3276 = vpack.c.b16 %v2444, %v2442
        %v3277 = vpack.c.b16 %v2447, %v2445
        %v3278 = vpack.c.b16 %v2448, %v2446
        %v3279 = vpack.c.b16 %v2451, %v2449
        %v3280 = vpack.c.b16 %v2452, %v2450
        %v3281 = vpack.c.b16 %v2455, %v2453
        %v3282 = vpack.c.b16 %v2456, %v2454
        %v3283 = vpack.c.b16 %v2459, %v2457
        %v3284 = vpack.c.b16 %v2460, %v2458
        %v3285 = vpack.c.b16 %v2463, %v2461
        %v3286 = vpack.c.b16 %v2464, %v2462
        %v3287 = vpack.c.b16 %v2467, %v2465
        %v3288 = vpack.c.b16 %v2468, %v2466
        %v3289 = vpack.c.b16 %v2471, %v2469
        %v3290 = vpack.c.b16 %v2472, %v2470
        %v3291 = vpack.c.b16 %v2475, %v2473
        %v3292 = vpack.c.b16 %v2476, %v2474
        %v3293 = vpack.c.b16 %v2479, %v2477
        %v3294 = vpack.c.b16 %v2480, %v2478
        %v3295 = vpack.c.b16 %v2483, %v2481
        %v3296 = vpack.c.b16 %v2484, %v2482
        %v3297 = vpack.c.b16 %v2487, %v2485
        %v3298 = vpack.c.b16 %v2488, %v2486
        %v3299 = vpack.c.b16 %v2491, %v2489
        %v3300 = vpack.c.b16 %v2492, %v2490
        %v3301 = vpack.c.b16 %v2495, %v2493
        %v3302 = vpack.c.b16 %v2496, %v2494
        %v3303 = vpack.c.b16 %v2499, %v2497
        %v3304 = vpack.c.b16 %v2500, %v2498
        %v3305 = vpack.c.b16 %v2503, %v2501
        %v3306 = vpack.c.b16 %v2504, %v2502
        %v3307 = vpack.c.b16 %v2507, %v2505
        %v3308 = vpack.c.b16 %v2508, %v2506
        %v3309 = vpack.c.b16 %v2511, %v2509
        %v3310 = vpack.c.b16 %v2512, %v2510
        %v3311 = vpack.c.b16 %v2515, %v2513
        %v3312 = vpack.c.b16 %v2516, %v2514
        %v3313 = vpack.c.b16 %v2519, %v2517
        %v3314 = vpack.c.b16 %v2520, %v2518
        %v3315 = vpack.c.b16 %v2523, %v2521
        %v3316 = vpack.c.b16 %v2524, %v2522
        %v3317 = vpack.c.b16 %v2527, %v2525
        %v3318 = vpack.c.b16 %v2528, %v2526
        %v3319 = vpack.c.b16 %v2531, %v2529
        %v3320 = vpack.c.b16 %v2532, %v2530
        %v3321 = vpack.c.b16 %v2535, %v2533
        %v3322 = vpack.c.b16 %v2536, %v2534
        %v3323 = vpack.c.b16 %v2539, %v2537
        %v3324 = vpack.c.b16 %v2540, %v2538
        %v3325 = vpack.c.b16 %v2543, %v2541
        %v3326 = vpack.c.b16 %v2544, %v2542
        %v3327 = vpack.c.b16 %v2547, %v2545
        %v3328 = vpack.c.b16 %v2548, %v2546
        %v3329 = vpack.c.b16 %v2551, %v2549
        %v3330 = vpack.c.b16 %v2552, %v2550
        %v3331 = vpack.c.b16 %v2555, %v2553
        %v3332 = vpack.c.b16 %v2556, %v2554
        %v3333 = vpack.c.b16 %v2559, %v2557
        %v3334 = vpack.c.b16 %v2560, %v2558
        %v3335 = vpack.c.b16 %v2563, %v2561
        %v3336 = vpack.c.b16 %v2564, %v2562
        %v3337 = vpack.c.b16 %v2567, %v2565
        %v3338 = vpack.c.b16 %v2568, %v2566
        %v3339 = vpack.c.b16 %v2571, %v2569
        %v3340 = vpack.c.b16 %v2572, %v2570
        %v3341 = vpack.c.b16 %v2575, %v2573
        %v3342 = vpack.c.b16 %v2576, %v2574
        %v3343 = vpack.c.b16 %v2579, %v2577
        %v3344 = vpack.c.b16 %v2580, %v2578
        %v3345 = vpack.c.b16 %v2583, %v2581
        %v3346 = vpack.c.b16 %v2584, %v2582
        %v3347 = vpack.c.b16 %v2587, %v2585
        %v3348 = vpack.c.b16 %v2588, %v2586
        %v3349 = vpack.c.b16 %v2591, %v2589
        %v3350 = vpack.c.b16 %v2592, %v2590
        %v3351 = vpack.c.b16 %v2595, %v2593
        %v3352 = vpack.c.b16 %v2596, %v2594
        %v3353 = vpack.c.b16 %v2599, %v2597
        %v3354 = vpack.c.b16 %v2600, %v2598
        %v3355 = vpack.c.b16 %v2603, %v2601
        %v3356 = vpack.c.b16 %v2604, %v2602
        %v3357 = vpack.c.b16 %v2607, %v2605
        %v3358 = vpack.c.b16 %v2608, %v2606
        %v3359 = vpack.c.b16 %v2611, %v2609
        %v3360 = vpack.c.b16 %v2612, %v2610
        %v3361 = vpack.c.b16 %v2615, %v2613
        %v3362 = vpack.c.b16 %v2616, %v2614
        %v3363 = vpack.c.b16 %v2619, %v2617
        %v3364 = vpack.c.b16 %v2620, %v2618
        %v3365 = vpack.c.b16 %v2623, %v2621
        %v3366 = vpack.c.b16 %v2624, %v2622
        %v3367 = vpack.c.b16 %v2627, %v2625
        %v3368 = vpack.c.b16 %v2628, %v2626
        %v3369 = vpack.c.b16 %v2631, %v2629
        %v3370 = vpack.c.b16 %v2632, %v2630
        %v3371 = vpack.c.b16 %v2635, %v2633
        %v3372 = vpack.c.b16 %v2636, %v2634
        %v3373 = vpack.c.b16 %v2639, %v2637
        %v3374 = vpack.c.b16 %v2640, %v2638
        %v3375 = vpack.c.b16 %v2643, %v2641
        %v3376 = vpack.c.b16 %v2644, %v2642
        %v3377 = vpack.c.b16 %v2647, %v2645
        %v3378 = vpack.c.b16 %v2648, %v2646
        %v3379 = vpack.c.b16 %v2651, %v2649
        %v3380 = vpack.c.b16 %v2652, %v2650
        %v3381 = vpack.c.b16 %v2655, %v2653
        %v3382 = vpack.c.b16 %v2656, %v2654
        %v3383 = vpack.c.b16 %v2659, %v2657
        %v3384 = vpack.c.b16 %v2660, %v2658
        %v3385 = vpack.c.b16 %v2663, %v2661
        %v3386 = vpack.c.b16 %v2664, %v2662
        %v3387 = vpack.c.b16 %v2667, %v2665
        %v3388 = vpack.c.b16 %v2668, %v2666
        %v3389 = vpack.c.b16 %v2671, %v2669
        %v3390 = vpack.c.b16 %v2672, %v2670
        %v3391 = vpack.c.b16 %v2675, %v2673
        %v3392 = vpack.c.b16 %v2676, %v2674
        %v3393 = vpack.c.b16 %v2679, %v2677
        %v3394 = vpack.c.b16 %v2680, %v2678
        %v3395 = vpack.c.b16 %v2683, %v2681
        %v3396 = vpack.c.b16 %v2684, %v2682
        %v3397 = vpack.c.b16 %v2687, %v2685
        %v3398 = vpack.c.b16 %v2688, %v2686
        %v3399 = vpack.c.b16 %v2691, %v2689
        %v3400 = vpack.c.b16 %v2692, %v2690
        %v3401 = vpack.c.b16 %v2695, %v2693
        %v3402 = vpack.c.b16 %v2696, %v2694
        %v3403 = vpack.c.b16 %v2699, %v2697
        %v3404 = vpack.c.b16 %v2700, %v2698
        %v3405 = vpack.c.b16 %v2703, %v2701
        %v3406 = vpack.c.b16 %v2704, %v2702
        %v3407 = vpack.c.b16 %v2707, %v2705
        %v3408 = vpack.c.b16 %v2708, %v2706
        %v3409 = vpack.c.b16 %v2711, %v2709
        %v3410 = vpack.c.b16 %v2712, %v2710
        %v3411 = vpack.c.b16 %v2715, %v2713
        %v3412 = vpack.c.b16 %v2716, %v2714
        %v3413 = vpack.c.b16 %v2719, %v2717
        %v3414 = vpack.c.b16 %v2720, %v2718
        %v3415 = vpack.c.b16 %v2723, %v2721
        %v3416 = vpack.c.b16 %v2724, %v2722
        %v3417 = vpack.c.b16 %v2727, %v2725
        %v3418 = vpack.c.b16 %v2728, %v2726
        %v3419 = vpack.c.b16 %v2731, %v2729
        %v3420 = vpack.c.b16 %v2732, %v2730
        %v3421 = vpack.c.b16 %v2735, %v2733
        %v3422 = vpack.c.b16 %v2736, %v2734
        %v3423 = vpack.c.b16 %v2739, %v2737
        %v3424 = vpack.c.b16 %v2740, %v2738
        %v3425 = vpack.c.b16 %v2743, %v2741
        %v3426 = vpack.c.b16 %v2744, %v2742
        %v3427 = vpack.c.b16 %v2747, %v2745
        %v3428 = vpack.c.b16 %v2748, %v2746
        %v3429 = vpack.c.b16 %v2751, %v2749
        %v3430 = vpack.c.b16 %v2752, %v2750
        %v3431 = vpack.c.b16 %v2755, %v2753
        %v3432 = vpack.c.b16 %v2756, %v2754
        %v3433 = vpack.c.b16 %v2759, %v2757
        %v3434 = vpack.c.b16 %v2760, %v2758
        %v3435 = vpack.c.b16 %v2763, %v2761
        %v3436 = vpack.c.b16 %v2764, %v2762
        %v3437 = vpack.c.b16 %v2767, %v2765
        %v3438 = vpack.c.b16 %v2768, %v2766
        %v3439 = vpack.c.b16 %v2771, %v2769
        %v3440 = vpack.c.b16 %v2772, %v2770
        %v3441 = vpack.c.b16 %v2775, %v2773
        %v3442 = vpack.c.b16 %v2776, %v2774
        %v3443 = vpack.c.b16 %v2779, %v2777
        %v3444 = vpack.c.b16 %v2780, %v2778
        %v3445 = vpack.c.b16 %v2783, %v2781
        %v3446 = vpack.c.b16 %v2784, %v2782
        %v3447 = vpack.c.b16 %v2787, %v2785
        %v3448 = vpack.c.b16 %v2788, %v2786
        %v3449 = vpack.c.b16 %v2791, %v2789
        %v3450 = vpack.c.b16 %v2792, %v2790
        %v3451 = vpack.c.b16 %v2795, %v2793
        %v3452 = vpack.c.b16 %v2796, %v2794
        %v3453 = vpack.c.b16 %v2799, %v2797
        %v3454 = vpack.c.b16 %v2800, %v2798
        %v3455 = vpack.c.b16 %v2803, %v2801
        %v3456 = vpack.c.b16 %v2804, %v2802
        %v3457 = vpack.c.b16 %v2807, %v2805
        %v3458 = vpack.c.b16 %v2808, %v2806
        %v3459 = vpack.c.b16 %v2811, %v2809
        %v3460 = vpack.c.b16 %v2812, %v2810
        %v3461 = vpack.c.b16 %v2815, %v2813
        %v3462 = vpack.c.b16 %v2816, %v2814
        %v3463 = vpack.c.b16 %v2819, %v2817
        %v3464 = vpack.c.b16 %v2820, %v2818
        %v3465 = vpack.c.b16 %v2823, %v2821
        %v3466 = vpack.c.b16 %v2824, %v2822
        %v3467 = vpack.c.b16 %v2827, %v2825
        %v3468 = vpack.c.b16 %v2828, %v2826
        %v3469 = vpack.c.b16 %v2831, %v2829
        %v3470 = vpack.c.b16 %v2832, %v2830
        %v3471 = vpack.c.b16 %v2835, %v2833
        %v3472 = vpack.c.b16 %v2836, %v2834
        %v3473 = vpack.c.b16 %v2839, %v2837
        %v3474 = vpack.c.b16 %v2840, %v2838
        %v3475 = vpack.c.b16 %v2843, %v2841
        %v3476 = vpack.c.b16 %v2844, %v2842
        %v3477 = vpack.c.b16 %v2847, %v2845
        %v3478 = vpack.c.b16 %v2848, %v2846
        %v3479 = vpack.c.b16 %v2851, %v2849
        %v3480 = vpack.c.b16 %v2852, %v2850
        %v3481 = vpack.c.b16 %v2855, %v2853
        %v3482 = vpack.c.b16 %v2856, %v2854
        %v3483 = vpack.c.b16 %v2859, %v2857
        %v3484 = vpack.c.b16 %v2860, %v2858
        %v3485 = vpack.c.b16 %v2863, %v2861
        %v3486 = vpack.c.b16 %v2864, %v2862
        %v3487 = vpack.c.b16 %v2867, %v2865
        %v3488 = vpack.c.b16 %v2868, %v2866
        %v3489 = vpack.c.b16 %v2871, %v2869
        %v3490 = vpack.c.b16 %v2872, %v2870
        %v3491 = vpack.c.b16 %v2875, %v2873
        %v3492 = vpack.c.b16 %v2876, %v2874
        %v3493 = vpack.c.b16 %v2879, %v2877
        %v3494 = vpack.c.b16 %v2880, %v2878
        %v3495 = vpack.c.b16 %v2883, %v2881
        %v3496 = vpack.c.b16 %v2884, %v2882
        %v3497 = vpack.c.b16 %v2887, %v2885
        %v3498 = vpack.c.b16 %v2888, %v2886
        %v3499 = vpack.c.b16 %v2891, %v2889
        %v3500 = vpack.c.b16 %v2892, %v2890
        %v3501 = vpack.c.b16 %v2895, %v2893
        %v3502 = vpack.c.b16 %v2896, %v2894
        %v3503 = vpack.c.b16 %v2899, %v2897
        %v3504 = vpack.c.b16 %v2900, %v2898
        %v3505 = vpack.c.b16 %v2903, %v2901
        %v3506 = vpack.c.b16 %v2904, %v2902
        %v3507 = vpack.c.b16 %v2907, %v2905
        %v3508 = vpack.c.b16 %v2908, %v2906
        %v3509 = vpack.c.b16 %v2911, %v2909
        %v3510 = vpack.c.b16 %v2912, %v2910
        %v3511 = vpack.c.b16 %v2915, %v2913
        %v3512 = vpack.c.b16 %v2916, %v2914
        %v3513 = vpack.c.b16 %v2919, %v2917
        %v3514 = vpack.c.b16 %v2920, %v2918
        %v3515 = vpack.c.b16 %v2923, %v2921
        %v3516 = vpack.c.b16 %v2924, %v2922
        %4109 = vmatpush.bf16.msra.mxu0 %v2939
        %4110 = vmatpush.bf16.msra.mxu0 %v2937
        %4111 = vmatpush.bf16.msra.mxu0 %v2935
        %4112 = vmatpush.bf16.msra.mxu0 %v2933
        %4113 = vmatpush.bf16.msra.mxu0 %v2931
        %4114 = vmatpush.bf16.msra.mxu0 %v2929
        %4115 = vmatpush.bf16.msra.mxu0 %v2927
        %4116 = vmatpush.bf16.msra.mxu0 %v2925
        %4117 = vmatmul.bf16.gmra.mxu0 %v1075
        %v4118 = vpop.f32.mrf.mxu0
        %v4119 = vadd.f32 0.0, %v4118
        %v4120 = vpop.f32.mrf.mxu0
        %v4121 = vadd.f32 0.0, %v4120
        %4122 = vdwg.mxu0
        %4123 = vmatpush.bf16.msra.mxu0 %v2955
        %4124 = vmatpush.bf16.msra.mxu0 %v2953
        %4125 = vmatpush.bf16.msra.mxu0 %v2951
        %4126 = vmatpush.bf16.msra.mxu0 %v2949
        %4127 = vmatpush.bf16.msra.mxu0 %v2947
        %4128 = vmatpush.bf16.msra.mxu0 %v2945
        %4129 = vmatpush.bf16.msra.mxu0 %v2943
        %4130 = vmatpush.bf16.msra.mxu0 %v2941
        %4131 = vmatmul.bf16.gmra.mxu0 %v1076
        %v4132 = vpop.f32.mrf.mxu0
        %v4133 = vadd.f32 %v4119, %v4132
        %v4134 = vpop.f32.mrf.mxu0
        %v4135 = vadd.f32 %v4121, %v4134
        %4136 = vdwg.mxu0
        %4137 = vmatpush.bf16.msra.mxu0 %v2971
        %4138 = vmatpush.bf16.msra.mxu0 %v2969
        %4139 = vmatpush.bf16.msra.mxu0 %v2967
        %4140 = vmatpush.bf16.msra.mxu0 %v2965
        %4141 = vmatpush.bf16.msra.mxu0 %v2963
        %4142 = vmatpush.bf16.msra.mxu0 %v2961
        %4143 = vmatpush.bf16.msra.mxu0 %v2959
        %4144 = vmatpush.bf16.msra.mxu0 %v2957
        %4145 = vmatmul.bf16.gmra.mxu0 %v1077
        %v4146 = vpop.f32.mrf.mxu0
        %v4147 = vadd.f32 %v4133, %v4146
        %v4148 = vpop.f32.mrf.mxu0
        %v4149 = vadd.f32 %v4135, %v4148
        %4150 = vdwg.mxu0
        %4151 = vmatpush.bf16.msra.mxu0 %v2987
        %4152 = vmatpush.bf16.msra.mxu0 %v2985
        %4153 = vmatpush.bf16.msra.mxu0 %v2983
        %4154 = vmatpush.bf16.msra.mxu0 %v2981
        %4155 = vmatpush.bf16.msra.mxu0 %v2979
        %4156 = vmatpush.bf16.msra.mxu0 %v2977
        %4157 = vmatpush.bf16.msra.mxu0 %v2975
        %4158 = vmatpush.bf16.msra.mxu0 %v2973
        %4159 = vmatmul.bf16.gmra.mxu0 %v1078
        %v4160 = vpop.f32.mrf.mxu0
        %v4161 = vadd.f32 %v4147, %v4160
        %v4162 = vpop.f32.mrf.mxu0
        %v4163 = vadd.f32 %v4149, %v4162
        %4164 = vdwg.mxu0
        %4165 = vmatpush.bf16.msra.mxu0 %v3003
        %4166 = vmatpush.bf16.msra.mxu0 %v3001
        %4167 = vmatpush.bf16.msra.mxu0 %v2999
        %4168 = vmatpush.bf16.msra.mxu0 %v2997
        %4169 = vmatpush.bf16.msra.mxu0 %v2995
        %4170 = vmatpush.bf16.msra.mxu0 %v2993
        %4171 = vmatpush.bf16.msra.mxu0 %v2991
        %4172 = vmatpush.bf16.msra.mxu0 %v2989
        %4173 = vmatmul.bf16.gmra.mxu0 %v1079
        %v4174 = vpop.f32.mrf.mxu0
        %v4175 = vadd.f32 %v4161, %v4174
        %v4176 = vpop.f32.mrf.mxu0
        %v4177 = vadd.f32 %v4163, %v4176
        %4178 = vdwg.mxu0
        %4179 = vmatpush.bf16.msra.mxu0 %v3019
        %4180 = vmatpush.bf16.msra.mxu0 %v3017
        %4181 = vmatpush.bf16.msra.mxu0 %v3015
        %4182 = vmatpush.bf16.msra.mxu0 %v3013
        %4183 = vmatpush.bf16.msra.mxu0 %v3011
        %4184 = vmatpush.bf16.msra.mxu0 %v3009
        %4185 = vmatpush.bf16.msra.mxu0 %v3007
        %4186 = vmatpush.bf16.msra.mxu0 %v3005
        %4187 = vmatmul.bf16.gmra.mxu0 %v1080
        %v4188 = vpop.f32.mrf.mxu0
        %v4189 = vadd.f32 %v4175, %v4188
        %v4190 = vpop.f32.mrf.mxu0
        %v4191 = vadd.f32 %v4177, %v4190
        %4192 = vdwg.mxu0
        %4193 = vmatpush.bf16.msra.mxu0 %v3035
        %4194 = vmatpush.bf16.msra.mxu0 %v3033
        %4195 = vmatpush.bf16.msra.mxu0 %v3031
        %4196 = vmatpush.bf16.msra.mxu0 %v3029
        %4197 = vmatpush.bf16.msra.mxu0 %v3027
        %4198 = vmatpush.bf16.msra.mxu0 %v3025
        %4199 = vmatpush.bf16.msra.mxu0 %v3023
        %4200 = vmatpush.bf16.msra.mxu0 %v3021
        %4201 = vmatmul.bf16.gmra.mxu0 %v1081
        %v4202 = vpop.f32.mrf.mxu0
        %v4203 = vadd.f32 %v4189, %v4202
        %v4204 = vpop.f32.mrf.mxu0
        %v4205 = vadd.f32 %v4191, %v4204
        %4206 = vdwg.mxu0
        %4207 = vmatpush.bf16.msra.mxu0 %v3051
        %4208 = vmatpush.bf16.msra.mxu0 %v3049
        %4209 = vmatpush.bf16.msra.mxu0 %v3047
        %4210 = vmatpush.bf16.msra.mxu0 %v3045
        %4211 = vmatpush.bf16.msra.mxu0 %v3043
        %4212 = vmatpush.bf16.msra.mxu0 %v3041
        %4213 = vmatpush.bf16.msra.mxu0 %v3039
        %4214 = vmatpush.bf16.msra.mxu0 %v3037
        %4215 = vmatmul.bf16.gmra.mxu0 %v1082
        %v4216 = vpop.f32.mrf.mxu0
        %v4217 = vadd.f32 %v4203, %v4216
        %v4218 = vpop.f32.mrf.mxu0
        %v4219 = vadd.f32 %v4205, %v4218
        %4220 = vdwg.mxu0
        %4221 = vmatpush.bf16.msra.mxu0 %v3067
        %4222 = vmatpush.bf16.msra.mxu0 %v3065
        %4223 = vmatpush.bf16.msra.mxu0 %v3063
        %4224 = vmatpush.bf16.msra.mxu0 %v3061
        %4225 = vmatpush.bf16.msra.mxu0 %v3059
        %4226 = vmatpush.bf16.msra.mxu0 %v3057
        %4227 = vmatpush.bf16.msra.mxu0 %v3055
        %4228 = vmatpush.bf16.msra.mxu0 %v3053
        %4229 = vmatmul.bf16.gmra.mxu0 %v1083
        %v4230 = vpop.f32.mrf.mxu0
        %v4231 = vadd.f32 %v4217, %v4230
        %v4232 = vpop.f32.mrf.mxu0
        %v4233 = vadd.f32 %v4219, %v4232
        %4234 = vdwg.mxu0
        %4235 = vmatpush.bf16.msra.mxu0 %v3083
        %4236 = vmatpush.bf16.msra.mxu0 %v3081
        %4237 = vmatpush.bf16.msra.mxu0 %v3079
        %4238 = vmatpush.bf16.msra.mxu0 %v3077
        %4239 = vmatpush.bf16.msra.mxu0 %v3075
        %4240 = vmatpush.bf16.msra.mxu0 %v3073
        %4241 = vmatpush.bf16.msra.mxu0 %v3071
        %4242 = vmatpush.bf16.msra.mxu0 %v3069
        %4243 = vmatmul.bf16.gmra.mxu0 %v1084
        %v4244 = vpop.f32.mrf.mxu0
        %v4245 = vadd.f32 %v4231, %v4244
        %v4246 = vpop.f32.mrf.mxu0
        %v4247 = vadd.f32 %v4233, %v4246
        %4248 = vdwg.mxu0
        %4249 = vmatpush.bf16.msra.mxu0 %v3099
        %4250 = vmatpush.bf16.msra.mxu0 %v3097
        %4251 = vmatpush.bf16.msra.mxu0 %v3095
        %4252 = vmatpush.bf16.msra.mxu0 %v3093
        %4253 = vmatpush.bf16.msra.mxu0 %v3091
        %4254 = vmatpush.bf16.msra.mxu0 %v3089
        %4255 = vmatpush.bf16.msra.mxu0 %v3087
        %4256 = vmatpush.bf16.msra.mxu0 %v3085
        %4257 = vmatmul.bf16.gmra.mxu0 %v1085
        %v4258 = vpop.f32.mrf.mxu0
        %v4259 = vadd.f32 %v4245, %v4258
        %v4260 = vpop.f32.mrf.mxu0
        %v4261 = vadd.f32 %v4247, %v4260
        %4262 = vdwg.mxu0
        %4263 = vmatpush.bf16.msra.mxu0 %v3115
        %4264 = vmatpush.bf16.msra.mxu0 %v3113
        %4265 = vmatpush.bf16.msra.mxu0 %v3111
        %4266 = vmatpush.bf16.msra.mxu0 %v3109
        %4267 = vmatpush.bf16.msra.mxu0 %v3107
        %4268 = vmatpush.bf16.msra.mxu0 %v3105
        %4269 = vmatpush.bf16.msra.mxu0 %v3103
        %4270 = vmatpush.bf16.msra.mxu0 %v3101
        %4271 = vmatmul.bf16.gmra.mxu0 %v1086
        %v4272 = vpop.f32.mrf.mxu0
        %v4273 = vadd.f32 %v4259, %v4272
        %v4274 = vpop.f32.mrf.mxu0
        %v4275 = vadd.f32 %v4261, %v4274
        %4276 = vdwg.mxu0
        %4277 = vmatpush.bf16.msra.mxu0 %v3131
        %4278 = vmatpush.bf16.msra.mxu0 %v3129
        %4279 = vmatpush.bf16.msra.mxu0 %v3127
        %4280 = vmatpush.bf16.msra.mxu0 %v3125
        %4281 = vmatpush.bf16.msra.mxu0 %v3123
        %4282 = vmatpush.bf16.msra.mxu0 %v3121
        %4283 = vmatpush.bf16.msra.mxu0 %v3119
        %4284 = vmatpush.bf16.msra.mxu0 %v3117
        %4285 = vmatmul.bf16.gmra.mxu0 %v1087
        %v4286 = vpop.f32.mrf.mxu0
        %v4287 = vadd.f32 %v4273, %v4286
        %v4288 = vpop.f32.mrf.mxu0
        %v4289 = vadd.f32 %v4275, %v4288
        %4290 = vdwg.mxu0
        %4291 = vmatpush.bf16.msra.mxu0 %v3147
        %4292 = vmatpush.bf16.msra.mxu0 %v3145
        %4293 = vmatpush.bf16.msra.mxu0 %v3143
        %4294 = vmatpush.bf16.msra.mxu0 %v3141
        %4295 = vmatpush.bf16.msra.mxu0 %v3139
        %4296 = vmatpush.bf16.msra.mxu0 %v3137
        %4297 = vmatpush.bf16.msra.mxu0 %v3135
        %4298 = vmatpush.bf16.msra.mxu0 %v3133
        %4299 = vmatmul.bf16.gmra.mxu0 %v1088
        %v4300 = vpop.f32.mrf.mxu0
        %v4301 = vadd.f32 %v4287, %v4300
        %v4302 = vpop.f32.mrf.mxu0
        %v4303 = vadd.f32 %v4289, %v4302
        %4304 = vdwg.mxu0
        %4305 = vmatpush.bf16.msra.mxu0 %v3163
        %4306 = vmatpush.bf16.msra.mxu0 %v3161
        %4307 = vmatpush.bf16.msra.mxu0 %v3159
        %4308 = vmatpush.bf16.msra.mxu0 %v3157
        %4309 = vmatpush.bf16.msra.mxu0 %v3155
        %4310 = vmatpush.bf16.msra.mxu0 %v3153
        %4311 = vmatpush.bf16.msra.mxu0 %v3151
        %4312 = vmatpush.bf16.msra.mxu0 %v3149
        %4313 = vmatmul.bf16.gmra.mxu0 %v1089
        %v4314 = vpop.f32.mrf.mxu0
        %v4315 = vadd.f32 %v4301, %v4314
        %v4316 = vpop.f32.mrf.mxu0
        %v4317 = vadd.f32 %v4303, %v4316
        %4318 = vdwg.mxu0
        %4319 = vmatpush.bf16.msra.mxu0 %v3179
        %4320 = vmatpush.bf16.msra.mxu0 %v3177
        %4321 = vmatpush.bf16.msra.mxu0 %v3175
        %4322 = vmatpush.bf16.msra.mxu0 %v3173
        %4323 = vmatpush.bf16.msra.mxu0 %v3171
        %4324 = vmatpush.bf16.msra.mxu0 %v3169
        %4325 = vmatpush.bf16.msra.mxu0 %v3167
        %4326 = vmatpush.bf16.msra.mxu0 %v3165
        %4327 = vmatmul.bf16.gmra.mxu0 %v1090
        %v4328 = vpop.f32.mrf.mxu0
        %v4329 = vadd.f32 %v4315, %v4328
        %v4330 = vpop.f32.mrf.mxu0
        %v4331 = vadd.f32 %v4317, %v4330
        %4332 = vdwg.mxu0
        %4333 = vmatpush.bf16.msra.mxu0 %v3195
        %4334 = vmatpush.bf16.msra.mxu0 %v3193
        %4335 = vmatpush.bf16.msra.mxu0 %v3191
        %4336 = vmatpush.bf16.msra.mxu0 %v3189
        %4337 = vmatpush.bf16.msra.mxu0 %v3187
        %4338 = vmatpush.bf16.msra.mxu0 %v3185
        %4339 = vmatpush.bf16.msra.mxu0 %v3183
        %4340 = vmatpush.bf16.msra.mxu0 %v3181
        %4341 = vmatmul.bf16.gmra.mxu0 %v1091
        %v4342 = vpop.f32.mrf.mxu0
        %v4343 = vadd.f32 %v4329, %v4342
        %v4344 = vpop.f32.mrf.mxu0
        %v4345 = vadd.f32 %v4331, %v4344
        %4346 = vdwg.mxu0
        %4347 = vmatpush.bf16.msra.mxu0 %v3211
        %4348 = vmatpush.bf16.msra.mxu0 %v3209
        %4349 = vmatpush.bf16.msra.mxu0 %v3207
        %4350 = vmatpush.bf16.msra.mxu0 %v3205
        %4351 = vmatpush.bf16.msra.mxu0 %v3203
        %4352 = vmatpush.bf16.msra.mxu0 %v3201
        %4353 = vmatpush.bf16.msra.mxu0 %v3199
        %4354 = vmatpush.bf16.msra.mxu0 %v3197
        %4355 = vmatmul.bf16.gmra.mxu0 %v1092
        %v4356 = vpop.f32.mrf.mxu0
        %v4357 = vadd.f32 %v4343, %v4356
        %v4358 = vpop.f32.mrf.mxu0
        %v4359 = vadd.f32 %v4345, %v4358
        %4360 = vdwg.mxu0
        %4361 = vmatpush.bf16.msra.mxu0 %v3227
        %4362 = vmatpush.bf16.msra.mxu0 %v3225
        %4363 = vmatpush.bf16.msra.mxu0 %v3223
        %4364 = vmatpush.bf16.msra.mxu0 %v3221
        %4365 = vmatpush.bf16.msra.mxu0 %v3219
        %4366 = vmatpush.bf16.msra.mxu0 %v3217
        %4367 = vmatpush.bf16.msra.mxu0 %v3215
        %4368 = vmatpush.bf16.msra.mxu0 %v3213
        %4369 = vmatmul.bf16.gmra.mxu0 %v1093
        %v4370 = vpop.f32.mrf.mxu0
        %v4371 = vadd.f32 %v4357, %v4370
        %v4372 = vpop.f32.mrf.mxu0
        %v4373 = vadd.f32 %v4359, %v4372
        %4374 = vdwg.mxu0
        %4375 = vmatpush.bf16.msra.mxu0 %v3243
        %4376 = vmatpush.bf16.msra.mxu0 %v3241
        %4377 = vmatpush.bf16.msra.mxu0 %v3239
        %4378 = vmatpush.bf16.msra.mxu0 %v3237
        %4379 = vmatpush.bf16.msra.mxu0 %v3235
        %4380 = vmatpush.bf16.msra.mxu0 %v3233
        %4381 = vmatpush.bf16.msra.mxu0 %v3231
        %4382 = vmatpush.bf16.msra.mxu0 %v3229
        %4383 = vmatmul.bf16.gmra.mxu0 %v1094
        %v4384 = vpop.f32.mrf.mxu0
        %v4385 = vadd.f32 %v4371, %v4384
        %v4386 = vpop.f32.mrf.mxu0
        %v4387 = vadd.f32 %v4373, %v4386
        %4388 = vdwg.mxu0
        %4389 = vmatpush.bf16.msra.mxu0 %v3259
        %4390 = vmatpush.bf16.msra.mxu0 %v3257
        %4391 = vmatpush.bf16.msra.mxu0 %v3255
        %4392 = vmatpush.bf16.msra.mxu0 %v3253
        %4393 = vmatpush.bf16.msra.mxu0 %v3251
        %4394 = vmatpush.bf16.msra.mxu0 %v3249
        %4395 = vmatpush.bf16.msra.mxu0 %v3247
        %4396 = vmatpush.bf16.msra.mxu0 %v3245
        %4397 = vmatmul.bf16.gmra.mxu0 %v1095
        %v4398 = vpop.f32.mrf.mxu0
        %v4399 = vadd.f32 %v4385, %v4398
        %v4400 = vpop.f32.mrf.mxu0
        %v4401 = vadd.f32 %v4387, %v4400
        %4402 = vdwg.mxu0
        %4403 = vmatpush.bf16.msra.mxu0 %v3275
        %4404 = vmatpush.bf16.msra.mxu0 %v3273
        %4405 = vmatpush.bf16.msra.mxu0 %v3271
        %4406 = vmatpush.bf16.msra.mxu0 %v3269
        %4407 = vmatpush.bf16.msra.mxu0 %v3267
        %4408 = vmatpush.bf16.msra.mxu0 %v3265
        %4409 = vmatpush.bf16.msra.mxu0 %v3263
        %4410 = vmatpush.bf16.msra.mxu0 %v3261
        %4411 = vmatmul.bf16.gmra.mxu0 %v1096
        %v4412 = vpop.f32.mrf.mxu0
        %v4413 = vadd.f32 %v4399, %v4412
        %v4414 = vpop.f32.mrf.mxu0
        %v4415 = vadd.f32 %v4401, %v4414
        %4416 = vdwg.mxu0
        %4417 = vmatpush.bf16.msra.mxu0 %v3291
        %4418 = vmatpush.bf16.msra.mxu0 %v3289
        %4419 = vmatpush.bf16.msra.mxu0 %v3287
        %4420 = vmatpush.bf16.msra.mxu0 %v3285
        %4421 = vmatpush.bf16.msra.mxu0 %v3283
        %4422 = vmatpush.bf16.msra.mxu0 %v3281
        %4423 = vmatpush.bf16.msra.mxu0 %v3279
        %4424 = vmatpush.bf16.msra.mxu0 %v3277
        %4425 = vmatmul.bf16.gmra.mxu0 %v1097
        %v4426 = vpop.f32.mrf.mxu0
        %v4427 = vadd.f32 %v4413, %v4426
        %v4428 = vpop.f32.mrf.mxu0
        %v4429 = vadd.f32 %v4415, %v4428
        %4430 = vdwg.mxu0
        %4431 = vmatpush.bf16.msra.mxu0 %v3307
        %4432 = vmatpush.bf16.msra.mxu0 %v3305
        %4433 = vmatpush.bf16.msra.mxu0 %v3303
        %4434 = vmatpush.bf16.msra.mxu0 %v3301
        %4435 = vmatpush.bf16.msra.mxu0 %v3299
        %4436 = vmatpush.bf16.msra.mxu0 %v3297
        %4437 = vmatpush.bf16.msra.mxu0 %v3295
        %4438 = vmatpush.bf16.msra.mxu0 %v3293
        %4439 = vmatmul.bf16.gmra.mxu0 %v1098
        %v4440 = vpop.f32.mrf.mxu0
        %v4441 = vadd.f32 %v4427, %v4440
        %v4442 = vpop.f32.mrf.mxu0
        %v4443 = vadd.f32 %v4429, %v4442
        %4444 = vdwg.mxu0
        %4445 = vmatpush.bf16.msra.mxu0 %v3323
        %4446 = vmatpush.bf16.msra.mxu0 %v3321
        %4447 = vmatpush.bf16.msra.mxu0 %v3319
        %4448 = vmatpush.bf16.msra.mxu0 %v3317
        %4449 = vmatpush.bf16.msra.mxu0 %v3315
        %4450 = vmatpush.bf16.msra.mxu0 %v3313
        %4451 = vmatpush.bf16.msra.mxu0 %v3311
        %4452 = vmatpush.bf16.msra.mxu0 %v3309
        %4453 = vmatmul.bf16.gmra.mxu0 %v1099
        %v4454 = vpop.f32.mrf.mxu0
        %v4455 = vadd.f32 %v4441, %v4454
        %v4456 = vpop.f32.mrf.mxu0
        %v4457 = vadd.f32 %v4443, %v4456
        %4458 = vdwg.mxu0
        %4459 = vmatpush.bf16.msra.mxu0 %v3339
        %4460 = vmatpush.bf16.msra.mxu0 %v3337
        %4461 = vmatpush.bf16.msra.mxu0 %v3335
        %4462 = vmatpush.bf16.msra.mxu0 %v3333
        %4463 = vmatpush.bf16.msra.mxu0 %v3331
        %4464 = vmatpush.bf16.msra.mxu0 %v3329
        %4465 = vmatpush.bf16.msra.mxu0 %v3327
        %4466 = vmatpush.bf16.msra.mxu0 %v3325
        %4467 = vmatmul.bf16.gmra.mxu0 %v1100
        %v4468 = vpop.f32.mrf.mxu0
        %v4469 = vadd.f32 %v4455, %v4468
        %v4470 = vpop.f32.mrf.mxu0
        %v4471 = vadd.f32 %v4457, %v4470
        %4472 = vdwg.mxu0
        %4473 = vmatpush.bf16.msra.mxu0 %v3355
        %4474 = vmatpush.bf16.msra.mxu0 %v3353
        %4475 = vmatpush.bf16.msra.mxu0 %v3351
        %4476 = vmatpush.bf16.msra.mxu0 %v3349
        %4477 = vmatpush.bf16.msra.mxu0 %v3347
        %4478 = vmatpush.bf16.msra.mxu0 %v3345
        %4479 = vmatpush.bf16.msra.mxu0 %v3343
        %4480 = vmatpush.bf16.msra.mxu0 %v3341
        %4481 = vmatmul.bf16.gmra.mxu0 %v1101
        %v4482 = vpop.f32.mrf.mxu0
        %v4483 = vadd.f32 %v4469, %v4482
        %v4484 = vpop.f32.mrf.mxu0
        %v4485 = vadd.f32 %v4471, %v4484
        %4486 = vdwg.mxu0
        %4487 = vmatpush.bf16.msra.mxu0 %v3371
        %4488 = vmatpush.bf16.msra.mxu0 %v3369
        %4489 = vmatpush.bf16.msra.mxu0 %v3367
        %4490 = vmatpush.bf16.msra.mxu0 %v3365
        %4491 = vmatpush.bf16.msra.mxu0 %v3363
        %4492 = vmatpush.bf16.msra.mxu0 %v3361
        %4493 = vmatpush.bf16.msra.mxu0 %v3359
        %4494 = vmatpush.bf16.msra.mxu0 %v3357
        %4495 = vmatmul.bf16.gmra.mxu0 %v1102
        %v4496 = vpop.f32.mrf.mxu0
        %v4497 = vadd.f32 %v4483, %v4496
        %v4498 = vpop.f32.mrf.mxu0
        %v4499 = vadd.f32 %v4485, %v4498
        %4500 = vdwg.mxu0
        %4501 = vmatpush.bf16.msra.mxu0 %v3387
        %4502 = vmatpush.bf16.msra.mxu0 %v3385
        %4503 = vmatpush.bf16.msra.mxu0 %v3383
        %4504 = vmatpush.bf16.msra.mxu0 %v3381
        %4505 = vmatpush.bf16.msra.mxu0 %v3379
        %4506 = vmatpush.bf16.msra.mxu0 %v3377
        %4507 = vmatpush.bf16.msra.mxu0 %v3375
        %4508 = vmatpush.bf16.msra.mxu0 %v3373
        %4509 = vmatmul.bf16.gmra.mxu0 %v1103
        %v4510 = vpop.f32.mrf.mxu0
        %v4511 = vadd.f32 %v4497, %v4510
        %v4512 = vpop.f32.mrf.mxu0
        %v4513 = vadd.f32 %v4499, %v4512
        %4514 = vdwg.mxu0
        %4515 = vmatpush.bf16.msra.mxu0 %v3403
        %4516 = vmatpush.bf16.msra.mxu0 %v3401
        %4517 = vmatpush.bf16.msra.mxu0 %v3399
        %4518 = vmatpush.bf16.msra.mxu0 %v3397
        %4519 = vmatpush.bf16.msra.mxu0 %v3395
        %4520 = vmatpush.bf16.msra.mxu0 %v3393
        %4521 = vmatpush.bf16.msra.mxu0 %v3391
        %4522 = vmatpush.bf16.msra.mxu0 %v3389
        %4523 = vmatmul.bf16.gmra.mxu0 %v1104
        %v4524 = vpop.f32.mrf.mxu0
        %v4525 = vadd.f32 %v4511, %v4524
        %v4526 = vpop.f32.mrf.mxu0
        %v4527 = vadd.f32 %v4513, %v4526
        %4528 = vdwg.mxu0
        %4529 = vmatpush.bf16.msra.mxu0 %v3419
        %4530 = vmatpush.bf16.msra.mxu0 %v3417
        %4531 = vmatpush.bf16.msra.mxu0 %v3415
        %4532 = vmatpush.bf16.msra.mxu0 %v3413
        %4533 = vmatpush.bf16.msra.mxu0 %v3411
        %4534 = vmatpush.bf16.msra.mxu0 %v3409
        %4535 = vmatpush.bf16.msra.mxu0 %v3407
        %4536 = vmatpush.bf16.msra.mxu0 %v3405
        %4537 = vmatmul.bf16.gmra.mxu0 %v1105
        %v4538 = vpop.f32.mrf.mxu0
        %v4539 = vadd.f32 %v4525, %v4538
        %v4540 = vpop.f32.mrf.mxu0
        %v4541 = vadd.f32 %v4527, %v4540
        %4542 = vdwg.mxu0
        %4543 = vmatpush.bf16.msra.mxu0 %v3435
        %4544 = vmatpush.bf16.msra.mxu0 %v3433
        %4545 = vmatpush.bf16.msra.mxu0 %v3431
        %4546 = vmatpush.bf16.msra.mxu0 %v3429
        %4547 = vmatpush.bf16.msra.mxu0 %v3427
        %4548 = vmatpush.bf16.msra.mxu0 %v3425
        %4549 = vmatpush.bf16.msra.mxu0 %v3423
        %4550 = vmatpush.bf16.msra.mxu0 %v3421
        %4551 = vmatmul.bf16.gmra.mxu0 %v1106
        %v4552 = vpop.f32.mrf.mxu0
        %v4553 = vadd.f32 %v4539, %v4552
        %v4554 = vpop.f32.mrf.mxu0
        %v4555 = vadd.f32 %v4541, %v4554
        %4556 = vdwg.mxu0
        %4557 = vmatpush.bf16.msra.mxu0 %v3451
        %4558 = vmatpush.bf16.msra.mxu0 %v3449
        %4559 = vmatpush.bf16.msra.mxu0 %v3447
        %4560 = vmatpush.bf16.msra.mxu0 %v3445
        %4561 = vmatpush.bf16.msra.mxu0 %v3443
        %4562 = vmatpush.bf16.msra.mxu0 %v3441
        %4563 = vmatpush.bf16.msra.mxu0 %v3439
        %4564 = vmatpush.bf16.msra.mxu0 %v3437
        %4565 = vmatmul.bf16.gmra.mxu0 %v1107
        %v4566 = vpop.f32.mrf.mxu0
        %v4567 = vadd.f32 %v4553, %v4566
        %v4568 = vpop.f32.mrf.mxu0
        %v4569 = vadd.f32 %v4555, %v4568
        %4570 = vdwg.mxu0
        %4571 = vmatpush.bf16.msra.mxu0 %v3467
        %4572 = vmatpush.bf16.msra.mxu0 %v3465
        %4573 = vmatpush.bf16.msra.mxu0 %v3463
        %4574 = vmatpush.bf16.msra.mxu0 %v3461
        %4575 = vmatpush.bf16.msra.mxu0 %v3459
        %4576 = vmatpush.bf16.msra.mxu0 %v3457
        %4577 = vmatpush.bf16.msra.mxu0 %v3455
        %4578 = vmatpush.bf16.msra.mxu0 %v3453
        %4579 = vmatmul.bf16.gmra.mxu0 %v1108
        %v4580 = vpop.f32.mrf.mxu0
        %v4581 = vadd.f32 %v4567, %v4580
        %v4582 = vpop.f32.mrf.mxu0
        %v4583 = vadd.f32 %v4569, %v4582
        %4584 = vdwg.mxu0
        %4585 = vmatpush.bf16.msra.mxu0 %v3483
        %4586 = vmatpush.bf16.msra.mxu0 %v3481
        %4587 = vmatpush.bf16.msra.mxu0 %v3479
        %4588 = vmatpush.bf16.msra.mxu0 %v3477
        %4589 = vmatpush.bf16.msra.mxu0 %v3475
        %4590 = vmatpush.bf16.msra.mxu0 %v3473
        %4591 = vmatpush.bf16.msra.mxu0 %v3471
        %4592 = vmatpush.bf16.msra.mxu0 %v3469
        %4593 = vmatmul.bf16.gmra.mxu0 %v1109
        %v4594 = vpop.f32.mrf.mxu0
        %v4595 = vadd.f32 %v4581, %v4594
        %v4596 = vpop.f32.mrf.mxu0
        %v4597 = vadd.f32 %v4583, %v4596
        %4598 = vdwg.mxu0
        %4599 = vmatpush.bf16.msra.mxu0 %v3499
        %4600 = vmatpush.bf16.msra.mxu0 %v3497
        %4601 = vmatpush.bf16.msra.mxu0 %v3495
        %4602 = vmatpush.bf16.msra.mxu0 %v3493
        %4603 = vmatpush.bf16.msra.mxu0 %v3491
        %4604 = vmatpush.bf16.msra.mxu0 %v3489
        %4605 = vmatpush.bf16.msra.mxu0 %v3487
        %4606 = vmatpush.bf16.msra.mxu0 %v3485
        %4607 = vmatmul.bf16.gmra.mxu0 %v1110
        %v4608 = vpop.f32.mrf.mxu0
        %v4609 = vadd.f32 %v4595, %v4608
        %v4610 = vpop.f32.mrf.mxu0
        %v4611 = vadd.f32 %v4597, %v4610
        %4612 = vdwg.mxu0
        %4613 = vmatpush.bf16.msra.mxu0 %v3515
        %4614 = vmatpush.bf16.msra.mxu0 %v3513
        %4615 = vmatpush.bf16.msra.mxu0 %v3511
        %4616 = vmatpush.bf16.msra.mxu0 %v3509
        %4617 = vmatpush.bf16.msra.mxu0 %v3507
        %4618 = vmatpush.bf16.msra.mxu0 %v3505
        %4619 = vmatpush.bf16.msra.mxu0 %v3503
        %4620 = vmatpush.bf16.msra.mxu0 %v3501
        %4621 = vmatmul.bf16.gmra.mxu0 %v1111
        %v4622 = vpop.f32.mrf.mxu0
        %v4623 = vadd.f32 %v4609, %v4622
        %v4624 = vpop.f32.mrf.mxu0
        %v4625 = vadd.f32 %v4611, %v4624
        %4626 = vdwg.mxu0
        %4627 = vmatpush.bf16.msra.mxu0 %v2940
        %4628 = vmatpush.bf16.msra.mxu0 %v2938
        %4629 = vmatpush.bf16.msra.mxu0 %v2936
        %4630 = vmatpush.bf16.msra.mxu0 %v2934
        %4631 = vmatpush.bf16.msra.mxu0 %v2932
        %4632 = vmatpush.bf16.msra.mxu0 %v2930
        %4633 = vmatpush.bf16.msra.mxu0 %v2928
        %4634 = vmatpush.bf16.msra.mxu0 %v2926
        %4635 = vmatmul.bf16.gmra.mxu0 %v1075
        %v4636 = vpop.f32.mrf.mxu0
        %v4637 = vadd.f32 0.0, %v4636
        %v4638 = vpop.f32.mrf.mxu0
        %v4639 = vadd.f32 0.0, %v4638
        %4640 = vdwg.mxu0
        %4641 = vmatpush.bf16.msra.mxu0 %v2956
        %4642 = vmatpush.bf16.msra.mxu0 %v2954
        %4643 = vmatpush.bf16.msra.mxu0 %v2952
        %4644 = vmatpush.bf16.msra.mxu0 %v2950
        %4645 = vmatpush.bf16.msra.mxu0 %v2948
        %4646 = vmatpush.bf16.msra.mxu0 %v2946
        %4647 = vmatpush.bf16.msra.mxu0 %v2944
        %4648 = vmatpush.bf16.msra.mxu0 %v2942
        %4649 = vmatmul.bf16.gmra.mxu0 %v1076
        %v4650 = vpop.f32.mrf.mxu0
        %v4651 = vadd.f32 %v4637, %v4650
        %v4652 = vpop.f32.mrf.mxu0
        %v4653 = vadd.f32 %v4639, %v4652
        %4654 = vdwg.mxu0
        %4655 = vmatpush.bf16.msra.mxu0 %v2972
        %4656 = vmatpush.bf16.msra.mxu0 %v2970
        %4657 = vmatpush.bf16.msra.mxu0 %v2968
        %4658 = vmatpush.bf16.msra.mxu0 %v2966
        %4659 = vmatpush.bf16.msra.mxu0 %v2964
        %4660 = vmatpush.bf16.msra.mxu0 %v2962
        %4661 = vmatpush.bf16.msra.mxu0 %v2960
        %4662 = vmatpush.bf16.msra.mxu0 %v2958
        %4663 = vmatmul.bf16.gmra.mxu0 %v1077
        %v4664 = vpop.f32.mrf.mxu0
        %v4665 = vadd.f32 %v4651, %v4664
        %v4666 = vpop.f32.mrf.mxu0
        %v4667 = vadd.f32 %v4653, %v4666
        %4668 = vdwg.mxu0
        %4669 = vmatpush.bf16.msra.mxu0 %v2988
        %4670 = vmatpush.bf16.msra.mxu0 %v2986
        %4671 = vmatpush.bf16.msra.mxu0 %v2984
        %4672 = vmatpush.bf16.msra.mxu0 %v2982
        %4673 = vmatpush.bf16.msra.mxu0 %v2980
        %4674 = vmatpush.bf16.msra.mxu0 %v2978
        %4675 = vmatpush.bf16.msra.mxu0 %v2976
        %4676 = vmatpush.bf16.msra.mxu0 %v2974
        %4677 = vmatmul.bf16.gmra.mxu0 %v1078
        %v4678 = vpop.f32.mrf.mxu0
        %v4679 = vadd.f32 %v4665, %v4678
        %v4680 = vpop.f32.mrf.mxu0
        %v4681 = vadd.f32 %v4667, %v4680
        %4682 = vdwg.mxu0
        %4683 = vmatpush.bf16.msra.mxu0 %v3004
        %4684 = vmatpush.bf16.msra.mxu0 %v3002
        %4685 = vmatpush.bf16.msra.mxu0 %v3000
        %4686 = vmatpush.bf16.msra.mxu0 %v2998
        %4687 = vmatpush.bf16.msra.mxu0 %v2996
        %4688 = vmatpush.bf16.msra.mxu0 %v2994
        %4689 = vmatpush.bf16.msra.mxu0 %v2992
        %4690 = vmatpush.bf16.msra.mxu0 %v2990
        %4691 = vmatmul.bf16.gmra.mxu0 %v1079
        %v4692 = vpop.f32.mrf.mxu0
        %v4693 = vadd.f32 %v4679, %v4692
        %v4694 = vpop.f32.mrf.mxu0
        %v4695 = vadd.f32 %v4681, %v4694
        %4696 = vdwg.mxu0
        %4697 = vmatpush.bf16.msra.mxu0 %v3020
        %4698 = vmatpush.bf16.msra.mxu0 %v3018
        %4699 = vmatpush.bf16.msra.mxu0 %v3016
        %4700 = vmatpush.bf16.msra.mxu0 %v3014
        %4701 = vmatpush.bf16.msra.mxu0 %v3012
        %4702 = vmatpush.bf16.msra.mxu0 %v3010
        %4703 = vmatpush.bf16.msra.mxu0 %v3008
        %4704 = vmatpush.bf16.msra.mxu0 %v3006
        %4705 = vmatmul.bf16.gmra.mxu0 %v1080
        %v4706 = vpop.f32.mrf.mxu0
        %v4707 = vadd.f32 %v4693, %v4706
        %v4708 = vpop.f32.mrf.mxu0
        %v4709 = vadd.f32 %v4695, %v4708
        %4710 = vdwg.mxu0
        %4711 = vmatpush.bf16.msra.mxu0 %v3036
        %4712 = vmatpush.bf16.msra.mxu0 %v3034
        %4713 = vmatpush.bf16.msra.mxu0 %v3032
        %4714 = vmatpush.bf16.msra.mxu0 %v3030
        %4715 = vmatpush.bf16.msra.mxu0 %v3028
        %4716 = vmatpush.bf16.msra.mxu0 %v3026
        %4717 = vmatpush.bf16.msra.mxu0 %v3024
        %4718 = vmatpush.bf16.msra.mxu0 %v3022
        %4719 = vmatmul.bf16.gmra.mxu0 %v1081
        %v4720 = vpop.f32.mrf.mxu0
        %v4721 = vadd.f32 %v4707, %v4720
        %v4722 = vpop.f32.mrf.mxu0
        %v4723 = vadd.f32 %v4709, %v4722
        %4724 = vdwg.mxu0
        %4725 = vmatpush.bf16.msra.mxu0 %v3052
        %4726 = vmatpush.bf16.msra.mxu0 %v3050
        %4727 = vmatpush.bf16.msra.mxu0 %v3048
        %4728 = vmatpush.bf16.msra.mxu0 %v3046
        %4729 = vmatpush.bf16.msra.mxu0 %v3044
        %4730 = vmatpush.bf16.msra.mxu0 %v3042
        %4731 = vmatpush.bf16.msra.mxu0 %v3040
        %4732 = vmatpush.bf16.msra.mxu0 %v3038
        %4733 = vmatmul.bf16.gmra.mxu0 %v1082
        %v4734 = vpop.f32.mrf.mxu0
        %v4735 = vadd.f32 %v4721, %v4734
        %v4736 = vpop.f32.mrf.mxu0
        %v4737 = vadd.f32 %v4723, %v4736
        %4738 = vdwg.mxu0
        %4739 = vmatpush.bf16.msra.mxu0 %v3068
        %4740 = vmatpush.bf16.msra.mxu0 %v3066
        %4741 = vmatpush.bf16.msra.mxu0 %v3064
        %4742 = vmatpush.bf16.msra.mxu0 %v3062
        %4743 = vmatpush.bf16.msra.mxu0 %v3060
        %4744 = vmatpush.bf16.msra.mxu0 %v3058
        %4745 = vmatpush.bf16.msra.mxu0 %v3056
        %4746 = vmatpush.bf16.msra.mxu0 %v3054
        %4747 = vmatmul.bf16.gmra.mxu0 %v1083
        %v4748 = vpop.f32.mrf.mxu0
        %v4749 = vadd.f32 %v4735, %v4748
        %v4750 = vpop.f32.mrf.mxu0
        %v4751 = vadd.f32 %v4737, %v4750
        %4752 = vdwg.mxu0
        %4753 = vmatpush.bf16.msra.mxu0 %v3084
        %4754 = vmatpush.bf16.msra.mxu0 %v3082
        %4755 = vmatpush.bf16.msra.mxu0 %v3080
        %4756 = vmatpush.bf16.msra.mxu0 %v3078
        %4757 = vmatpush.bf16.msra.mxu0 %v3076
        %4758 = vmatpush.bf16.msra.mxu0 %v3074
        %4759 = vmatpush.bf16.msra.mxu0 %v3072
        %4760 = vmatpush.bf16.msra.mxu0 %v3070
        %4761 = vmatmul.bf16.gmra.mxu0 %v1084
        %v4762 = vpop.f32.mrf.mxu0
        %v4763 = vadd.f32 %v4749, %v4762
        %v4764 = vpop.f32.mrf.mxu0
        %v4765 = vadd.f32 %v4751, %v4764
        %4766 = vdwg.mxu0
        %4767 = vmatpush.bf16.msra.mxu0 %v3100
        %4768 = vmatpush.bf16.msra.mxu0 %v3098
        %4769 = vmatpush.bf16.msra.mxu0 %v3096
        %4770 = vmatpush.bf16.msra.mxu0 %v3094
        %4771 = vmatpush.bf16.msra.mxu0 %v3092
        %4772 = vmatpush.bf16.msra.mxu0 %v3090
        %4773 = vmatpush.bf16.msra.mxu0 %v3088
        %4774 = vmatpush.bf16.msra.mxu0 %v3086
        %4775 = vmatmul.bf16.gmra.mxu0 %v1085
        %v4776 = vpop.f32.mrf.mxu0
        %v4777 = vadd.f32 %v4763, %v4776
        %v4778 = vpop.f32.mrf.mxu0
        %v4779 = vadd.f32 %v4765, %v4778
        %4780 = vdwg.mxu0
        %4781 = vmatpush.bf16.msra.mxu0 %v3116
        %4782 = vmatpush.bf16.msra.mxu0 %v3114
        %4783 = vmatpush.bf16.msra.mxu0 %v3112
        %4784 = vmatpush.bf16.msra.mxu0 %v3110
        %4785 = vmatpush.bf16.msra.mxu0 %v3108
        %4786 = vmatpush.bf16.msra.mxu0 %v3106
        %4787 = vmatpush.bf16.msra.mxu0 %v3104
        %4788 = vmatpush.bf16.msra.mxu0 %v3102
        %4789 = vmatmul.bf16.gmra.mxu0 %v1086
        %v4790 = vpop.f32.mrf.mxu0
        %v4791 = vadd.f32 %v4777, %v4790
        %v4792 = vpop.f32.mrf.mxu0
        %v4793 = vadd.f32 %v4779, %v4792
        %4794 = vdwg.mxu0
        %4795 = vmatpush.bf16.msra.mxu0 %v3132
        %4796 = vmatpush.bf16.msra.mxu0 %v3130
        %4797 = vmatpush.bf16.msra.mxu0 %v3128
        %4798 = vmatpush.bf16.msra.mxu0 %v3126
        %4799 = vmatpush.bf16.msra.mxu0 %v3124
        %4800 = vmatpush.bf16.msra.mxu0 %v3122
        %4801 = vmatpush.bf16.msra.mxu0 %v3120
        %4802 = vmatpush.bf16.msra.mxu0 %v3118
        %4803 = vmatmul.bf16.gmra.mxu0 %v1087
        %v4804 = vpop.f32.mrf.mxu0
        %v4805 = vadd.f32 %v4791, %v4804
        %v4806 = vpop.f32.mrf.mxu0
        %v4807 = vadd.f32 %v4793, %v4806
        %4808 = vdwg.mxu0
        %4809 = vmatpush.bf16.msra.mxu0 %v3148
        %4810 = vmatpush.bf16.msra.mxu0 %v3146
        %4811 = vmatpush.bf16.msra.mxu0 %v3144
        %4812 = vmatpush.bf16.msra.mxu0 %v3142
        %4813 = vmatpush.bf16.msra.mxu0 %v3140
        %4814 = vmatpush.bf16.msra.mxu0 %v3138
        %4815 = vmatpush.bf16.msra.mxu0 %v3136
        %4816 = vmatpush.bf16.msra.mxu0 %v3134
        %4817 = vmatmul.bf16.gmra.mxu0 %v1088
        %v4818 = vpop.f32.mrf.mxu0
        %v4819 = vadd.f32 %v4805, %v4818
        %v4820 = vpop.f32.mrf.mxu0
        %v4821 = vadd.f32 %v4807, %v4820
        %4822 = vdwg.mxu0
        %4823 = vmatpush.bf16.msra.mxu0 %v3164
        %4824 = vmatpush.bf16.msra.mxu0 %v3162
        %4825 = vmatpush.bf16.msra.mxu0 %v3160
        %4826 = vmatpush.bf16.msra.mxu0 %v3158
        %4827 = vmatpush.bf16.msra.mxu0 %v3156
        %4828 = vmatpush.bf16.msra.mxu0 %v3154
        %4829 = vmatpush.bf16.msra.mxu0 %v3152
        %4830 = vmatpush.bf16.msra.mxu0 %v3150
        %4831 = vmatmul.bf16.gmra.mxu0 %v1089
        %v4832 = vpop.f32.mrf.mxu0
        %v4833 = vadd.f32 %v4819, %v4832
        %v4834 = vpop.f32.mrf.mxu0
        %v4835 = vadd.f32 %v4821, %v4834
        %4836 = vdwg.mxu0
        %4837 = vmatpush.bf16.msra.mxu0 %v3180
        %4838 = vmatpush.bf16.msra.mxu0 %v3178
        %4839 = vmatpush.bf16.msra.mxu0 %v3176
        %4840 = vmatpush.bf16.msra.mxu0 %v3174
        %4841 = vmatpush.bf16.msra.mxu0 %v3172
        %4842 = vmatpush.bf16.msra.mxu0 %v3170
        %4843 = vmatpush.bf16.msra.mxu0 %v3168
        %4844 = vmatpush.bf16.msra.mxu0 %v3166
        %4845 = vmatmul.bf16.gmra.mxu0 %v1090
        %v4846 = vpop.f32.mrf.mxu0
        %v4847 = vadd.f32 %v4833, %v4846
        %v4848 = vpop.f32.mrf.mxu0
        %v4849 = vadd.f32 %v4835, %v4848
        %4850 = vdwg.mxu0
        %4851 = vmatpush.bf16.msra.mxu0 %v3196
        %4852 = vmatpush.bf16.msra.mxu0 %v3194
        %4853 = vmatpush.bf16.msra.mxu0 %v3192
        %4854 = vmatpush.bf16.msra.mxu0 %v3190
        %4855 = vmatpush.bf16.msra.mxu0 %v3188
        %4856 = vmatpush.bf16.msra.mxu0 %v3186
        %4857 = vmatpush.bf16.msra.mxu0 %v3184
        %4858 = vmatpush.bf16.msra.mxu0 %v3182
        %4859 = vmatmul.bf16.gmra.mxu0 %v1091
        %v4860 = vpop.f32.mrf.mxu0
        %v4861 = vadd.f32 %v4847, %v4860
        %v4862 = vpop.f32.mrf.mxu0
        %v4863 = vadd.f32 %v4849, %v4862
        %4864 = vdwg.mxu0
        %4865 = vmatpush.bf16.msra.mxu0 %v3212
        %4866 = vmatpush.bf16.msra.mxu0 %v3210
        %4867 = vmatpush.bf16.msra.mxu0 %v3208
        %4868 = vmatpush.bf16.msra.mxu0 %v3206
        %4869 = vmatpush.bf16.msra.mxu0 %v3204
        %4870 = vmatpush.bf16.msra.mxu0 %v3202
        %4871 = vmatpush.bf16.msra.mxu0 %v3200
        %4872 = vmatpush.bf16.msra.mxu0 %v3198
        %4873 = vmatmul.bf16.gmra.mxu0 %v1092
        %v4874 = vpop.f32.mrf.mxu0
        %v4875 = vadd.f32 %v4861, %v4874
        %v4876 = vpop.f32.mrf.mxu0
        %v4877 = vadd.f32 %v4863, %v4876
        %4878 = vdwg.mxu0
        %4879 = vmatpush.bf16.msra.mxu0 %v3228
        %4880 = vmatpush.bf16.msra.mxu0 %v3226
        %4881 = vmatpush.bf16.msra.mxu0 %v3224
        %4882 = vmatpush.bf16.msra.mxu0 %v3222
        %4883 = vmatpush.bf16.msra.mxu0 %v3220
        %4884 = vmatpush.bf16.msra.mxu0 %v3218
        %4885 = vmatpush.bf16.msra.mxu0 %v3216
        %4886 = vmatpush.bf16.msra.mxu0 %v3214
        %4887 = vmatmul.bf16.gmra.mxu0 %v1093
        %v4888 = vpop.f32.mrf.mxu0
        %v4889 = vadd.f32 %v4875, %v4888
        %v4890 = vpop.f32.mrf.mxu0
        %v4891 = vadd.f32 %v4877, %v4890
        %4892 = vdwg.mxu0
        %4893 = vmatpush.bf16.msra.mxu0 %v3244
        %4894 = vmatpush.bf16.msra.mxu0 %v3242
        %4895 = vmatpush.bf16.msra.mxu0 %v3240
        %4896 = vmatpush.bf16.msra.mxu0 %v3238
        %4897 = vmatpush.bf16.msra.mxu0 %v3236
        %4898 = vmatpush.bf16.msra.mxu0 %v3234
        %4899 = vmatpush.bf16.msra.mxu0 %v3232
        %4900 = vmatpush.bf16.msra.mxu0 %v3230
        %4901 = vmatmul.bf16.gmra.mxu0 %v1094
        %v4902 = vpop.f32.mrf.mxu0
        %v4903 = vadd.f32 %v4889, %v4902
        %v4904 = vpop.f32.mrf.mxu0
        %v4905 = vadd.f32 %v4891, %v4904
        %4906 = vdwg.mxu0
        %4907 = vmatpush.bf16.msra.mxu0 %v3260
        %4908 = vmatpush.bf16.msra.mxu0 %v3258
        %4909 = vmatpush.bf16.msra.mxu0 %v3256
        %4910 = vmatpush.bf16.msra.mxu0 %v3254
        %4911 = vmatpush.bf16.msra.mxu0 %v3252
        %4912 = vmatpush.bf16.msra.mxu0 %v3250
        %4913 = vmatpush.bf16.msra.mxu0 %v3248
        %4914 = vmatpush.bf16.msra.mxu0 %v3246
        %4915 = vmatmul.bf16.gmra.mxu0 %v1095
        %v4916 = vpop.f32.mrf.mxu0
        %v4917 = vadd.f32 %v4903, %v4916
        %v4918 = vpop.f32.mrf.mxu0
        %v4919 = vadd.f32 %v4905, %v4918
        %4920 = vdwg.mxu0
        %4921 = vmatpush.bf16.msra.mxu0 %v3276
        %4922 = vmatpush.bf16.msra.mxu0 %v3274
        %4923 = vmatpush.bf16.msra.mxu0 %v3272
        %4924 = vmatpush.bf16.msra.mxu0 %v3270
        %4925 = vmatpush.bf16.msra.mxu0 %v3268
        %4926 = vmatpush.bf16.msra.mxu0 %v3266
        %4927 = vmatpush.bf16.msra.mxu0 %v3264
        %4928 = vmatpush.bf16.msra.mxu0 %v3262
        %4929 = vmatmul.bf16.gmra.mxu0 %v1096
        %v4930 = vpop.f32.mrf.mxu0
        %v4931 = vadd.f32 %v4917, %v4930
        %v4932 = vpop.f32.mrf.mxu0
        %v4933 = vadd.f32 %v4919, %v4932
        %4934 = vdwg.mxu0
        %4935 = vmatpush.bf16.msra.mxu0 %v3292
        %4936 = vmatpush.bf16.msra.mxu0 %v3290
        %4937 = vmatpush.bf16.msra.mxu0 %v3288
        %4938 = vmatpush.bf16.msra.mxu0 %v3286
        %4939 = vmatpush.bf16.msra.mxu0 %v3284
        %4940 = vmatpush.bf16.msra.mxu0 %v3282
        %4941 = vmatpush.bf16.msra.mxu0 %v3280
        %4942 = vmatpush.bf16.msra.mxu0 %v3278
        %4943 = vmatmul.bf16.gmra.mxu0 %v1097
        %v4944 = vpop.f32.mrf.mxu0
        %v4945 = vadd.f32 %v4931, %v4944
        %v4946 = vpop.f32.mrf.mxu0
        %v4947 = vadd.f32 %v4933, %v4946
        %4948 = vdwg.mxu0
        %4949 = vmatpush.bf16.msra.mxu0 %v3308
        %4950 = vmatpush.bf16.msra.mxu0 %v3306
        %4951 = vmatpush.bf16.msra.mxu0 %v3304
        %4952 = vmatpush.bf16.msra.mxu0 %v3302
        %4953 = vmatpush.bf16.msra.mxu0 %v3300
        %4954 = vmatpush.bf16.msra.mxu0 %v3298
        %4955 = vmatpush.bf16.msra.mxu0 %v3296
        %4956 = vmatpush.bf16.msra.mxu0 %v3294
        %4957 = vmatmul.bf16.gmra.mxu0 %v1098
        %v4958 = vpop.f32.mrf.mxu0
        %v4959 = vadd.f32 %v4945, %v4958
        %v4960 = vpop.f32.mrf.mxu0
        %v4961 = vadd.f32 %v4947, %v4960
        %4962 = vdwg.mxu0
        %4963 = vmatpush.bf16.msra.mxu0 %v3324
        %4964 = vmatpush.bf16.msra.mxu0 %v3322
        %4965 = vmatpush.bf16.msra.mxu0 %v3320
        %4966 = vmatpush.bf16.msra.mxu0 %v3318
        %4967 = vmatpush.bf16.msra.mxu0 %v3316
        %4968 = vmatpush.bf16.msra.mxu0 %v3314
        %4969 = vmatpush.bf16.msra.mxu0 %v3312
        %4970 = vmatpush.bf16.msra.mxu0 %v3310
        %4971 = vmatmul.bf16.gmra.mxu0 %v1099
        %v4972 = vpop.f32.mrf.mxu0
        %v4973 = vadd.f32 %v4959, %v4972
        %v4974 = vpop.f32.mrf.mxu0
        %v4975 = vadd.f32 %v4961, %v4974
        %4976 = vdwg.mxu0
        %4977 = vmatpush.bf16.msra.mxu0 %v3340
        %4978 = vmatpush.bf16.msra.mxu0 %v3338
        %4979 = vmatpush.bf16.msra.mxu0 %v3336
        %4980 = vmatpush.bf16.msra.mxu0 %v3334
        %4981 = vmatpush.bf16.msra.mxu0 %v3332
        %4982 = vmatpush.bf16.msra.mxu0 %v3330
        %4983 = vmatpush.bf16.msra.mxu0 %v3328
        %4984 = vmatpush.bf16.msra.mxu0 %v3326
        %4985 = vmatmul.bf16.gmra.mxu0 %v1100
        %v4986 = vpop.f32.mrf.mxu0
        %v4987 = vadd.f32 %v4973, %v4986
        %v4988 = vpop.f32.mrf.mxu0
        %v4989 = vadd.f32 %v4975, %v4988
        %4990 = vdwg.mxu0
        %4991 = vmatpush.bf16.msra.mxu0 %v3356
        %4992 = vmatpush.bf16.msra.mxu0 %v3354
        %4993 = vmatpush.bf16.msra.mxu0 %v3352
        %4994 = vmatpush.bf16.msra.mxu0 %v3350
        %4995 = vmatpush.bf16.msra.mxu0 %v3348
        %4996 = vmatpush.bf16.msra.mxu0 %v3346
        %4997 = vmatpush.bf16.msra.mxu0 %v3344
        %4998 = vmatpush.bf16.msra.mxu0 %v3342
        %4999 = vmatmul.bf16.gmra.mxu0 %v1101
        %v5000 = vpop.f32.mrf.mxu0
        %v5001 = vadd.f32 %v4987, %v5000
        %v5002 = vpop.f32.mrf.mxu0
        %v5003 = vadd.f32 %v4989, %v5002
        %5004 = vdwg.mxu0
        %5005 = vmatpush.bf16.msra.mxu0 %v3372
        %5006 = vmatpush.bf16.msra.mxu0 %v3370
        %5007 = vmatpush.bf16.msra.mxu0 %v3368
        %5008 = vmatpush.bf16.msra.mxu0 %v3366
        %5009 = vmatpush.bf16.msra.mxu0 %v3364
        %5010 = vmatpush.bf16.msra.mxu0 %v3362
        %5011 = vmatpush.bf16.msra.mxu0 %v3360
        %5012 = vmatpush.bf16.msra.mxu0 %v3358
        %5013 = vmatmul.bf16.gmra.mxu0 %v1102
        %v5014 = vpop.f32.mrf.mxu0
        %v5015 = vadd.f32 %v5001, %v5014
        %v5016 = vpop.f32.mrf.mxu0
        %v5017 = vadd.f32 %v5003, %v5016
        %5018 = vdwg.mxu0
        %5019 = vmatpush.bf16.msra.mxu0 %v3388
        %5020 = vmatpush.bf16.msra.mxu0 %v3386
        %5021 = vmatpush.bf16.msra.mxu0 %v3384
        %5022 = vmatpush.bf16.msra.mxu0 %v3382
        %5023 = vmatpush.bf16.msra.mxu0 %v3380
        %5024 = vmatpush.bf16.msra.mxu0 %v3378
        %5025 = vmatpush.bf16.msra.mxu0 %v3376
        %5026 = vmatpush.bf16.msra.mxu0 %v3374
        %5027 = vmatmul.bf16.gmra.mxu0 %v1103
        %v5028 = vpop.f32.mrf.mxu0
        %v5029 = vadd.f32 %v5015, %v5028
        %v5030 = vpop.f32.mrf.mxu0
        %v5031 = vadd.f32 %v5017, %v5030
        %5032 = vdwg.mxu0
        %5033 = vmatpush.bf16.msra.mxu0 %v3404
        %5034 = vmatpush.bf16.msra.mxu0 %v3402
        %5035 = vmatpush.bf16.msra.mxu0 %v3400
        %5036 = vmatpush.bf16.msra.mxu0 %v3398
        %5037 = vmatpush.bf16.msra.mxu0 %v3396
        %5038 = vmatpush.bf16.msra.mxu0 %v3394
        %5039 = vmatpush.bf16.msra.mxu0 %v3392
        %5040 = vmatpush.bf16.msra.mxu0 %v3390
        %5041 = vmatmul.bf16.gmra.mxu0 %v1104
        %v5042 = vpop.f32.mrf.mxu0
        %v5043 = vadd.f32 %v5029, %v5042
        %v5044 = vpop.f32.mrf.mxu0
        %v5045 = vadd.f32 %v5031, %v5044
        %5046 = vdwg.mxu0
        %5047 = vmatpush.bf16.msra.mxu0 %v3420
        %5048 = vmatpush.bf16.msra.mxu0 %v3418
        %5049 = vmatpush.bf16.msra.mxu0 %v3416
        %5050 = vmatpush.bf16.msra.mxu0 %v3414
        %5051 = vmatpush.bf16.msra.mxu0 %v3412
        %5052 = vmatpush.bf16.msra.mxu0 %v3410
        %5053 = vmatpush.bf16.msra.mxu0 %v3408
        %5054 = vmatpush.bf16.msra.mxu0 %v3406
        %5055 = vmatmul.bf16.gmra.mxu0 %v1105
        %v5056 = vpop.f32.mrf.mxu0
        %v5057 = vadd.f32 %v5043, %v5056
        %v5058 = vpop.f32.mrf.mxu0
        %v5059 = vadd.f32 %v5045, %v5058
        %5060 = vdwg.mxu0
        %5061 = vmatpush.bf16.msra.mxu0 %v3436
        %5062 = vmatpush.bf16.msra.mxu0 %v3434
        %5063 = vmatpush.bf16.msra.mxu0 %v3432
        %5064 = vmatpush.bf16.msra.mxu0 %v3430
        %5065 = vmatpush.bf16.msra.mxu0 %v3428
        %5066 = vmatpush.bf16.msra.mxu0 %v3426
        %5067 = vmatpush.bf16.msra.mxu0 %v3424
        %5068 = vmatpush.bf16.msra.mxu0 %v3422
        %5069 = vmatmul.bf16.gmra.mxu0 %v1106
        %v5070 = vpop.f32.mrf.mxu0
        %v5071 = vadd.f32 %v5057, %v5070
        %v5072 = vpop.f32.mrf.mxu0
        %v5073 = vadd.f32 %v5059, %v5072
        %5074 = vdwg.mxu0
        %5075 = vmatpush.bf16.msra.mxu0 %v3452
        %5076 = vmatpush.bf16.msra.mxu0 %v3450
        %5077 = vmatpush.bf16.msra.mxu0 %v3448
        %5078 = vmatpush.bf16.msra.mxu0 %v3446
        %5079 = vmatpush.bf16.msra.mxu0 %v3444
        %5080 = vmatpush.bf16.msra.mxu0 %v3442
        %5081 = vmatpush.bf16.msra.mxu0 %v3440
        %5082 = vmatpush.bf16.msra.mxu0 %v3438
        %5083 = vmatmul.bf16.gmra.mxu0 %v1107
        %v5084 = vpop.f32.mrf.mxu0
        %v5085 = vadd.f32 %v5071, %v5084
        %v5086 = vpop.f32.mrf.mxu0
        %v5087 = vadd.f32 %v5073, %v5086
        %5088 = vdwg.mxu0
        %5089 = vmatpush.bf16.msra.mxu0 %v3468
        %5090 = vmatpush.bf16.msra.mxu0 %v3466
        %5091 = vmatpush.bf16.msra.mxu0 %v3464
        %5092 = vmatpush.bf16.msra.mxu0 %v3462
        %5093 = vmatpush.bf16.msra.mxu0 %v3460
        %5094 = vmatpush.bf16.msra.mxu0 %v3458
        %5095 = vmatpush.bf16.msra.mxu0 %v3456
        %5096 = vmatpush.bf16.msra.mxu0 %v3454
        %5097 = vmatmul.bf16.gmra.mxu0 %v1108
        %v5098 = vpop.f32.mrf.mxu0
        %v5099 = vadd.f32 %v5085, %v5098
        %v5100 = vpop.f32.mrf.mxu0
        %v5101 = vadd.f32 %v5087, %v5100
        %5102 = vdwg.mxu0
        %5103 = vmatpush.bf16.msra.mxu0 %v3484
        %5104 = vmatpush.bf16.msra.mxu0 %v3482
        %5105 = vmatpush.bf16.msra.mxu0 %v3480
        %5106 = vmatpush.bf16.msra.mxu0 %v3478
        %5107 = vmatpush.bf16.msra.mxu0 %v3476
        %5108 = vmatpush.bf16.msra.mxu0 %v3474
        %5109 = vmatpush.bf16.msra.mxu0 %v3472
        %5110 = vmatpush.bf16.msra.mxu0 %v3470
        %5111 = vmatmul.bf16.gmra.mxu0 %v1109
        %v5112 = vpop.f32.mrf.mxu0
        %v5113 = vadd.f32 %v5099, %v5112
        %v5114 = vpop.f32.mrf.mxu0
        %v5115 = vadd.f32 %v5101, %v5114
        %5116 = vdwg.mxu0
        %5117 = vmatpush.bf16.msra.mxu0 %v3500
        %5118 = vmatpush.bf16.msra.mxu0 %v3498
        %5119 = vmatpush.bf16.msra.mxu0 %v3496
        %5120 = vmatpush.bf16.msra.mxu0 %v3494
        %5121 = vmatpush.bf16.msra.mxu0 %v3492
        %5122 = vmatpush.bf16.msra.mxu0 %v3490
        %5123 = vmatpush.bf16.msra.mxu0 %v3488
        %5124 = vmatpush.bf16.msra.mxu0 %v3486
        %5125 = vmatmul.bf16.gmra.mxu0 %v1110
        %v5126 = vpop.f32.mrf.mxu0
        %v5127 = vadd.f32 %v5113, %v5126
        %v5128 = vpop.f32.mrf.mxu0
        %v5129 = vadd.f32 %v5115, %v5128
        %5130 = vdwg.mxu0
        %5131 = vmatpush.bf16.msra.mxu0 %v3516
        %5132 = vmatpush.bf16.msra.mxu0 %v3514
        %5133 = vmatpush.bf16.msra.mxu0 %v3512
        %5134 = vmatpush.bf16.msra.mxu0 %v3510
        %5135 = vmatpush.bf16.msra.mxu0 %v3508
        %5136 = vmatpush.bf16.msra.mxu0 %v3506
        %5137 = vmatpush.bf16.msra.mxu0 %v3504
        %5138 = vmatpush.bf16.msra.mxu0 %v3502
        %5139 = vmatmul.bf16.gmra.mxu0 %v1111
        %v5140 = vpop.f32.mrf.mxu0
        %v5141 = vadd.f32 %v5127, %v5140
        %v5142 = vpop.f32.mrf.mxu0
        %v5143 = vadd.f32 %v5129, %v5142
        %5144 = vdwg.mxu0
        %v5145 = vadd.f32 %v329, %v4623
        %v5146 = vadd.f32 %v330, %v5141
        %v5147 = vadd.f32 %v331, %v4625
        %v5148 = vadd.f32 %v332, %v5143
        %5149 = vst [vmem:[%s320] sm:$0xff] %v5145
        %5150 = vst [vmem:[%s320 + $0x8] sm:$0xff] %v5146
        %5151 = vst [vmem:[%s320 + $0x10] sm:$0xff] %v5147
        %5152 = vst [vmem:[%s320 + $0x18] sm:$0xff] %v5148
        %p5153 = scmp.lt.s32.totalorder %s20, 1
        %s5154 = scalar_select %p5153, %s20, 1
        %s5155 = smul.addr %s5154, 4
        %s5156 = smul.addr %s5155, 8
        %s5157 = scalar_lea.vmem %s2, %s5156
        // Predicated region
        $region63: #{discriminator_forward.2} parent=49 // pred_check
          %p5158 = pneg %p106
        $region64: #{discriminator_forward.2} parent=49 // pred_check_branch
          %5160 = sbr.rel (%p5158) target = $region66
        $region65: #{discriminator_forward.2} parent=49 // pred_region
          _
        $region66: #{discriminator_forward.2} parent=49 // pred_fallthru
          _
      $region50: #{discriminator_forward.2} parent=5 // pred_fallthru
        _
      %p5161 = scmp.le.s32.totalorder 2, %s11
      // Predicated region
      $region67: #{discriminator_forward.2} parent=5 // pred_check
        %p5162 = pneg %p5161
      $region68: #{discriminator_forward.2} parent=5 // pred_check_branch
        %5164 = sbr.rel (%p5162) target = $region70
      $region69: #{discriminator_forward.2} parent=5 // pred_region
        %s5165 = ssub.s32 %s11, 2
        // Predicated region
        $region71: #{discriminator_forward.2} parent=69 // pred_check
          %p5166 = pneg %p112
        $region72: #{discriminator_forward.2} parent=69 // pred_check_branch
          %5168 = sbr.rel (%p5166) target = $region74
        $region73: #{discriminator_forward.2} parent=69 // pred_region
          %p5169 = scmp.lt.s32.totalorder %s22, 1
          %s5170 = scalar_select %p5169, %s22, 1
          %s5171 = smul.addr %s5170, 4
          %s5172 = smul.addr %s5171, 8
          %s5173 = scalar_lea.vmem %s2, %s5172
        $region74: #{discriminator_forward.2} parent=69 // pred_fallthru
          _
      $region70: #{discriminator_forward.2} parent=5 // pred_fallthru
        _
    $region6: #{discriminator_forward.2} parent=1 // loop_footer
      %s15 = sadd.s32 1, %s11
    $region7: #{discriminator_forward.2} parent=1 // loop_footer_branch
      %10 = sbr.rel target = $region3
    $region8: #{discriminator_forward.2} parent=1 // loop_exit
      _
    %5174 = vsyncpa [#allocation4], 1
    %s5175 = scalar_lea.sflag [#allocation4], 1
    %5176 = vsyncpa %s5175, 1

</llo_original>
